<compile_context>
chip_gen: v5e
topology: v5e:2x2
jax: 0.10.0
libtpu: 0.0.40
codegen_flags: <defaults>
</compile_context>

<pallas_src>
import math
from functools import partial

import jax
import jax.numpy as jnp
from jax import lax
from jax.experimental import pallas as pl
from jax.experimental.pallas import tpu as pltpu


# ----------------------------- Pallas kernel -------------------------------

def _rel_mha_kernel(q_ref, k_ref, v_ref, tk_ref, tv_ref, o_ref, *,
                    inv_scale, max_rel, q_tile):
    """One (batch b, query-chunk lc) grid step.

    q_ref : (TL, H, D)   query rows for this chunk (all heads)
    k_ref : (S,  H, D)   keys   for batch b (resident across query chunks)
    v_ref : (S,  H, D)   values for batch b (resident across query chunks)
    tk_ref: (NR, D)      relative-position key table, NR = 2*max_rel + 1
    tv_ref: (NR, D)      relative-position value table
    o_ref : (TL, H, D)   output rows (single dense block store)
    """
    q = q_ref[...]
    cdt = q.dtype
    k = k_ref[...]
    v = v_ref[...]
    tk = tk_ref[...]
    tv = tv_ref[...]
    tile = q.shape[0]
    seq_k = k.shape[0]
    nr = tk.shape[0]

    # Fold 1/sqrt(head_dim) into q once (applies to both attn1 and attn2).
    q = q * inv_scale

    # ---- content-content logits, batched over heads (M = TL rows / matmul)
    s1 = jnp.einsum('lhd,shd->hls', q, k,
                    preferred_element_type=jnp.float32)            # (H, TL, S)

    # ---- clipped relative-position indices for this query chunk, from iota
    #      (exact RelativePosition semantics, zero HBM traffic).
    l0 = pl.program_id(1) * q_tile
    qpos = lax.broadcasted_iota(jnp.int32, (tile, seq_k), 0) + l0
    kpos = lax.broadcasted_iota(jnp.int32, (tile, seq_k), 1)
    ridx = jnp.clip(kpos - qpos, -max_rel, max_rel) + max_rel      # (TL, S)
    onehot = (ridx[:, :, None] ==
              lax.broadcasted_iota(jnp.int32, (tile, seq_k, nr), 2)
              ).astype(cdt)                                        # (TL, S, NR)

    # ---- content-position logits: ONE (TL*H, D) x (D, NR) MXU matmul against
    #      the small table, then spread relative buckets r -> key positions s.
    qr = jnp.einsum('lhd,rd->lhr', q, tk,
                    preferred_element_type=jnp.float32)            # (TL, H, NR)
    # TODO(synk): replace the l-batched spread/bucket contractions below with
    # the skew-trick (per-row shift) so they become single lane-dense matmuls.
    attn2 = jnp.einsum('lhr,lsr->hls', qr.astype(cdt), onehot,
                       preferred_element_type=jnp.float32)         # (H, TL, S)

    # ---- softmax over key positions (f32, exact normalization)
    logits = s1 + attn2
    m = jnp.max(logits, axis=-1, keepdims=True)
    e = jnp.exp(logits - m)
    denom = jnp.sum(e, axis=-1, keepdims=True)
    probs = e / denom                                              # (H, TL, S)
    p = probs.astype(cdt)              # feed the MXU in the input dtype

    # ---- content value term, batched over heads (M = TL rows / matmul)
    w1 = jnp.einsum('hls,shd->lhd', p, v,
                    preferred_element_type=jnp.float32)            # (TL, H, D)

    # ---- relative value term: bucket-sum probs over relative offsets, then
    #      ONE (TL*H, NR) x (NR, D) MXU matmul against the small value table.
    ar = jnp.einsum('hls,lsr->lhr', p, onehot,
                    preferred_element_type=jnp.float32)            # (TL, H, NR)
    w2 = jnp.einsum('lhr,rd->lhd', ar.astype(cdt), tv,
                    preferred_element_type=jnp.float32)            # (TL, H, D)

    # single dense block store (no per-head masked stores)
    o_ref[...] = (w1 + w2).astype(o_ref.dtype)


# ------------------------------- wrapper ------------------------------------

def _round_up(x, m):
    return (x + m - 1) // m * m


def relative_mha_pallas(queries, keys, values, table_k, table_v,
                        max_relative_position, query_tile=None):
    """queries: (B, L, H, D); keys/values: (B, S, H, D);
    table_k/table_v: (2*max_relative_position + 1, D).
    Returns (B, L, H, D), matching RelativeMultiHeadAttention.forward (eval)."""
    B, L, H, D = queries.shape
    S = keys.shape[1]
    NR = 2 * max_relative_position + 1
    assert table_k.shape == (NR, D) and table_v.shape == (NR, D)
    inv_scale = 1.0 / math.sqrt(float(D))
    isz = jnp.dtype(queries.dtype).itemsize

    # ---- generation-aware VMEM budget (64 MiB/TC on v7x, 128 MiB on v5e/v6e)
    try:
        vmem_cap = int(pltpu.get_tpu_info().vmem_capacity_bytes)
    except Exception:
        vmem_cap = 64 * 1024 * 1024
    vmem_limit = min(int(vmem_cap * 7 // 8), 112 * 1024 * 1024)

    # ---- pick the query tile so the per-step working set fits the budget
    def step_bytes(tl):
        io = 2 * isz * (2 * tl * H * D + 2 * S * H * D) + 2 * isz * NR * D
        work = 4 * (3 * H * tl * S)           # logits / probs intermediates
        work += isz * tl * S * NR             # relative one-hot spread matrix
        work += 4 * 2 * tl * H * NR           # qr / ar
        return io + work

    if query_tile is None:
        budget = (vmem_limit * 6) // 10
        query_tile = 8
        for cand in (512, 256, 128, 64, 32, 16, 8):
            if step_bytes(cand) <= budget:
                query_tile = cand
                break
    query_tile = max(8, _round_up(min(query_tile, _round_up(L, 8)), 8))

    L_pad = _round_up(L, query_tile)
    if L_pad != L:
        queries = jnp.pad(queries, ((0, 0), (0, L_pad - L), (0, 0), (0, 0)))
    num_l = L_pad // query_tile

    grid = (B, num_l)   # query-chunk axis innermost -> K/V stay VMEM-resident
    q_spec = pl.BlockSpec((None, query_tile, H, D), lambda b, lc: (b, lc, 0, 0))
    kv_spec = pl.BlockSpec((None, S, H, D), lambda b, lc: (b, 0, 0, 0))
    tab_spec = pl.BlockSpec((NR, D), lambda b, lc: (0, 0))
    out_spec = pl.BlockSpec((None, query_tile, H, D), lambda b, lc: (b, lc, 0, 0))

    cost = pl.CostEstimate(
        flops=int(2 * B * H * L_pad * S * D * 2          # qk / pv matmuls
                  + 2 * B * H * L_pad * NR * D * 2       # q*table / ar*table
                  + 2 * B * H * L_pad * S * NR * 2),     # spread / bucket
        transcendentals=int(B * H * L_pad * S),
        bytes_accessed=int(isz * (2 * B * L_pad * H * D + 2 * B * S * H * D
                                  + 2 * NR * D)),
    )

    out = pl.pallas_call(
        partial(_rel_mha_kernel, inv_scale=inv_scale,
                max_rel=max_relative_position, q_tile=query_tile),
        out_shape=jax.ShapeDtypeStruct((B, L_pad, H, D), queries.dtype),
        grid=grid,
        in_specs=[q_spec, kv_spec, kv_spec, tab_spec, tab_spec],
        out_specs=out_spec,
        compiler_params=pltpu.CompilerParams(
            dimension_semantics=("parallel", "parallel"),
            vmem_limit_bytes=vmem_limit,
        ),
        cost_estimate=cost,
    )(queries, keys, values, table_k, table_v)

    if L_pad != L:
        out = out[:, :L]
    return out


# --------------------- parameter setup / reference (plain JAX) --------------

def xavier_uniform(key, shape, dtype=jnp.float32):
    fan_in, fan_out = shape[0], shape[1]
    bound = math.sqrt(6.0 / (fan_in + fan_out))
    return jax.random.uniform(key, shape, dtype, minval=-bound, maxval=bound)


def relative_position_embeddings(table, length_q, length_k, max_relative_position):
    rq = jnp.arange(length_q)
    rk = jnp.arange(length_k)
    distance = rk[None, :] - rq[:, None]
    clipped = jnp.clip(distance, -max_relative_position, max_relative_position)
    return table[clipped + max_relative_position]        # (Lq, Lk, D)


def relative_mha_reference(queries, keys, values, table_k, table_v, max_rel):
    B, L, H, D = queries.shape
    S = keys.shape[1]
    scale = math.sqrt(float(D))
    hp = jax.lax.Precision.HIGHEST
    rel_k = relative_position_embeddings(table_k, L, S, max_rel)
    rel_v = relative_position_embeddings(table_v, L, S, max_rel)
    r_q1 = jnp.transpose(queries, (0, 2, 1, 3))
    r_k1 = jnp.transpose(keys, (0, 2, 1, 3))
    attn1 = jnp.einsum('bhld,bhsd->bhls', r_q1, r_k1, precision=hp)
    attn2 = jnp.einsum('bhld,lsd->bhls', r_q1, rel_k, precision=hp)
    attn = jax.nn.softmax((attn1 + attn2) / scale, axis=-1)
    r_v1 = jnp.transpose(values, (0, 2, 1, 3))
    w1 = jnp.einsum('bhls,bhsd->bhld', attn, r_v1, precision=hp)
    w2 = jnp.einsum('bhls,lsd->bhld', attn, rel_v, precision=hp)
    return jnp.transpose(w1 + w2, (0, 2, 1, 3))


# --------------------------------- main -------------------------------------

if __name__ == "__main__":
    # small shapes consistent with the module's forward:
    #   queries (B, L, H, head_dim), keys/values (B, S, head_dim-per-head heads)
    B, L, S, H, head_dim = 2, 12, 24, 4, 8
    max_relative_position = 4   # small so clipping is actually exercised

    key = jax.random.PRNGKey(0)
    kq, kk, kv, ktk, ktv = jax.random.split(key, 5)
    queries = jax.random.normal(kq, (B, L, H, head_dim), jnp.float32)
    keys = jax.random.normal(kk, (B, S, H, head_dim), jnp.float32)
    values = jax.random.normal(kv, (B, S, H, head_dim), jnp.float32)

    # deterministic xavier-uniform relative position tables (module parameters)
    table_k = xavier_uniform(ktk, (2 * max_relative_position + 1, head_dim))
    table_v = xavier_uniform(ktv, (2 * max_relative_position + 1, head_dim))

    # force a small query tile so the test exercises multi-chunk tiling and
    # the L-padding path (L=12 -> L_pad=16, two query chunks per batch).
    out = relative_mha_pallas(queries, keys, values, table_k, table_v,
                              max_relative_position, query_tile=8)
    out = jax.block_until_ready(out)

    ref = relative_mha_reference(queries, keys, values, table_k, table_v,
                                 max_relative_position)
    assert out.shape == (B, L, H, head_dim)
    # exact softmax normalization now; tolerance only covers MXU vs XLA
    # accumulation-order / precision differences.
    assert jnp.allclose(out, ref, atol=5e-3, rtol=5e-3), "mismatch vs reference"

    print("KERNEL_OK")
</pallas_src>

<mosaic_0001>
module attributes {stable_mosaic.version = 11 : i64} {
  func.func @_rel_mha_kernel(%arg0: i32, %arg1: i32, %arg2: memref<1x8x4x8xf32, #tpu.memory_space<vmem>>, %arg3: memref<1x24x4x8xf32, #tpu.memory_space<vmem>>, %arg4: memref<1x24x4x8xf32, #tpu.memory_space<vmem>>, %arg5: memref<9x8xf32, #tpu.memory_space<vmem>>, %arg6: memref<9x8xf32, #tpu.memory_space<vmem>>, %arg7: memref<1x8x4x8xf32, #tpu.memory_space<vmem>>) attributes {dimension_semantics = [#tpu.dimension_semantics<parallel>, #tpu.dimension_semantics<parallel>], iteration_bounds = array<i64: 2, 2>, scalar_prefetch = 0 : i64, scratch_operands = 0 : i64, tpu.core_type = #tpu.core_type<tc>, window_params = [{transform_indices = @transform_0, window_bounds = array<i64: 1, 8, 4, 8>}, {transform_indices = @transform_1, window_bounds = array<i64: 1, 24, 4, 8>}, {transform_indices = @transform_2, window_bounds = array<i64: 1, 24, 4, 8>}, {pipeline_mode = #tpu.pipeline_mode<synchronous>, transform_indices = @transform_3, window_bounds = array<i64: 9, 8>}, {pipeline_mode = #tpu.pipeline_mode<synchronous>, transform_indices = @transform_4, window_bounds = array<i64: 9, 8>}, {transform_indices = @transform_5, window_bounds = array<i64: 1, 8, 4, 8>}]} {
    %c0 = arith.constant 0 : index
    %c0_0 = arith.constant 0 : index
    %c0_1 = arith.constant 0 : index
    %c0_2 = arith.constant 0 : index
    %0 = vector.load %arg2[%c0, %c0_0, %c0_1, %c0_2] : memref<1x8x4x8xf32, #tpu.memory_space<vmem>>, vector<1x8x4x8xf32>
    %1 = vector.shape_cast %0 : vector<1x8x4x8xf32> to vector<8x4x8xf32>
    %c0_3 = arith.constant 0 : index
    %c0_4 = arith.constant 0 : index
    %c0_5 = arith.constant 0 : index
    %c0_6 = arith.constant 0 : index
    %2 = vector.load %arg3[%c0_3, %c0_4, %c0_5, %c0_6] : memref<1x24x4x8xf32, #tpu.memory_space<vmem>>, vector<1x24x4x8xf32>
    %3 = vector.shape_cast %2 : vector<1x24x4x8xf32> to vector<24x4x8xf32>
    %c0_7 = arith.constant 0 : index
    %c0_8 = arith.constant 0 : index
    %c0_9 = arith.constant 0 : index
    %c0_10 = arith.constant 0 : index
    %4 = vector.load %arg4[%c0_7, %c0_8, %c0_9, %c0_10] : memref<1x24x4x8xf32, #tpu.memory_space<vmem>>, vector<1x24x4x8xf32>
    %5 = vector.shape_cast %4 : vector<1x24x4x8xf32> to vector<24x4x8xf32>
    %c0_11 = arith.constant 0 : index
    %c0_12 = arith.constant 0 : index
    %6 = vector.load %arg5[%c0_11, %c0_12] : memref<9x8xf32, #tpu.memory_space<vmem>>, vector<9x8xf32>
    %c0_13 = arith.constant 0 : index
    %c0_14 = arith.constant 0 : index
    %7 = vector.load %arg6[%c0_13, %c0_14] : memref<9x8xf32, #tpu.memory_space<vmem>>, vector<9x8xf32>
    %cst = arith.constant 0.353553385 : f32
    %8 = vector.broadcast %cst : f32 to vector<8x4x8xf32>
    %9 = arith.mulf %1, %8 : vector<8x4x8xf32>
    "tpu.trace_start"() <{level = 10 : i32, message = "lhd,shd->hls"}> : () -> ()
    %cst_15 = arith.constant dense<0.000000e+00> : vector<4x8x24xf32>
    %10 = tpu.matmul %9, %3, %cst_15 {dimension_numbers = #tpu.dot_dimension_numbers<[2], [2], [0], [0], [0, 1, 0, 0, 1, 0], [1], [1]>} : vector<8x4x8xf32>, vector<24x4x8xf32>, vector<4x8x24xf32> -> vector<4x8x24xf32>
    "tpu.trace_stop"() : () -> ()
    %c8_i32 = arith.constant 8 : i32
    %11 = arith.muli %arg1, %c8_i32 : i32
    %12 = tpu.iota {dimensions = array<i32: 0>} : vector<8x24xi32>
    %13 = vector.broadcast %11 : i32 to vector<8x24xi32>
    %14 = arith.addi %12, %13 : vector<8x24xi32>
    %15 = tpu.iota {dimensions = array<i32: 1>} : vector<8x24xi32>
    %16 = arith.subi %15, %14 : vector<8x24xi32>
    %c-4_i32 = arith.constant -4 : i32
    %c4_i32 = arith.constant 4 : i32
    %17 = vector.broadcast %c-4_i32 : i32 to vector<8x24xi32>
    %18 = arith.maxsi %17, %16 : vector<8x24xi32>
    %19 = vector.broadcast %c4_i32 : i32 to vector<8x24xi32>
    %20 = arith.minsi %19, %18 : vector<8x24xi32>
    %c4_i32_16 = arith.constant 4 : i32
    %21 = vector.broadcast %c4_i32_16 : i32 to vector<8x24xi32>
    %22 = arith.addi %20, %21 : vector<8x24xi32>
    %23 = vector.shape_cast %22 : vector<8x24xi32> to vector<8x24x1xi32>
    %24 = tpu.iota {dimensions = array<i32: 2>} : vector<8x24x9xi32>
    %25 = vector.broadcast %23 : vector<8x24x1xi32> to vector<8x24x9xi32>
    %26 = arith.cmpi eq, %25, %24 : vector<8x24x9xi32>
    %27 = arith.extui %26 : vector<8x24x9xi1> to vector<8x24x9xi32>
    %28 = arith.sitofp %27 : vector<8x24x9xi32> to vector<8x24x9xf32>
    "tpu.trace_start"() <{level = 10 : i32, message = "lhd,rd->lhr"}> : () -> ()
    %cst_17 = arith.constant dense<0.000000e+00> : vector<8x4x9xf32>
    %29 = tpu.matmul %9, %6, %cst_17 {dimension_numbers = #tpu.dot_dimension_numbers<[2], [1], [0, 1], [0], [0, 0, 0, 1, 1, 0], [], []>} : vector<8x4x8xf32>, vector<9x8xf32>, vector<8x4x9xf32> -> vector<8x4x9xf32>
    "tpu.trace_stop"() : () -> ()
    "tpu.trace_start"() <{level = 10 : i32, message = "lhr,lsr->hls"}> : () -> ()
    %cst_18 = arith.constant dense<0.000000e+00> : vector<8x24x4xf32>
    %30 = tpu.matmul %28, %29, %cst_18 {dimension_numbers = #tpu.dot_dimension_numbers<[2], [2], [1], [1], [0, 0, 0, 1, 1, 1], [0], [0]>} : vector<8x24x9xf32>, vector<8x4x9xf32>, vector<8x24x4xf32> -> vector<8x24x4xf32>
    %31 = tpu.transpose %30, [2, 0, 1] : vector<8x24x4xf32> -> vector<4x8x24xf32>
    "tpu.trace_stop"() : () -> ()
    %32 = arith.addf %10, %31 : vector<4x8x24xf32>
    %cst_19 = arith.constant dense<0xFF800000> : vector<4x8xf32>
    %33 = vector.multi_reduction <maximumf>, %32, %cst_19 [2] : vector<4x8x24xf32> to vector<4x8xf32>
    %34 = vector.shape_cast %33 : vector<4x8xf32> to vector<4x8x1xf32>
    %35 = vector.broadcast %34 : vector<4x8x1xf32> to vector<4x8x24xf32>
    %36 = arith.subf %32, %35 : vector<4x8x24xf32>
    %37 = math.exp %36 : vector<4x8x24xf32>
    %cst_20 = arith.constant dense<0.000000e+00> : vector<4x8xf32>
    %38 = vector.multi_reduction <add>, %37, %cst_20 [2] : vector<4x8x24xf32> to vector<4x8xf32>
    %39 = vector.shape_cast %38 : vector<4x8xf32> to vector<4x8x1xf32>
    %40 = vector.broadcast %39 : vector<4x8x1xf32> to vector<4x8x24xf32>
    %41 = arith.divf %37, %40 : vector<4x8x24xf32>
    "tpu.trace_start"() <{level = 10 : i32, message = "hls,shd->lhd"}> : () -> ()
    %cst_21 = arith.constant dense<0.000000e+00> : vector<4x8x8xf32>
    %42 = tpu.matmul %5, %41, %cst_21 {dimension_numbers = #tpu.dot_dimension_numbers<[0], [2], [2], [1], [0, 1, 0, 2, 1, 1], [1], [0]>} : vector<24x4x8xf32>, vector<4x8x24xf32>, vector<4x8x8xf32> -> vector<4x8x8xf32>
    %43 = tpu.transpose %42, [2, 0, 1] : vector<4x8x8xf32> -> vector<8x4x8xf32>
    "tpu.trace_stop"() : () -> ()
    "tpu.trace_start"() <{level = 10 : i32, message = "hls,lsr->lhr"}> : () -> ()
    %cst_22 = arith.constant dense<0.000000e+00> : vector<8x4x9xf32>
    %44 = tpu.matmul %41, %28, %cst_22 {dimension_numbers = #tpu.dot_dimension_numbers<[2], [1], [0], [2], [0, 1, 0, 0, 1, 2], [1], [0]>} : vector<4x8x24xf32>, vector<8x24x9xf32>, vector<8x4x9xf32> -> vector<8x4x9xf32>
    "tpu.trace_stop"() : () -> ()
    "tpu.trace_start"() <{level = 10 : i32, message = "lhr,rd->lhd"}> : () -> ()
    %cst_23 = arith.constant dense<0.000000e+00> : vector<8x4x8xf32>
    %45 = tpu.matmul %44, %7, %cst_23 {dimension_numbers = #tpu.dot_dimension_numbers<[2], [0], [0, 1], [1], [0, 0, 0, 1, 1, 1], [], []>} : vector<8x4x9xf32>, vector<9x8xf32>, vector<8x4x8xf32> -> vector<8x4x8xf32>
    "tpu.trace_stop"() : () -> ()
    %46 = arith.addf %43, %45 : vector<8x4x8xf32>
    %c0_24 = arith.constant 0 : index
    %c0_25 = arith.constant 0 : index
    %c0_26 = arith.constant 0 : index
    %c0_27 = arith.constant 0 : index
    %47 = vector.load %arg7[%c0_24, %c0_25, %c0_26, %c0_27] : memref<1x8x4x8xf32, #tpu.memory_space<vmem>>, vector<1x8x4x8xf32>
    %48 = vector.shape_cast %47 : vector<1x8x4x8xf32> to vector<8x4x8xf32>
    %49 = vector.shape_cast %46 : vector<8x4x8xf32> to vector<1x8x4x8xf32>
    tpu.vector_store %arg7[%c0_24, %c0_25, %c0_26, %c0_27], %49 {strides = array<i32>} : memref<1x8x4x8xf32, #tpu.memory_space<vmem>>, vector<1x8x4x8xf32>,
    return
  }
  func.func @transform_0(%arg0: i32, %arg1: i32) -> (i32, i32, i32, i32) {
    %c0_i32 = arith.constant 0 : i32
    %c0_i32_0 = arith.constant 0 : i32
    %c0_i32_1 = arith.constant 0 : i32
    return %arg0, %arg1, %c0_i32, %c0_i32_0 : i32, i32, i32, i32
  }
  func.func @transform_1(%arg0: i32, %arg1: i32) -> (i32, i32, i32, i32) {
    %c0_i32 = arith.constant 0 : i32
    %c0_i32_0 = arith.constant 0 : i32
    %c0_i32_1 = arith.constant 0 : i32
    %c0_i32_2 = arith.constant 0 : i32
    return %arg0, %c0_i32, %c0_i32_0, %c0_i32_1 : i32, i32, i32, i32
  }
  func.func @transform_2(%arg0: i32, %arg1: i32) -> (i32, i32, i32, i32) {
    %c0_i32 = arith.constant 0 : i32
    %c0_i32_0 = arith.constant 0 : i32
    %c0_i32_1 = arith.constant 0 : i32
    %c0_i32_2 = arith.constant 0 : i32
    return %arg0, %c0_i32, %c0_i32_0, %c0_i32_1 : i32, i32, i32, i32
  }
  func.func @transform_3(%arg0: i32, %arg1: i32) -> (i32, i32) {
    %c0_i32 = arith.constant 0 : i32
    %c0_i32_0 = arith.constant 0 : i32
    %c0_i32_1 = arith.constant 0 : i32
    return %c0_i32, %c0_i32_0 : i32, i32
  }
  func.func @transform_4(%arg0: i32, %arg1: i32) -> (i32, i32) {
    %c0_i32 = arith.constant 0 : i32
    %c0_i32_0 = arith.constant 0 : i32
    %c0_i32_1 = arith.constant 0 : i32
    return %c0_i32, %c0_i32_0 : i32, i32
  }
  func.func @transform_5(%arg0: i32, %arg1: i32) -> (i32, i32, i32, i32) {
    %c0_i32 = arith.constant 0 : i32
    %c0_i32_0 = arith.constant 0 : i32
    %c0_i32_1 = arith.constant 0 : i32
    return %arg0, %arg1, %c0_i32, %c0_i32_0 : i32, i32, i32, i32
  }
}

</mosaic_0001>

<llo_original>
// kernel: tpu_custom_call.1
$region0: #{tpu_custom_call.1}
  #allocation0 [shape = 'u32[]', space=smem, size = 0x4, offset = 0x4, fixed_abs, tag = 'smem constant byte address 0x4 - core index']
  #allocation1 [shape = 'u32[72,128]{1,0:T(1,128)}', space=vmem, size = 0x9000, scoped, tag = 'internal scratch']
  %s0 = inlined_call_operand.vmem [shape: f32[2,16,4,8], index: 0, kind: input, shape index: {}]
  %s1 = inlined_call_operand.vmem [shape: f32[2,24,4,8], index: 1, kind: input, shape index: {}]
  %s2 = inlined_call_operand.vmem [shape: f32[2,24,4,8], index: 2, kind: input, shape index: {}]
  %s3 = inlined_call_operand.vmem [shape: f32[9,8], index: 3, kind: input, shape index: {}]
  %s4 = inlined_call_operand.vmem [shape: f32[9,8], index: 4, kind: input, shape index: {}]
  %s5 = inlined_call_operand.vmem [shape: f32[2,16,4,8], index: 5, kind: output, shape index: {}]
  %s6 = sld [smem:[#allocation0]]
  $region53: #{tpu_custom_call.1} parent=0
    _
  %s8 = ssub.s32 1, %s6
  %s9 = scalar_select 0, %s8, %s6
  loop: start=0, step=1, limit=6
  $region2: #{tpu_custom_call.1} parent=0 // loop_pre_header
    _
  $region3: #{tpu_custom_call.1} parent=0 // loop_header
    %s11 = sphi 0, %s15
    %p12 = scmp.ge.s32.totalorder %s11, 6
    %s18 = sphi 0, %s30
    %s19 = sphi 0, %s26
    %s20 = sphi 0, %s18
    %s21 = sphi 0, %s19
    %s22 = sphi 0, %s20
    %s23 = sphi 0, %s21
    %s35 = sphi 0, %s37
    %s38 = sphi 0, %s35
    %s39 = sphi 0, %s38
    %s55 = sphi 0, %s39
    %s61 = sphi 0, %s63
    %s64 = sphi 0, %s61
    %s65 = sphi 0, %s64
    %s81 = sphi 0, %s65
    %s87 = sphi 0, %s89
    %s90 = sphi 0, %s87
    %s91 = sphi 0, %s90
    %s107 = sphi 0, %s91
    %s111 = sphi 0, %s111
    %s113 = sphi 0, %s111
    %s114 = sphi 0, %s113
    %s128 = sphi 0, %s114
    %s132 = sphi 0, %s132
    %s134 = sphi 0, %s132
    %s135 = sphi 0, %s134
    %s149 = sphi 0, %s135
    %s157 = sphi 0, %s159
    %s160 = sphi 0, %s157
    %s161 = sphi 0, %s160
    %s177 = sphi 0, %s161
  $region4: #{tpu_custom_call.1} parent=0 // loop_header_branch
    %14 = sbr.rel (%p12) target = $region8
  $region5: #{tpu_custom_call.1} parent=0 // loop_body
    %s16 = ssub.s32 %s11, 1
    %s17 = ssub.s32 %s11, 2
    %s24 = sadd.s32 1, %s19
    %p25 = scmp.ge.s32.totalorder %s24, 2
    %s26 = scalar_select %p25, 0, %s24
    %s27 = sadd.s32 1, %s18
    %s28 = scalar_select %p25, %s27, %s18
    %p29 = scmp.ge.s32.totalorder %s28, 2
    %s30 = scalar_select %p29, 0, %s28
    %s31 = ssub.s32 %s18, %s30
    %s32 = ssub.s32 %s19, %s26
    %s33 = sor.u32 %s31, %s32
    %p34 = scmp.eq.s32.totalorder %s33, 0
    %s36 = sadd.s32 %s35, 1
    %s37 = scalar_select %p34, %s35, %s36
    %p40 = pneg %p34
    %p41 = scmp.eq.s32.totalorder %s11, 3
    %p42 = por %p40, %p41
    %p43 = scmp.ne.s32.totalorder %s35, %s38
    %p44 = scmp.eq.s32.totalorder %s11, 0
    %p45 = por %p43, %p44
    %p46 = scmp.ne.s32.totalorder %s35, %s38
    %p47 = scmp.eq.s32.totalorder %s16, 3
    %p48 = por %p46, %p47
    %p49 = scmp.ne.s32.totalorder %s38, %s39
    %p50 = scmp.eq.s32.totalorder %s16, 0
    %p51 = por %p49, %p50
    %p52 = scmp.ne.s32.totalorder %s38, %s39
    %p53 = scmp.eq.s32.totalorder %s17, 3
    %p54 = por %p52, %p53
    %p56 = scmp.ne.s32.totalorder %s39, %s55
    %p57 = scmp.eq.s32.totalorder %s17, 0
    %p58 = por %p56, %p57
    %s59 = ssub.s32 %s18, %s30
    %p60 = scmp.eq.s32.totalorder %s59, 0
    %s62 = sadd.s32 %s61, 1
    %s63 = scalar_select %p60, %s61, %s62
    %p66 = pneg %p60
    %p67 = scmp.eq.s32.totalorder %s11, 3
    %p68 = por %p66, %p67
    %p69 = scmp.ne.s32.totalorder %s61, %s64
    %p70 = scmp.eq.s32.totalorder %s11, 0
    %p71 = por %p69, %p70
    %p72 = scmp.ne.s32.totalorder %s61, %s64
    %p73 = scmp.eq.s32.totalorder %s16, 3
    %p74 = por %p72, %p73
    %p75 = scmp.ne.s32.totalorder %s64, %s65
    %p76 = scmp.eq.s32.totalorder %s16, 0
    %p77 = por %p75, %p76
    %p78 = scmp.ne.s32.totalorder %s64, %s65
    %p79 = scmp.eq.s32.totalorder %s17, 3
    %p80 = por %p78, %p79
    %p82 = scmp.ne.s32.totalorder %s65, %s81
    %p83 = scmp.eq.s32.totalorder %s17, 0
    %p84 = por %p82, %p83
    %s85 = ssub.s32 %s18, %s30
    %p86 = scmp.eq.s32.totalorder %s85, 0
    %s88 = sadd.s32 %s87, 1
    %s89 = scalar_select %p86, %s87, %s88
    %p92 = pneg %p86
    %p93 = scmp.eq.s32.totalorder %s11, 3
    %p94 = por %p92, %p93
    %p95 = scmp.ne.s32.totalorder %s87, %s90
    %p96 = scmp.eq.s32.totalorder %s11, 0
    %p97 = por %p95, %p96
    %p98 = scmp.ne.s32.totalorder %s87, %s90
    %p99 = scmp.eq.s32.totalorder %s16, 3
    %p100 = por %p98, %p99
    %p101 = scmp.ne.s32.totalorder %s90, %s91
    %p102 = scmp.eq.s32.totalorder %s16, 0
    %p103 = por %p101, %p102
    %p104 = scmp.ne.s32.totalorder %s90, %s91
    %p105 = scmp.eq.s32.totalorder %s17, 3
    %p106 = por %p104, %p105
    %p108 = scmp.ne.s32.totalorder %s91, %s107
    %p109 = scmp.eq.s32.totalorder %s17, 0
    %p110 = por %p108, %p109
    %s112 = sadd.s32 %s111, 1
    %p115 = scmp.eq.s32.totalorder %s11, 3
    %p116 = scmp.ne.s32.totalorder %s111, %s113
    %p117 = scmp.eq.s32.totalorder %s11, 0
    %p118 = por %p116, %p117
    %p119 = scmp.ne.s32.totalorder %s111, %s113
    %p120 = scmp.eq.s32.totalorder %s16, 3
    %p121 = por %p119, %p120
    %p122 = scmp.ne.s32.totalorder %s113, %s114
    %p123 = scmp.eq.s32.totalorder %s16, 0
    %p124 = por %p122, %p123
    %p125 = scmp.ne.s32.totalorder %s113, %s114
    %p126 = scmp.eq.s32.totalorder %s17, 3
    %p127 = por %p125, %p126
    %p129 = scmp.ne.s32.totalorder %s114, %s128
    %p130 = scmp.eq.s32.totalorder %s17, 0
    %p131 = por %p129, %p130
    %s133 = sadd.s32 %s132, 1
    %p136 = scmp.eq.s32.totalorder %s11, 3
    %p137 = scmp.ne.s32.totalorder %s132, %s134
    %p138 = scmp.eq.s32.totalorder %s11, 0
    %p139 = por %p137, %p138
    %p140 = scmp.ne.s32.totalorder %s132, %s134
    %p141 = scmp.eq.s32.totalorder %s16, 3
    %p142 = por %p140, %p141
    %p143 = scmp.ne.s32.totalorder %s134, %s135
    %p144 = scmp.eq.s32.totalorder %s16, 0
    %p145 = por %p143, %p144
    %p146 = scmp.ne.s32.totalorder %s134, %s135
    %p147 = scmp.eq.s32.totalorder %s17, 3
    %p148 = por %p146, %p147
    %p150 = scmp.ne.s32.totalorder %s135, %s149
    %p151 = scmp.eq.s32.totalorder %s17, 0
    %p152 = por %p150, %p151
    %s153 = ssub.s32 %s18, %s30
    %s154 = ssub.s32 %s19, %s26
    %s155 = sor.u32 %s153, %s154
    %p156 = scmp.eq.s32.totalorder %s155, 0
    %s158 = sadd.s32 %s157, 1
    %s159 = scalar_select %p156, %s157, %s158
    %p162 = pneg %p156
    %p163 = scmp.eq.s32.totalorder %s11, 3
    %p164 = por %p162, %p163
    %p165 = scmp.ne.s32.totalorder %s157, %s160
    %p166 = scmp.eq.s32.totalorder %s11, 0
    %p167 = por %p165, %p166
    %p168 = scmp.ne.s32.totalorder %s157, %s160
    %p169 = scmp.eq.s32.totalorder %s16, 3
    %p170 = por %p168, %p169
    %p171 = scmp.ne.s32.totalorder %s160, %s161
    %p172 = scmp.eq.s32.totalorder %s16, 0
    %p173 = por %p171, %p172
    %p174 = scmp.ne.s32.totalorder %s160, %s161
    %p175 = scmp.eq.s32.totalorder %s17, 3
    %p176 = por %p174, %p175
    %p178 = scmp.ne.s32.totalorder %s161, %s177
    %p179 = scmp.eq.s32.totalorder %s17, 0
    %p180 = por %p178, %p179
    %p181 = scmp.le.s32.totalorder 1, %s11
    %p182 = scmp.lt.s32.totalorder %s11, 5
    %p183 = pnand %p181, %p182
    %p184 = pneg %p183
    // Predicated region
    $region9: #{tpu_custom_call.1} parent=5 // pred_check
      _
    $region10: #{tpu_custom_call.1} parent=5 // pred_check_branch
      %186 = sbr.rel (%p183) target = $region12
    $region11: #{tpu_custom_call.1} parent=5 // pred_region
      %s187 = ssub.s32 %s11, 1
      // Predicated region
      $region13: #{tpu_custom_call.1} parent=11 // pred_check
        %p188 = pneg %p124
      $region14: #{tpu_custom_call.1} parent=11 // pred_check_branch
        %190 = sbr.rel (%p188) target = $region16
      $region15: #{tpu_custom_call.1} parent=11 // pred_region
        _
      $region16: #{tpu_custom_call.1} parent=11 // pred_fallthru
        _
      // Predicated region
      $region17: #{tpu_custom_call.1} parent=11 // pred_check
        %p191 = pneg %p145
      $region18: #{tpu_custom_call.1} parent=11 // pred_check_branch
        %193 = sbr.rel (%p191) target = $region20
      $region19: #{tpu_custom_call.1} parent=11 // pred_region
        _
      $region20: #{tpu_custom_call.1} parent=11 // pred_fallthru
        _
    $region12: #{tpu_custom_call.1} parent=5 // pred_fallthru
      _
    %p194 = scmp.lt.s32.totalorder %s11, 4
    // Predicated region
    $region21: #{tpu_custom_call.1} parent=5 // pred_check
      %p195 = pneg %p194
    $region22: #{tpu_custom_call.1} parent=5 // pred_check_branch
      %197 = sbr.rel (%p195) target = $region24
    $region23: #{tpu_custom_call.1} parent=5 // pred_region
      // Predicated region
      $region25: #{tpu_custom_call.1} parent=23 // pred_check
        %p198 = pneg %p45
      $region26: #{tpu_custom_call.1} parent=23 // pred_check_branch
        %200 = sbr.rel (%p198) target = $region28
      $region27: #{tpu_custom_call.1} parent=23 // pred_region
        %s201 = smul.u32 8, %s19
        %p202 = scmp.lt.s32.totalorder %s18, 1
        %s203 = scalar_select %p202, %s18, 1
        %p204 = scmp.lt.s32.totalorder %s201, 15
        %s205 = scalar_select %p204, %s201, 15
        %s206 = smul.addr %s203, 16
        %s207 = sadd.s32 %s205, %s206
        %s208 = smul.addr %s207, 4
        %s209 = scalar_lea.vmem %s0, %s208
        %s210 = smul.u32 8, %s19
      $region28: #{tpu_custom_call.1} parent=23 // pred_fallthru
        _
      // Predicated region
      $region29: #{tpu_custom_call.1} parent=23 // pred_check
        %p211 = pneg %p71
      $region30: #{tpu_custom_call.1} parent=23 // pred_check_branch
        %213 = sbr.rel (%p211) target = $region32
      $region31: #{tpu_custom_call.1} parent=23 // pred_region
        %p214 = scmp.lt.s32.totalorder %s18, 1
        %s215 = scalar_select %p214, %s18, 1
        %s216 = smul.addr %s215, 24
        %s217 = smul.addr %s216, 4
        %s218 = scalar_lea.vmem %s1, %s217
      $region32: #{tpu_custom_call.1} parent=23 // pred_fallthru
        _
      // Predicated region
      $region33: #{tpu_custom_call.1} parent=23 // pred_check
        %p219 = pneg %p97
      $region34: #{tpu_custom_call.1} parent=23 // pred_check_branch
        %221 = sbr.rel (%p219) target = $region36
      $region35: #{tpu_custom_call.1} parent=23 // pred_region
        %p222 = scmp.lt.s32.totalorder %s18, 1
        %s223 = scalar_select %p222, %s18, 1
        %s224 = smul.addr %s223, 24
        %s225 = smul.addr %s224, 4
        %s226 = scalar_lea.vmem %s2, %s225
      $region36: #{tpu_custom_call.1} parent=23 // pred_fallthru
        _
    $region24: #{tpu_custom_call.1} parent=5 // pred_fallthru
      _
    %p227 = scmp.le.s32.totalorder 1, %s11
    %p228 = scmp.lt.s32.totalorder %s11, 5
    %p229 = pnand %p227, %p228
    %p230 = pneg %p229
    // Predicated region
    $region37: #{tpu_custom_call.1} parent=5 // pred_check
      _
    $region38: #{tpu_custom_call.1} parent=5 // pred_check_branch
      %232 = sbr.rel (%p229) target = $region40
    $region39: #{tpu_custom_call.1} parent=5 // pred_region
      %s233 = ssub.s32 %s11, 1
      %s234 = smul.u32 8, %s21
      %p235 = scmp.lt.s32.totalorder %s20, 1
      %s236 = scalar_select %p235, %s20, 1
      %p237 = scmp.lt.s32.totalorder %s234, 15
      %s238 = scalar_select %p237, %s234, 15
      %s239 = smul.addr %s236, 16
      %s240 = sadd.s32 %s238, %s239
      %s241 = smul.addr %s240, 4
      %s242 = scalar_lea.vmem %s0, %s241
      %p243 = pneg %p51
      %p244 = pneg %p48
      %p245 = scmp.lt.s32.totalorder %s20, 1
      %s246 = scalar_select %p245, %s20, 1
      %s247 = smul.addr %s246, 24
      %s248 = smul.addr %s247, 4
      %s249 = scalar_lea.vmem %s1, %s248
      %p250 = pneg %p77
      %p251 = pneg %p74
      %p252 = scmp.lt.s32.totalorder %s20, 1
      %s253 = scalar_select %p252, %s20, 1
      %s254 = smul.addr %s253, 24
      %s255 = smul.addr %s254, 4
      %s256 = scalar_lea.vmem %s2, %s255
      %p257 = pneg %p103
      %p258 = pneg %p100
      %p259 = pneg %p124
      %p260 = pneg %p121
      %p261 = pneg %p145
      %p262 = pneg %p142
      %p263 = pneg %p173
      %p264 = pneg %p170
      %s265 = smul.u32 8, %s21
      %p266 = scmp.lt.s32.totalorder %s20, 1
      %s267 = scalar_select %p266, %s20, 1
      %p268 = scmp.lt.s32.totalorder %s265, 15
      %s269 = scalar_select %p268, %s265, 15
      %s270 = smul.addr %s267, 16
      %s271 = sadd.s32 %s269, %s270
      %s272 = smul.addr %s271, 4
      %s273 = scalar_lea.vmem %s5, %s272
      %s274 = smul.u32 8, %s21
      %p275 = scmp.lt.s32.totalorder %s20, 1
      %s276 = scalar_select %p275, %s20, 1
      %p277 = scmp.lt.s32.totalorder %s274, 15
      %s278 = scalar_select %p277, %s274, 15
      %s279 = smul.addr %s276, 16
      %s280 = sadd.s32 %s278, %s279
      %s281 = smul.addr %s280, 4
      %s282 = scalar_lea.vmem %s0, %s281
      %s283 = smul.u32 8, %s21
      %p284 = scmp.lt.s32.totalorder %s20, 1
      %s285 = scalar_select %p284, %s20, 1
      %s286 = smul.addr %s285, 24
      %s287 = smul.addr %s286, 4
      %s288 = scalar_lea.vmem %s1, %s287
      %p289 = scmp.lt.s32.totalorder %s20, 1
      %s290 = scalar_select %p289, %s20, 1
      %s291 = smul.addr %s290, 24
      %s292 = smul.addr %s291, 4
      %s293 = scalar_lea.vmem %s2, %s292
      %s294 = smul.u32 8, %s21
      %p295 = scmp.lt.s32.totalorder %s20, 1
      %s296 = scalar_select %p295, %s20, 1
      %p297 = scmp.lt.s32.totalorder %s294, 15
      %s298 = scalar_select %p297, %s294, 15
      %s299 = smul.addr %s296, 16
      %s300 = sadd.s32 %s298, %s299
      %s301 = smul.addr %s300, 4
      %s302 = scalar_lea.vmem %s5, %s301
      %s303 = smul.u32 8, %s21
      %v304 = vld [vmem:[%s282] sm:$0xf]
      %v305 = vld [vmem:[%s282 + $0x4] sm:$0xf]
      %v306 = vld [vmem:[%s282 + $0x8] sm:$0xf]
      %v307 = vld [vmem:[%s282 + $0xc] sm:$0xf]
      %v308 = vld [vmem:[%s282 + $0x10] sm:$0xf]
      %v309 = vld [vmem:[%s282 + $0x14] sm:$0xf]
      %v310 = vld [vmem:[%s282 + $0x18] sm:$0xf]
      %v311 = vld [vmem:[%s282 + $0x1c] sm:$0xf]
      %v312 = vld [vmem:[%s288] sm:$0xf]
      %v313 = vld [vmem:[%s288 + $0x4] sm:$0xf]
      %v314 = vld [vmem:[%s288 + $0x8] sm:$0xf]
      %v315 = vld [vmem:[%s288 + $0xc] sm:$0xf]
      %v316 = vld [vmem:[%s288 + $0x10] sm:$0xf]
      %v317 = vld [vmem:[%s288 + $0x14] sm:$0xf]
      %v318 = vld [vmem:[%s288 + $0x18] sm:$0xf]
      %v319 = vld [vmem:[%s288 + $0x1c] sm:$0xf]
      %v320 = vld [vmem:[%s288 + $0x20] sm:$0xf]
      %v321 = vld [vmem:[%s288 + $0x24] sm:$0xf]
      %v322 = vld [vmem:[%s288 + $0x28] sm:$0xf]
      %v323 = vld [vmem:[%s288 + $0x2c] sm:$0xf]
      %v324 = vld [vmem:[%s288 + $0x30] sm:$0xf]
      %v325 = vld [vmem:[%s288 + $0x34] sm:$0xf]
      %v326 = vld [vmem:[%s288 + $0x38] sm:$0xf]
      %v327 = vld [vmem:[%s288 + $0x3c] sm:$0xf]
      %v328 = vld [vmem:[%s288 + $0x40] sm:$0xf]
      %v329 = vld [vmem:[%s288 + $0x44] sm:$0xf]
      %v330 = vld [vmem:[%s288 + $0x48] sm:$0xf]
      %v331 = vld [vmem:[%s288 + $0x4c] sm:$0xf]
      %v332 = vld [vmem:[%s288 + $0x50] sm:$0xf]
      %v333 = vld [vmem:[%s288 + $0x54] sm:$0xf]
      %v334 = vld [vmem:[%s288 + $0x58] sm:$0xf]
      %v335 = vld [vmem:[%s288 + $0x5c] sm:$0xf]
      %v336 = vld [vmem:[%s293] sm:$0xf]
      %v337 = vld [vmem:[%s293 + $0x4] sm:$0xf]
      %v338 = vld [vmem:[%s293 + $0x8] sm:$0xf]
      %v339 = vld [vmem:[%s293 + $0xc] sm:$0xf]
      %v340 = vld [vmem:[%s293 + $0x10] sm:$0xf]
      %v341 = vld [vmem:[%s293 + $0x14] sm:$0xf]
      %v342 = vld [vmem:[%s293 + $0x18] sm:$0xf]
      %v343 = vld [vmem:[%s293 + $0x1c] sm:$0xf]
      %v344 = vld [vmem:[%s293 + $0x20] sm:$0xf]
      %v345 = vld [vmem:[%s293 + $0x24] sm:$0xf]
      %v346 = vld [vmem:[%s293 + $0x28] sm:$0xf]
      %v347 = vld [vmem:[%s293 + $0x2c] sm:$0xf]
      %v348 = vld [vmem:[%s293 + $0x30] sm:$0xf]
      %v349 = vld [vmem:[%s293 + $0x34] sm:$0xf]
      %v350 = vld [vmem:[%s293 + $0x38] sm:$0xf]
      %v351 = vld [vmem:[%s293 + $0x3c] sm:$0xf]
      %v352 = vld [vmem:[%s293 + $0x40] sm:$0xf]
      %v353 = vld [vmem:[%s293 + $0x44] sm:$0xf]
      %v354 = vld [vmem:[%s293 + $0x48] sm:$0xf]
      %v355 = vld [vmem:[%s293 + $0x4c] sm:$0xf]
      %v356 = vld [vmem:[%s293 + $0x50] sm:$0xf]
      %v357 = vld [vmem:[%s293 + $0x54] sm:$0xf]
      %v358 = vld [vmem:[%s293 + $0x58] sm:$0xf]
      %v359 = vld [vmem:[%s293 + $0x5c] sm:$0xf]
      %v360 = vld [vmem:[%s3] sm:$0xff]
      %v361 = vld [vmem:[%s3 + $0x8] sm:$0x1]
      %v362 = vld [vmem:[%s4] sm:$0xff]
      %v363 = vld [vmem:[%s4 + $0x8] sm:$0x1]
      %v364 = vmul.f32 %v304, 0.35355338
      %v365 = vmul.f32 %v305, 0.35355338
      %v366 = vmul.f32 %v306, 0.35355338
      %v367 = vmul.f32 %v307, 0.35355338
      %v368 = vmul.f32 %v308, 0.35355338
      %v369 = vmul.f32 %v309, 0.35355338
      %v370 = vmul.f32 %v310, 0.35355338
      %v371 = vmul.f32 %v311, 0.35355338
      %s372 = smul.u32 %s21, 8
      %v373 = vlaneseq
      %v374 = vshrl.u32 %v373, 7
      %v375 = vstv %s372
      %v376 = vadd.s32 %v374, %v375
      %v377 = vlaneseq
      %v378 = vand.u32 %v377, 127
      %v379 = vsub.s32 %v378, %v376
      %vm380 = vcmp.gt.s32.totalorder %v379, 4294967292
      %v381 = vsel %vm380, %v379, 4294967292
      %vm382 = vcmp.lt.s32.totalorder %v381, 4
      %v383 = vsel %vm382, %v381, 4
      %v384 = vadd.s32 %v383, 4
      %v385 = vperm.slane %v384, 0
      %v386 = vlaneseq
      %v387 = vshrl.u32 %v386, 7
      %389 = vset.pattern.permute.xlu0 %v387
      %390 = vperm.xlu0 %389, %v385
      %v391 = vpop.permute.xlu0 %390
      %v392 = vlaneseq
      %v393 = vshrl.u32 %v392, 7
      %v394 = vadd.s32 %v393, 8
      %395 = vset.pattern.permute.xlu0 %v394
      %396 = vperm.xlu0 %395, %v385
      %v397 = vpop.permute.xlu0 %396
      %v398 = vlaneseq
      %v399 = vshrl.u32 %v398, 7
      %v400 = vadd.s32 %v399, 16
      %401 = vset.pattern.permute.xlu0 %v400
      %402 = vperm.xlu0 %401, %v385
      %v403 = vpop.permute.xlu0 %402
      %v404 = vperm.slane %v384, 1
      %v405 = vlaneseq
      %v406 = vshrl.u32 %v405, 7
      %408 = vset.pattern.permute.xlu0 %v406
      %409 = vperm.xlu0 %408, %v404
      %v410 = vpop.permute.xlu0 %409
      %v411 = vlaneseq
      %v412 = vshrl.u32 %v411, 7
      %v413 = vadd.s32 %v412, 8
      %414 = vset.pattern.permute.xlu0 %v413
      %415 = vperm.xlu0 %414, %v404
      %v416 = vpop.permute.xlu0 %415
      %v417 = vlaneseq
      %v418 = vshrl.u32 %v417, 7
      %v419 = vadd.s32 %v418, 16
      %420 = vset.pattern.permute.xlu0 %v419
      %421 = vperm.xlu0 %420, %v404
      %v422 = vpop.permute.xlu0 %421
      %v423 = vperm.slane %v384, 2
      %v424 = vlaneseq
      %v425 = vshrl.u32 %v424, 7
      %427 = vset.pattern.permute.xlu0 %v425
      %428 = vperm.xlu0 %427, %v423
      %v429 = vpop.permute.xlu0 %428
      %v430 = vlaneseq
      %v431 = vshrl.u32 %v430, 7
      %v432 = vadd.s32 %v431, 8
      %433 = vset.pattern.permute.xlu0 %v432
      %434 = vperm.xlu0 %433, %v423
      %v435 = vpop.permute.xlu0 %434
      %v436 = vlaneseq
      %v437 = vshrl.u32 %v436, 7
      %v438 = vadd.s32 %v437, 16
      %439 = vset.pattern.permute.xlu0 %v438
      %440 = vperm.xlu0 %439, %v423
      %v441 = vpop.permute.xlu0 %440
      %v442 = vperm.slane %v384, 3
      %v443 = vlaneseq
      %v444 = vshrl.u32 %v443, 7
      %446 = vset.pattern.permute.xlu0 %v444
      %447 = vperm.xlu0 %446, %v442
      %v448 = vpop.permute.xlu0 %447
      %v449 = vlaneseq
      %v450 = vshrl.u32 %v449, 7
      %v451 = vadd.s32 %v450, 8
      %452 = vset.pattern.permute.xlu0 %v451
      %453 = vperm.xlu0 %452, %v442
      %v454 = vpop.permute.xlu0 %453
      %v455 = vlaneseq
      %v456 = vshrl.u32 %v455, 7
      %v457 = vadd.s32 %v456, 16
      %458 = vset.pattern.permute.xlu0 %v457
      %459 = vperm.xlu0 %458, %v442
      %v460 = vpop.permute.xlu0 %459
      %v461 = vperm.slane %v384, 4
      %v462 = vlaneseq
      %v463 = vshrl.u32 %v462, 7
      %465 = vset.pattern.permute.xlu0 %v463
      %466 = vperm.xlu0 %465, %v461
      %v467 = vpop.permute.xlu0 %466
      %v468 = vlaneseq
      %v469 = vshrl.u32 %v468, 7
      %v470 = vadd.s32 %v469, 8
      %471 = vset.pattern.permute.xlu0 %v470
      %472 = vperm.xlu0 %471, %v461
      %v473 = vpop.permute.xlu0 %472
      %v474 = vlaneseq
      %v475 = vshrl.u32 %v474, 7
      %v476 = vadd.s32 %v475, 16
      %477 = vset.pattern.permute.xlu0 %v476
      %478 = vperm.xlu0 %477, %v461
      %v479 = vpop.permute.xlu0 %478
      %v480 = vperm.slane %v384, 5
      %v481 = vlaneseq
      %v482 = vshrl.u32 %v481, 7
      %484 = vset.pattern.permute.xlu0 %v482
      %485 = vperm.xlu0 %484, %v480
      %v486 = vpop.permute.xlu0 %485
      %v487 = vlaneseq
      %v488 = vshrl.u32 %v487, 7
      %v489 = vadd.s32 %v488, 8
      %490 = vset.pattern.permute.xlu0 %v489
      %491 = vperm.xlu0 %490, %v480
      %v492 = vpop.permute.xlu0 %491
      %v493 = vlaneseq
      %v494 = vshrl.u32 %v493, 7
      %v495 = vadd.s32 %v494, 16
      %496 = vset.pattern.permute.xlu0 %v495
      %497 = vperm.xlu0 %496, %v480
      %v498 = vpop.permute.xlu0 %497
      %v499 = vperm.slane %v384, 6
      %v500 = vlaneseq
      %v501 = vshrl.u32 %v500, 7
      %503 = vset.pattern.permute.xlu0 %v501
      %504 = vperm.xlu0 %503, %v499
      %v505 = vpop.permute.xlu0 %504
      %v506 = vlaneseq
      %v507 = vshrl.u32 %v506, 7
      %v508 = vadd.s32 %v507, 8
      %509 = vset.pattern.permute.xlu0 %v508
      %510 = vperm.xlu0 %509, %v499
      %v511 = vpop.permute.xlu0 %510
      %v512 = vlaneseq
      %v513 = vshrl.u32 %v512, 7
      %v514 = vadd.s32 %v513, 16
      %515 = vset.pattern.permute.xlu0 %v514
      %516 = vperm.xlu0 %515, %v499
      %v517 = vpop.permute.xlu0 %516
      %v518 = vperm.slane %v384, 7
      %v519 = vlaneseq
      %v520 = vshrl.u32 %v519, 7
      %522 = vset.pattern.permute.xlu0 %v520
      %523 = vperm.xlu0 %522, %v518
      %v524 = vpop.permute.xlu0 %523
      %v525 = vlaneseq
      %v526 = vshrl.u32 %v525, 7
      %v527 = vadd.s32 %v526, 8
      %528 = vset.pattern.permute.xlu0 %v527
      %529 = vperm.xlu0 %528, %v518
      %v530 = vpop.permute.xlu0 %529
      %v531 = vlaneseq
      %v532 = vshrl.u32 %v531, 7
      %v533 = vadd.s32 %v532, 16
      %534 = vset.pattern.permute.xlu0 %v533
      %535 = vperm.xlu0 %534, %v518
      %v536 = vpop.permute.xlu0 %535
      %vm537 = vcmp.eq.s32.totalorder %v391, %v378
      %vm538 = vcmp.eq.s32.totalorder %v397, %v378
      %vm539 = vcmp.eq.s32.totalorder %v403, %v378
      %vm540 = vcmp.eq.s32.totalorder %v410, %v378
      %vm541 = vcmp.eq.s32.totalorder %v416, %v378
      %vm542 = vcmp.eq.s32.totalorder %v422, %v378
      %vm543 = vcmp.eq.s32.totalorder %v429, %v378
      %vm544 = vcmp.eq.s32.totalorder %v435, %v378
      %vm545 = vcmp.eq.s32.totalorder %v441, %v378
      %vm546 = vcmp.eq.s32.totalorder %v448, %v378
      %vm547 = vcmp.eq.s32.totalorder %v454, %v378
      %vm548 = vcmp.eq.s32.totalorder %v460, %v378
      %vm549 = vcmp.eq.s32.totalorder %v467, %v378
      %vm550 = vcmp.eq.s32.totalorder %v473, %v378
      %vm551 = vcmp.eq.s32.totalorder %v479, %v378
      %vm552 = vcmp.eq.s32.totalorder %v486, %v378
      %vm553 = vcmp.eq.s32.totalorder %v492, %v378
      %vm554 = vcmp.eq.s32.totalorder %v498, %v378
      %vm555 = vcmp.eq.s32.totalorder %v505, %v378
      %vm556 = vcmp.eq.s32.totalorder %v511, %v378
      %vm557 = vcmp.eq.s32.totalorder %v517, %v378
      %vm558 = vcmp.eq.s32.totalorder %v524, %v378
      %vm559 = vcmp.eq.s32.totalorder %v530, %v378
      %vm560 = vcmp.eq.s32.totalorder %v536, %v378
      %v561 = vsel %vm537, 1, 0
      %v562 = vsel %vm538, 1, 0
      %v563 = vsel %vm539, 1, 0
      %v564 = vsel %vm540, 1, 0
      %v565 = vsel %vm541, 1, 0
      %v566 = vsel %vm542, 1, 0
      %v567 = vsel %vm543, 1, 0
      %v568 = vsel %vm544, 1, 0
      %v569 = vsel %vm545, 1, 0
      %v570 = vsel %vm546, 1, 0
      %v571 = vsel %vm547, 1, 0
      %v572 = vsel %vm548, 1, 0
      %v573 = vsel %vm549, 1, 0
      %v574 = vsel %vm550, 1, 0
      %v575 = vsel %vm551, 1, 0
      %v576 = vsel %vm552, 1, 0
      %v577 = vsel %vm553, 1, 0
      %v578 = vsel %vm554, 1, 0
      %v579 = vsel %vm555, 1, 0
      %v580 = vsel %vm556, 1, 0
      %v581 = vsel %vm557, 1, 0
      %v582 = vsel %vm558, 1, 0
      %v583 = vsel %vm559, 1, 0
      %v584 = vsel %vm560, 1, 0
      %v585 = vcvt.s32.f32 %v561
      %v586 = vcvt.s32.f32 %v562
      %v587 = vcvt.s32.f32 %v563
      %v588 = vcvt.s32.f32 %v564
      %v589 = vcvt.s32.f32 %v565
      %v590 = vcvt.s32.f32 %v566
      %v591 = vcvt.s32.f32 %v567
      %v592 = vcvt.s32.f32 %v568
      %v593 = vcvt.s32.f32 %v569
      %v594 = vcvt.s32.f32 %v570
      %v595 = vcvt.s32.f32 %v571
      %v596 = vcvt.s32.f32 %v572
      %v597 = vcvt.s32.f32 %v573
      %v598 = vcvt.s32.f32 %v574
      %v599 = vcvt.s32.f32 %v575
      %v600 = vcvt.s32.f32 %v576
      %v601 = vcvt.s32.f32 %v577
      %v602 = vcvt.s32.f32 %v578
      %v603 = vcvt.s32.f32 %v579
      %v604 = vcvt.s32.f32 %v580
      %v605 = vcvt.s32.f32 %v581
      %v606 = vcvt.s32.f32 %v582
      %v607 = vcvt.s32.f32 %v583
      %v608 = vcvt.s32.f32 %v584
      %617 = vst [vmem:[#allocation1] ss:$2 sm:$0xff] %v364
      %s618 = scalar_lea.vmem [#allocation1], 1
      %619 = vst [vmem:[%s618] ss:$2 sm:$0xff] %v365
      %s620 = scalar_lea.vmem [#allocation1], 16
      %621 = vst [vmem:[%s620] ss:$2 sm:$0xff] %v366
      %s622 = scalar_lea.vmem [#allocation1], 17
      %623 = vst [vmem:[%s622] ss:$2 sm:$0xff] %v367
      %s624 = scalar_lea.vmem [#allocation1], 32
      %625 = vst [vmem:[%s624] ss:$2 sm:$0xff] %v368
      %s626 = scalar_lea.vmem [#allocation1], 33
      %627 = vst [vmem:[%s626] ss:$2 sm:$0xff] %v369
      %s628 = scalar_lea.vmem [#allocation1], 48
      %629 = vst [vmem:[%s628] ss:$2 sm:$0xff] %v370
      %s630 = scalar_lea.vmem [#allocation1], 49
      %631 = vst [vmem:[%s630] ss:$2 sm:$0xff] %v371
      %v632 = vld.sshfl [vmem:[#allocation1] sm:$0xff pattern:$0x75316420]
      %v633 = vld.sshfl [vmem:[#allocation1 + $0x10] sm:$0xff pattern:$0x75316420]
      %v634 = vld.sshfl [vmem:[#allocation1 + $0x20] sm:$0xff pattern:$0x75316420]
      %v635 = vld.sshfl [vmem:[#allocation1 + $0x30] sm:$0xff pattern:$0x75316420]
      %vm636 = vcmask 64512
      %v637 = vsel %vm636, %v632, 0
      %v639 = vsel %vm636, %v633, 0
      %v641 = vsel %vm636, %v634, 0
      %v643 = vsel %vm636, %v635, 0
      %v646 = vsel %vm636, %v360, 0
      %v649 = vsel %vm636, %v361, 0
      %651 = vmatpush.xpose.msra.mxu0 0.0
      %652 = vmatpush.xpose.msra.mxu0 0.0
      %653 = vmatpush.xpose.msra.mxu0 0.0
      %654 = vmatpush.xpose.msra.mxu0 0.0
      %655 = vmatpush.xpose.msra.mxu0 0.0
      %656 = vmatpush.xpose.msra.mxu0 0.0
      %657 = vmatpush.xpose.msra.mxu0 0.0
      %658 = vmatpush.xpose.msra.mxu0 0.0
      %659 = vmatpush.xpose.msra.mxu0 0.0
      %660 = vmatpush.xpose.msra.mxu0 0.0
      %661 = vmatpush.xpose.msra.mxu0 0.0
      %662 = vmatpush.xpose.msra.mxu0 0.0
      %663 = vmatpush.xpose.msra.mxu0 0.0
      %664 = vmatpush.xpose.msra.mxu0 0.0
      %665 = vmatpush.xpose.msra.mxu0 %v649
      %666 = vmatpush.xpose.msra.mxu0 %v646
      %667 = vmatmul.f32.gmra.mxu0 %v637
      %v668 = vpop.f32.mrf.mxu0
      %v669 = vadd.f32 0.0, %v668
      %670 = vmatmul.f32.gmra.mxu0 %v639
      %v671 = vpop.f32.mrf.mxu0
      %v672 = vadd.f32 0.0, %v671
      %673 = vmatmul.f32.gmra.mxu0 %v641
      %v674 = vpop.f32.mrf.mxu0
      %v675 = vadd.f32 0.0, %v674
      %676 = vmatmul.f32.gmra.mxu0 %v643
      %v677 = vpop.f32.mrf.mxu0
      %v678 = vadd.f32 0.0, %v677
      %679 = vdwg.mxu0
      %v684 = vrot.slane %v669, 4
      %v685 = vrot.slane %v672, 4
      %v686 = vrot.slane %v675, 4
      %v687 = vrot.slane %v678, 4
      %vm688 = vcmask 72704
      %v690 = vsel %vm688, %v585, 0
      %v693 = vsel %vm688, %v586, 0
      %v696 = vsel %vm688, %v587, 0
      %v698 = vsel %vm688, %v669, 0
      %700 = vmatpush.xpose.msra.mxu0 0.0
      %701 = vmatpush.xpose.msra.mxu0 0.0
      %702 = vmatpush.xpose.msra.mxu0 0.0
      %703 = vmatpush.xpose.msra.mxu0 0.0
      %704 = vmatpush.xpose.msra.mxu0 0.0
      %705 = vmatpush.xpose.msra.mxu0 0.0
      %706 = vmatpush.xpose.msra.mxu0 0.0
      %707 = vmatpush.xpose.msra.mxu0 0.0
      %708 = vmatpush.xpose.msra.mxu0 0.0
      %709 = vmatpush.xpose.msra.mxu0 0.0
      %710 = vmatpush.xpose.msra.mxu0 0.0
      %711 = vmatpush.xpose.msra.mxu0 0.0
      %712 = vmatpush.xpose.msra.mxu0 0.0
      %713 = vmatpush.xpose.msra.mxu0 0.0
      %714 = vmatpush.xpose.msra.mxu0 0.0
      %715 = vmatpush.xpose.msra.mxu0 %v698
      %716 = vmatmul.f32.gmra.mxu0 %v690
      %v717 = vpop.f32.mrf.mxu0
      %v718 = vadd.f32 0.0, %v717
      %719 = vmatmul.f32.gmra.mxu0 %v693
      %v720 = vpop.f32.mrf.mxu0
      %v721 = vadd.f32 0.0, %v720
      %722 = vmatmul.f32.gmra.mxu0 %v696
      %v723 = vpop.f32.mrf.mxu0
      %v724 = vadd.f32 0.0, %v723
      %725 = vdwg.mxu0
      %v727 = vsel %vm688, %v588, 0
      %v730 = vsel %vm688, %v589, 0
      %v733 = vsel %vm688, %v590, 0
      %v735 = vsel %vm688, %v684, 0
      %737 = vmatpush.xpose.msra.mxu0 0.0
      %738 = vmatpush.xpose.msra.mxu0 0.0
      %739 = vmatpush.xpose.msra.mxu0 0.0
      %740 = vmatpush.xpose.msra.mxu0 0.0
      %741 = vmatpush.xpose.msra.mxu0 0.0
      %742 = vmatpush.xpose.msra.mxu0 0.0
      %743 = vmatpush.xpose.msra.mxu0 0.0
      %744 = vmatpush.xpose.msra.mxu0 0.0
      %745 = vmatpush.xpose.msra.mxu0 0.0
      %746 = vmatpush.xpose.msra.mxu0 0.0
      %747 = vmatpush.xpose.msra.mxu0 0.0
      %748 = vmatpush.xpose.msra.mxu0 0.0
      %749 = vmatpush.xpose.msra.mxu0 0.0
      %750 = vmatpush.xpose.msra.mxu0 0.0
      %751 = vmatpush.xpose.msra.mxu0 0.0
      %752 = vmatpush.xpose.msra.mxu0 %v735
      %753 = vmatmul.f32.gmra.mxu0 %v727
      %v754 = vpop.f32.mrf.mxu0
      %v755 = vadd.f32 0.0, %v754
      %756 = vmatmul.f32.gmra.mxu0 %v730
      %v757 = vpop.f32.mrf.mxu0
      %v758 = vadd.f32 0.0, %v757
      %759 = vmatmul.f32.gmra.mxu0 %v733
      %v760 = vpop.f32.mrf.mxu0
      %v761 = vadd.f32 0.0, %v760
      %762 = vdwg.mxu0
      %v764 = vsel %vm688, %v591, 0
      %v767 = vsel %vm688, %v592, 0
      %v770 = vsel %vm688, %v593, 0
      %v772 = vsel %vm688, %v672, 0
      %774 = vmatpush.xpose.msra.mxu0 0.0
      %775 = vmatpush.xpose.msra.mxu0 0.0
      %776 = vmatpush.xpose.msra.mxu0 0.0
      %777 = vmatpush.xpose.msra.mxu0 0.0
      %778 = vmatpush.xpose.msra.mxu0 0.0
      %779 = vmatpush.xpose.msra.mxu0 0.0
      %780 = vmatpush.xpose.msra.mxu0 0.0
      %781 = vmatpush.xpose.msra.mxu0 0.0
      %782 = vmatpush.xpose.msra.mxu0 0.0
      %783 = vmatpush.xpose.msra.mxu0 0.0
      %784 = vmatpush.xpose.msra.mxu0 0.0
      %785 = vmatpush.xpose.msra.mxu0 0.0
      %786 = vmatpush.xpose.msra.mxu0 0.0
      %787 = vmatpush.xpose.msra.mxu0 0.0
      %788 = vmatpush.xpose.msra.mxu0 0.0
      %789 = vmatpush.xpose.msra.mxu0 %v772
      %790 = vmatmul.f32.gmra.mxu0 %v764
      %v791 = vpop.f32.mrf.mxu0
      %v792 = vadd.f32 0.0, %v791
      %793 = vmatmul.f32.gmra.mxu0 %v767
      %v794 = vpop.f32.mrf.mxu0
      %v795 = vadd.f32 0.0, %v794
      %796 = vmatmul.f32.gmra.mxu0 %v770
      %v797 = vpop.f32.mrf.mxu0
      %v798 = vadd.f32 0.0, %v797
      %799 = vdwg.mxu0
      %v801 = vsel %vm688, %v594, 0
      %v804 = vsel %vm688, %v595, 0
      %v807 = vsel %vm688, %v596, 0
      %v809 = vsel %vm688, %v685, 0
      %811 = vmatpush.xpose.msra.mxu0 0.0
      %812 = vmatpush.xpose.msra.mxu0 0.0
      %813 = vmatpush.xpose.msra.mxu0 0.0
      %814 = vmatpush.xpose.msra.mxu0 0.0
      %815 = vmatpush.xpose.msra.mxu0 0.0
      %816 = vmatpush.xpose.msra.mxu0 0.0
      %817 = vmatpush.xpose.msra.mxu0 0.0
      %818 = vmatpush.xpose.msra.mxu0 0.0
      %819 = vmatpush.xpose.msra.mxu0 0.0
      %820 = vmatpush.xpose.msra.mxu0 0.0
      %821 = vmatpush.xpose.msra.mxu0 0.0
      %822 = vmatpush.xpose.msra.mxu0 0.0
      %823 = vmatpush.xpose.msra.mxu0 0.0
      %824 = vmatpush.xpose.msra.mxu0 0.0
      %825 = vmatpush.xpose.msra.mxu0 0.0
      %826 = vmatpush.xpose.msra.mxu0 %v809
      %827 = vmatmul.f32.gmra.mxu0 %v801
      %v828 = vpop.f32.mrf.mxu0
      %v829 = vadd.f32 0.0, %v828
      %830 = vmatmul.f32.gmra.mxu0 %v804
      %v831 = vpop.f32.mrf.mxu0
      %v832 = vadd.f32 0.0, %v831
      %833 = vmatmul.f32.gmra.mxu0 %v807
      %v834 = vpop.f32.mrf.mxu0
      %v835 = vadd.f32 0.0, %v834
      %836 = vdwg.mxu0
      %v838 = vsel %vm688, %v597, 0
      %v841 = vsel %vm688, %v598, 0
      %v844 = vsel %vm688, %v599, 0
      %v846 = vsel %vm688, %v675, 0
      %848 = vmatpush.xpose.msra.mxu0 0.0
      %849 = vmatpush.xpose.msra.mxu0 0.0
      %850 = vmatpush.xpose.msra.mxu0 0.0
      %851 = vmatpush.xpose.msra.mxu0 0.0
      %852 = vmatpush.xpose.msra.mxu0 0.0
      %853 = vmatpush.xpose.msra.mxu0 0.0
      %854 = vmatpush.xpose.msra.mxu0 0.0
      %855 = vmatpush.xpose.msra.mxu0 0.0
      %856 = vmatpush.xpose.msra.mxu0 0.0
      %857 = vmatpush.xpose.msra.mxu0 0.0
      %858 = vmatpush.xpose.msra.mxu0 0.0
      %859 = vmatpush.xpose.msra.mxu0 0.0
      %860 = vmatpush.xpose.msra.mxu0 0.0
      %861 = vmatpush.xpose.msra.mxu0 0.0
      %862 = vmatpush.xpose.msra.mxu0 0.0
      %863 = vmatpush.xpose.msra.mxu0 %v846
      %864 = vmatmul.f32.gmra.mxu0 %v838
      %v865 = vpop.f32.mrf.mxu0
      %v866 = vadd.f32 0.0, %v865
      %867 = vmatmul.f32.gmra.mxu0 %v841
      %v868 = vpop.f32.mrf.mxu0
      %v869 = vadd.f32 0.0, %v868
      %870 = vmatmul.f32.gmra.mxu0 %v844
      %v871 = vpop.f32.mrf.mxu0
      %v872 = vadd.f32 0.0, %v871
      %873 = vdwg.mxu0
      %v875 = vsel %vm688, %v600, 0
      %v878 = vsel %vm688, %v601, 0
      %v881 = vsel %vm688, %v602, 0
      %v883 = vsel %vm688, %v686, 0
      %885 = vmatpush.xpose.msra.mxu0 0.0
      %886 = vmatpush.xpose.msra.mxu0 0.0
      %887 = vmatpush.xpose.msra.mxu0 0.0
      %888 = vmatpush.xpose.msra.mxu0 0.0
      %889 = vmatpush.xpose.msra.mxu0 0.0
      %890 = vmatpush.xpose.msra.mxu0 0.0
      %891 = vmatpush.xpose.msra.mxu0 0.0
      %892 = vmatpush.xpose.msra.mxu0 0.0
      %893 = vmatpush.xpose.msra.mxu0 0.0
      %894 = vmatpush.xpose.msra.mxu0 0.0
      %895 = vmatpush.xpose.msra.mxu0 0.0
      %896 = vmatpush.xpose.msra.mxu0 0.0
      %897 = vmatpush.xpose.msra.mxu0 0.0
      %898 = vmatpush.xpose.msra.mxu0 0.0
      %899 = vmatpush.xpose.msra.mxu0 0.0
      %900 = vmatpush.xpose.msra.mxu0 %v883
      %901 = vmatmul.f32.gmra.mxu0 %v875
      %v902 = vpop.f32.mrf.mxu0
      %v903 = vadd.f32 0.0, %v902
      %904 = vmatmul.f32.gmra.mxu0 %v878
      %v905 = vpop.f32.mrf.mxu0
      %v906 = vadd.f32 0.0, %v905
      %907 = vmatmul.f32.gmra.mxu0 %v881
      %v908 = vpop.f32.mrf.mxu0
      %v909 = vadd.f32 0.0, %v908
      %910 = vdwg.mxu0
      %v912 = vsel %vm688, %v603, 0
      %v915 = vsel %vm688, %v604, 0
      %v918 = vsel %vm688, %v605, 0
      %v920 = vsel %vm688, %v678, 0
      %922 = vmatpush.xpose.msra.mxu0 0.0
      %923 = vmatpush.xpose.msra.mxu0 0.0
      %924 = vmatpush.xpose.msra.mxu0 0.0
      %925 = vmatpush.xpose.msra.mxu0 0.0
      %926 = vmatpush.xpose.msra.mxu0 0.0
      %927 = vmatpush.xpose.msra.mxu0 0.0
      %928 = vmatpush.xpose.msra.mxu0 0.0
      %929 = vmatpush.xpose.msra.mxu0 0.0
      %930 = vmatpush.xpose.msra.mxu0 0.0
      %931 = vmatpush.xpose.msra.mxu0 0.0
      %932 = vmatpush.xpose.msra.mxu0 0.0
      %933 = vmatpush.xpose.msra.mxu0 0.0
      %934 = vmatpush.xpose.msra.mxu0 0.0
      %935 = vmatpush.xpose.msra.mxu0 0.0
      %936 = vmatpush.xpose.msra.mxu0 0.0
      %937 = vmatpush.xpose.msra.mxu0 %v920
      %938 = vmatmul.f32.gmra.mxu0 %v912
      %v939 = vpop.f32.mrf.mxu0
      %v940 = vadd.f32 0.0, %v939
      %941 = vmatmul.f32.gmra.mxu0 %v915
      %v942 = vpop.f32.mrf.mxu0
      %v943 = vadd.f32 0.0, %v942
      %944 = vmatmul.f32.gmra.mxu0 %v918
      %v945 = vpop.f32.mrf.mxu0
      %v946 = vadd.f32 0.0, %v945
      %947 = vdwg.mxu0
      %v949 = vsel %vm688, %v606, 0
      %v952 = vsel %vm688, %v607, 0
      %v955 = vsel %vm688, %v608, 0
      %v957 = vsel %vm688, %v687, 0
      %959 = vmatpush.xpose.msra.mxu0 0.0
      %960 = vmatpush.xpose.msra.mxu0 0.0
      %961 = vmatpush.xpose.msra.mxu0 0.0
      %962 = vmatpush.xpose.msra.mxu0 0.0
      %963 = vmatpush.xpose.msra.mxu0 0.0
      %964 = vmatpush.xpose.msra.mxu0 0.0
      %965 = vmatpush.xpose.msra.mxu0 0.0
      %966 = vmatpush.xpose.msra.mxu0 0.0
      %967 = vmatpush.xpose.msra.mxu0 0.0
      %968 = vmatpush.xpose.msra.mxu0 0.0
      %969 = vmatpush.xpose.msra.mxu0 0.0
      %970 = vmatpush.xpose.msra.mxu0 0.0
      %971 = vmatpush.xpose.msra.mxu0 0.0
      %972 = vmatpush.xpose.msra.mxu0 0.0
      %973 = vmatpush.xpose.msra.mxu0 0.0
      %974 = vmatpush.xpose.msra.mxu0 %v957
      %975 = vmatmul.f32.gmra.mxu0 %v949
      %v976 = vpop.f32.mrf.mxu0
      %v977 = vadd.f32 0.0, %v976
      %978 = vmatmul.f32.gmra.mxu0 %v952
      %v979 = vpop.f32.mrf.mxu0
      %v980 = vadd.f32 0.0, %v979
      %981 = vmatmul.f32.gmra.mxu0 %v955
      %v982 = vpop.f32.mrf.mxu0
      %v983 = vadd.f32 0.0, %v982
      %984 = vdwg.mxu0
      %985 = vxpose.xlu0.b32.start [1/16] %v718, 128
      %986 = vxpose.xlu0.b32.cont [2/16] %v721, 128
      %987 = vxpose.xlu0.b32.cont [3/16] %v724, 128
      %988 = vxpose.xlu0.b32.cont [4/16] 0.0, 128
      %989 = vxpose.xlu0.b32.cont [5/16] 0.0, 128
      %990 = vxpose.xlu0.b32.cont [6/16] 0.0, 128
      %991 = vxpose.xlu0.b32.cont [7/16] 0.0, 128
      %992 = vxpose.xlu0.b32.cont [8/16] 0.0, 128
      %993 = vxpose.xlu0.b32.cont [9/16] 0.0, 128
      %994 = vxpose.xlu0.b32.cont [10/16] 0.0, 128
      %995 = vxpose.xlu0.b32.cont [11/16] 0.0, 128
      %996 = vxpose.xlu0.b32.cont [12/16] 0.0, 128
      %997 = vxpose.xlu0.b32.cont [13/16] 0.0, 128
      %998 = vxpose.xlu0.b32.cont [14/16] 0.0, 128
      %999 = vxpose.xlu0.b32.cont [15/16] 0.0, 128
      %1000 = vxpose.xlu0.b32.end [16/16] 0.0, 128
      %v1001 = vpop.trf.xlu0
      %v1002 = vpop.trf.xlu0
      %v1003 = vpop.trf.xlu0
      %v1004 = vpop.trf.xlu0
      %v1005 = vpop.trf.xlu0
      %v1006 = vpop.trf.xlu0
      %v1007 = vpop.trf.xlu0
      %v1008 = vpop.trf.xlu0
      %v1009 = vpop.trf.xlu0
      %v1010 = vpop.trf.xlu0
      %v1011 = vpop.trf.xlu0
      %v1012 = vpop.trf.xlu0
      %v1013 = vpop.trf.xlu0
      %v1014 = vpop.trf.xlu0
      %v1015 = vpop.trf.xlu0
      %v1016 = vpop.trf.xlu0
      %1017 = vxpose.xlu0.b32.start [1/16] %v755, 128
      %1018 = vxpose.xlu0.b32.cont [2/16] %v758, 128
      %1019 = vxpose.xlu0.b32.cont [3/16] %v761, 128
      %1020 = vxpose.xlu0.b32.cont [4/16] 0.0, 128
      %1021 = vxpose.xlu0.b32.cont [5/16] 0.0, 128
      %1022 = vxpose.xlu0.b32.cont [6/16] 0.0, 128
      %1023 = vxpose.xlu0.b32.cont [7/16] 0.0, 128
      %1024 = vxpose.xlu0.b32.cont [8/16] 0.0, 128
      %1025 = vxpose.xlu0.b32.cont [9/16] 0.0, 128
      %1026 = vxpose.xlu0.b32.cont [10/16] 0.0, 128
      %1027 = vxpose.xlu0.b32.cont [11/16] 0.0, 128
      %1028 = vxpose.xlu0.b32.cont [12/16] 0.0, 128
      %1029 = vxpose.xlu0.b32.cont [13/16] 0.0, 128
      %1030 = vxpose.xlu0.b32.cont [14/16] 0.0, 128
      %1031 = vxpose.xlu0.b32.cont [15/16] 0.0, 128
      %1032 = vxpose.xlu0.b32.end [16/16] 0.0, 128
      %v1033 = vpop.trf.xlu0
      %v1034 = vpop.trf.xlu0
      %v1035 = vpop.trf.xlu0
      %v1036 = vpop.trf.xlu0
      %v1037 = vpop.trf.xlu0
      %v1038 = vpop.trf.xlu0
      %v1039 = vpop.trf.xlu0
      %v1040 = vpop.trf.xlu0
      %v1041 = vpop.trf.xlu0
      %v1042 = vpop.trf.xlu0
      %v1043 = vpop.trf.xlu0
      %v1044 = vpop.trf.xlu0
      %v1045 = vpop.trf.xlu0
      %v1046 = vpop.trf.xlu0
      %v1047 = vpop.trf.xlu0
      %v1048 = vpop.trf.xlu0
      %1049 = vxpose.xlu0.b32.start [1/16] %v792, 128
      %1050 = vxpose.xlu0.b32.cont [2/16] %v795, 128
      %1051 = vxpose.xlu0.b32.cont [3/16] %v798, 128
      %1052 = vxpose.xlu0.b32.cont [4/16] 0.0, 128
      %1053 = vxpose.xlu0.b32.cont [5/16] 0.0, 128
      %1054 = vxpose.xlu0.b32.cont [6/16] 0.0, 128
      %1055 = vxpose.xlu0.b32.cont [7/16] 0.0, 128
      %1056 = vxpose.xlu0.b32.cont [8/16] 0.0, 128
      %1057 = vxpose.xlu0.b32.cont [9/16] 0.0, 128
      %1058 = vxpose.xlu0.b32.cont [10/16] 0.0, 128
      %1059 = vxpose.xlu0.b32.cont [11/16] 0.0, 128
      %1060 = vxpose.xlu0.b32.cont [12/16] 0.0, 128
      %1061 = vxpose.xlu0.b32.cont [13/16] 0.0, 128
      %1062 = vxpose.xlu0.b32.cont [14/16] 0.0, 128
      %1063 = vxpose.xlu0.b32.cont [15/16] 0.0, 128
      %1064 = vxpose.xlu0.b32.end [16/16] 0.0, 128
      %v1065 = vpop.trf.xlu0
      %v1066 = vpop.trf.xlu0
      %v1067 = vpop.trf.xlu0
      %v1068 = vpop.trf.xlu0
      %v1069 = vpop.trf.xlu0
      %v1070 = vpop.trf.xlu0
      %v1071 = vpop.trf.xlu0
      %v1072 = vpop.trf.xlu0
      %v1073 = vpop.trf.xlu0
      %v1074 = vpop.trf.xlu0
      %v1075 = vpop.trf.xlu0
      %v1076 = vpop.trf.xlu0
      %v1077 = vpop.trf.xlu0
      %v1078 = vpop.trf.xlu0
      %v1079 = vpop.trf.xlu0
      %v1080 = vpop.trf.xlu0
      %1081 = vxpose.xlu0.b32.start [1/16] %v829, 128
      %1082 = vxpose.xlu0.b32.cont [2/16] %v832, 128
      %1083 = vxpose.xlu0.b32.cont [3/16] %v835, 128
      %1084 = vxpose.xlu0.b32.cont [4/16] 0.0, 128
      %1085 = vxpose.xlu0.b32.cont [5/16] 0.0, 128
      %1086 = vxpose.xlu0.b32.cont [6/16] 0.0, 128
      %1087 = vxpose.xlu0.b32.cont [7/16] 0.0, 128
      %1088 = vxpose.xlu0.b32.cont [8/16] 0.0, 128
      %1089 = vxpose.xlu0.b32.cont [9/16] 0.0, 128
      %1090 = vxpose.xlu0.b32.cont [10/16] 0.0, 128
      %1091 = vxpose.xlu0.b32.cont [11/16] 0.0, 128
      %1092 = vxpose.xlu0.b32.cont [12/16] 0.0, 128
      %1093 = vxpose.xlu0.b32.cont [13/16] 0.0, 128
      %1094 = vxpose.xlu0.b32.cont [14/16] 0.0, 128
      %1095 = vxpose.xlu0.b32.cont [15/16] 0.0, 128
      %1096 = vxpose.xlu0.b32.end [16/16] 0.0, 128
      %v1097 = vpop.trf.xlu0
      %v1098 = vpop.trf.xlu0
      %v1099 = vpop.trf.xlu0
      %v1100 = vpop.trf.xlu0
      %v1101 = vpop.trf.xlu0
      %v1102 = vpop.trf.xlu0
      %v1103 = vpop.trf.xlu0
      %v1104 = vpop.trf.xlu0
      %v1105 = vpop.trf.xlu0
      %v1106 = vpop.trf.xlu0
      %v1107 = vpop.trf.xlu0
      %v1108 = vpop.trf.xlu0
      %v1109 = vpop.trf.xlu0
      %v1110 = vpop.trf.xlu0
      %v1111 = vpop.trf.xlu0
      %v1112 = vpop.trf.xlu0
      %1113 = vxpose.xlu0.b32.start [1/16] %v866, 128
      %1114 = vxpose.xlu0.b32.cont [2/16] %v869, 128
      %1115 = vxpose.xlu0.b32.cont [3/16] %v872, 128
      %1116 = vxpose.xlu0.b32.cont [4/16] 0.0, 128
      %1117 = vxpose.xlu0.b32.cont [5/16] 0.0, 128
      %1118 = vxpose.xlu0.b32.cont [6/16] 0.0, 128
      %1119 = vxpose.xlu0.b32.cont [7/16] 0.0, 128
      %1120 = vxpose.xlu0.b32.cont [8/16] 0.0, 128
      %1121 = vxpose.xlu0.b32.cont [9/16] 0.0, 128
      %1122 = vxpose.xlu0.b32.cont [10/16] 0.0, 128
      %1123 = vxpose.xlu0.b32.cont [11/16] 0.0, 128
      %1124 = vxpose.xlu0.b32.cont [12/16] 0.0, 128
      %1125 = vxpose.xlu0.b32.cont [13/16] 0.0, 128
      %1126 = vxpose.xlu0.b32.cont [14/16] 0.0, 128
      %1127 = vxpose.xlu0.b32.cont [15/16] 0.0, 128
      %1128 = vxpose.xlu0.b32.end [16/16] 0.0, 128
      %v1129 = vpop.trf.xlu0
      %v1130 = vpop.trf.xlu0
      %v1131 = vpop.trf.xlu0
      %v1132 = vpop.trf.xlu0
      %v1133 = vpop.trf.xlu0
      %v1134 = vpop.trf.xlu0
      %v1135 = vpop.trf.xlu0
      %v1136 = vpop.trf.xlu0
      %v1137 = vpop.trf.xlu0
      %v1138 = vpop.trf.xlu0
      %v1139 = vpop.trf.xlu0
      %v1140 = vpop.trf.xlu0
      %v1141 = vpop.trf.xlu0
      %v1142 = vpop.trf.xlu0
      %v1143 = vpop.trf.xlu0
      %v1144 = vpop.trf.xlu0
      %1145 = vxpose.xlu0.b32.start [1/16] %v903, 128
      %1146 = vxpose.xlu0.b32.cont [2/16] %v906, 128
      %1147 = vxpose.xlu0.b32.cont [3/16] %v909, 128
      %1148 = vxpose.xlu0.b32.cont [4/16] 0.0, 128
      %1149 = vxpose.xlu0.b32.cont [5/16] 0.0, 128
      %1150 = vxpose.xlu0.b32.cont [6/16] 0.0, 128
      %1151 = vxpose.xlu0.b32.cont [7/16] 0.0, 128
      %1152 = vxpose.xlu0.b32.cont [8/16] 0.0, 128
      %1153 = vxpose.xlu0.b32.cont [9/16] 0.0, 128
      %1154 = vxpose.xlu0.b32.cont [10/16] 0.0, 128
      %1155 = vxpose.xlu0.b32.cont [11/16] 0.0, 128
      %1156 = vxpose.xlu0.b32.cont [12/16] 0.0, 128
      %1157 = vxpose.xlu0.b32.cont [13/16] 0.0, 128
      %1158 = vxpose.xlu0.b32.cont [14/16] 0.0, 128
      %1159 = vxpose.xlu0.b32.cont [15/16] 0.0, 128
      %1160 = vxpose.xlu0.b32.end [16/16] 0.0, 128
      %v1161 = vpop.trf.xlu0
      %v1162 = vpop.trf.xlu0
      %v1163 = vpop.trf.xlu0
      %v1164 = vpop.trf.xlu0
      %v1165 = vpop.trf.xlu0
      %v1166 = vpop.trf.xlu0
      %v1167 = vpop.trf.xlu0
      %v1168 = vpop.trf.xlu0
      %v1169 = vpop.trf.xlu0
      %v1170 = vpop.trf.xlu0
      %v1171 = vpop.trf.xlu0
      %v1172 = vpop.trf.xlu0
      %v1173 = vpop.trf.xlu0
      %v1174 = vpop.trf.xlu0
      %v1175 = vpop.trf.xlu0
      %v1176 = vpop.trf.xlu0
      %1177 = vxpose.xlu0.b32.start [1/16] %v940, 128
      %1178 = vxpose.xlu0.b32.cont [2/16] %v943, 128
      %1179 = vxpose.xlu0.b32.cont [3/16] %v946, 128
      %1180 = vxpose.xlu0.b32.cont [4/16] 0.0, 128
      %1181 = vxpose.xlu0.b32.cont [5/16] 0.0, 128
      %1182 = vxpose.xlu0.b32.cont [6/16] 0.0, 128
      %1183 = vxpose.xlu0.b32.cont [7/16] 0.0, 128
      %1184 = vxpose.xlu0.b32.cont [8/16] 0.0, 128
      %1185 = vxpose.xlu0.b32.cont [9/16] 0.0, 128
      %1186 = vxpose.xlu0.b32.cont [10/16] 0.0, 128
      %1187 = vxpose.xlu0.b32.cont [11/16] 0.0, 128
      %1188 = vxpose.xlu0.b32.cont [12/16] 0.0, 128
      %1189 = vxpose.xlu0.b32.cont [13/16] 0.0, 128
      %1190 = vxpose.xlu0.b32.cont [14/16] 0.0, 128
      %1191 = vxpose.xlu0.b32.cont [15/16] 0.0, 128
      %1192 = vxpose.xlu0.b32.end [16/16] 0.0, 128
      %v1193 = vpop.trf.xlu0
      %v1194 = vpop.trf.xlu0
      %v1195 = vpop.trf.xlu0
      %v1196 = vpop.trf.xlu0
      %v1197 = vpop.trf.xlu0
      %v1198 = vpop.trf.xlu0
      %v1199 = vpop.trf.xlu0
      %v1200 = vpop.trf.xlu0
      %v1201 = vpop.trf.xlu0
      %v1202 = vpop.trf.xlu0
      %v1203 = vpop.trf.xlu0
      %v1204 = vpop.trf.xlu0
      %v1205 = vpop.trf.xlu0
      %v1206 = vpop.trf.xlu0
      %v1207 = vpop.trf.xlu0
      %v1208 = vpop.trf.xlu0
      %1209 = vxpose.xlu0.b32.start [1/16] %v977, 128
      %1210 = vxpose.xlu0.b32.cont [2/16] %v980, 128
      %1211 = vxpose.xlu0.b32.cont [3/16] %v983, 128
      %1212 = vxpose.xlu0.b32.cont [4/16] 0.0, 128
      %1213 = vxpose.xlu0.b32.cont [5/16] 0.0, 128
      %1214 = vxpose.xlu0.b32.cont [6/16] 0.0, 128
      %1215 = vxpose.xlu0.b32.cont [7/16] 0.0, 128
      %1216 = vxpose.xlu0.b32.cont [8/16] 0.0, 128
      %1217 = vxpose.xlu0.b32.cont [9/16] 0.0, 128
      %1218 = vxpose.xlu0.b32.cont [10/16] 0.0, 128
      %1219 = vxpose.xlu0.b32.cont [11/16] 0.0, 128
      %1220 = vxpose.xlu0.b32.cont [12/16] 0.0, 128
      %1221 = vxpose.xlu0.b32.cont [13/16] 0.0, 128
      %1222 = vxpose.xlu0.b32.cont [14/16] 0.0, 128
      %1223 = vxpose.xlu0.b32.cont [15/16] 0.0, 128
      %1224 = vxpose.xlu0.b32.end [16/16] 0.0, 128
      %v1225 = vpop.trf.xlu0
      %v1226 = vpop.trf.xlu0
      %v1227 = vpop.trf.xlu0
      %v1228 = vpop.trf.xlu0
      %v1229 = vpop.trf.xlu0
      %v1230 = vpop.trf.xlu0
      %v1231 = vpop.trf.xlu0
      %v1232 = vpop.trf.xlu0
      %v1233 = vpop.trf.xlu0
      %v1234 = vpop.trf.xlu0
      %v1235 = vpop.trf.xlu0
      %v1236 = vpop.trf.xlu0
      %v1237 = vpop.trf.xlu0
      %v1238 = vpop.trf.xlu0
      %v1239 = vpop.trf.xlu0
      %v1240 = vpop.trf.xlu0
      %v1241 = vrot.slane %v1065, 4
      %vm1242 = vcmask 1047556
      %v1243 = vsel %vm1242, %v1241, %v1001
      %v1245 = vunpack.c.l.s4 1983009808
      %v1246 = vunpack.c.0.s8 %v1245
      %v1247 = vperm.slane %v1243, %v1246
      %v1248 = vrot.slane %v1097, 4
      %v1249 = vsel %vm1242, %v1248, %v1033
      %v1251 = vunpack.c.l.s4 1983009808
      %v1252 = vunpack.c.0.s8 %v1251
      %v1253 = vperm.slane %v1249, %v1252
      %v1254 = vrot.slane %v1193, 4
      %v1255 = vsel %vm1242, %v1254, %v1129
      %v1257 = vunpack.c.l.s4 1983009808
      %v1258 = vunpack.c.0.s8 %v1257
      %v1259 = vperm.slane %v1255, %v1258
      %v1260 = vrot.slane %v1225, 4
      %v1261 = vsel %vm1242, %v1260, %v1161
      %v1263 = vunpack.c.l.s4 1983009808
      %v1264 = vunpack.c.0.s8 %v1263
      %v1265 = vperm.slane %v1261, %v1264
      %v1266 = vrot.slane %v1253, 4
      %v1267 = vsel %vm1242, %v1266, %v1247
      %v1268 = vrot.slane %v1247, 4
      %v1269 = vsel %vm1242, %v1253, %v1268
      %v1271 = vunpack.c.l.s4 1934713408
      %v1272 = vunpack.c.0.s8 %v1271
      %v1273 = vperm.slane %v1267, %v1272
      %v1275 = vunpack.c.l.s4 1934713408
      %v1276 = vunpack.c.0.s8 %v1275
      %v1277 = vperm.slane %v1269, %v1276
      %v1278 = vrot.slane %v1265, 4
      %v1279 = vsel %vm1242, %v1278, %v1259
      %v1280 = vrot.slane %v1259, 4
      %v1281 = vsel %vm1242, %v1265, %v1280
      %v1283 = vunpack.c.l.s4 1934713408
      %v1284 = vunpack.c.0.s8 %v1283
      %v1285 = vperm.slane %v1279, %v1284
      %v1287 = vunpack.c.l.s4 1934713408
      %v1288 = vunpack.c.0.s8 %v1287
      %v1289 = vperm.slane %v1281, %v1288
      %v1290 = vrot.slane %v1285, 4
      %v1291 = vsel %vm1242, %v1290, %v1273
      %v1292 = vrot.slane %v1273, 4
      %v1293 = vsel %vm1242, %v1285, %v1292
      %v1294 = vrot.slane %v1289, 4
      %v1295 = vsel %vm1242, %v1294, %v1277
      %v1296 = vrot.slane %v1277, 4
      %v1297 = vsel %vm1242, %v1289, %v1296
      %v1298 = vrot.slane %v366, 4
      %v1299 = vsel %vm1242, %v1298, %v364
      %v1301 = vunpack.c.l.s4 1983009808
      %v1302 = vunpack.c.0.s8 %v1301
      %v1303 = vperm.slane %v1299, %v1302
      %v1304 = vrot.slane %v367, 4
      %v1305 = vsel %vm1242, %v1304, %v365
      %v1307 = vunpack.c.l.s4 1983009808
      %v1308 = vunpack.c.0.s8 %v1307
      %v1309 = vperm.slane %v1305, %v1308
      %v1310 = vrot.slane %v370, 4
      %v1311 = vsel %vm1242, %v1310, %v368
      %v1313 = vunpack.c.l.s4 1983009808
      %v1314 = vunpack.c.0.s8 %v1313
      %v1315 = vperm.slane %v1311, %v1314
      %v1316 = vrot.slane %v371, 4
      %v1317 = vsel %vm1242, %v1316, %v369
      %v1319 = vunpack.c.l.s4 1983009808
      %v1320 = vunpack.c.0.s8 %v1319
      %v1321 = vperm.slane %v1317, %v1320
      %v1322 = vrot.slane %v1309, 4
      %v1323 = vsel %vm1242, %v1322, %v1303
      %v1324 = vrot.slane %v1303, 4
      %v1325 = vsel %vm1242, %v1309, %v1324
      %v1327 = vunpack.c.l.s4 1934713408
      %v1328 = vunpack.c.0.s8 %v1327
      %v1329 = vperm.slane %v1323, %v1328
      %v1331 = vunpack.c.l.s4 1934713408
      %v1332 = vunpack.c.0.s8 %v1331
      %v1333 = vperm.slane %v1325, %v1332
      %v1334 = vrot.slane %v1321, 4
      %v1335 = vsel %vm1242, %v1334, %v1315
      %v1336 = vrot.slane %v1315, 4
      %v1337 = vsel %vm1242, %v1321, %v1336
      %v1339 = vunpack.c.l.s4 1934713408
      %v1340 = vunpack.c.0.s8 %v1339
      %v1341 = vperm.slane %v1335, %v1340
      %v1343 = vunpack.c.l.s4 1934713408
      %v1344 = vunpack.c.0.s8 %v1343
      %v1345 = vperm.slane %v1337, %v1344
      %v1346 = vrot.slane %v1341, 4
      %v1347 = vsel %vm1242, %v1346, %v1329
      %v1348 = vrot.slane %v1329, 4
      %v1349 = vsel %vm1242, %v1341, %v1348
      %v1350 = vrot.slane %v1345, 4
      %v1351 = vsel %vm1242, %v1350, %v1333
      %v1352 = vrot.slane %v1333, 4
      %v1353 = vsel %vm1242, %v1345, %v1352
      %1354 = vxpose.xlu0.b32.start [1/16] %v312, 128
      %1355 = vxpose.xlu0.b32.cont [2/16] 0.0, 128
      %1356 = vxpose.xlu0.b32.cont [3/16] 0.0, 128
      %1357 = vxpose.xlu0.b32.cont [4/16] 0.0, 128
      %1358 = vxpose.xlu0.b32.cont [5/16] 0.0, 128
      %1359 = vxpose.xlu0.b32.cont [6/16] 0.0, 128
      %1360 = vxpose.xlu0.b32.cont [7/16] 0.0, 128
      %1361 = vxpose.xlu0.b32.cont [8/16] 0.0, 128
      %1362 = vxpose.xlu0.b32.cont [9/16] 0.0, 128
      %1363 = vxpose.xlu0.b32.cont [10/16] 0.0, 128
      %1364 = vxpose.xlu0.b32.cont [11/16] 0.0, 128
      %1365 = vxpose.xlu0.b32.cont [12/16] 0.0, 128
      %1366 = vxpose.xlu0.b32.cont [13/16] 0.0, 128
      %1367 = vxpose.xlu0.b32.cont [14/16] 0.0, 128
      %1368 = vxpose.xlu0.b32.cont [15/16] 0.0, 128
      %1369 = vxpose.xlu0.b32.end [16/16] 0.0, 128
      %v1370 = vpop.trf.xlu0
      %v1371 = vpop.trf.xlu0
      %v1372 = vpop.trf.xlu0
      %v1373 = vpop.trf.xlu0
      %v1374 = vpop.trf.xlu0
      %v1375 = vpop.trf.xlu0
      %v1376 = vpop.trf.xlu0
      %v1377 = vpop.trf.xlu0
      %v1378 = vpop.trf.xlu0
      %v1379 = vpop.trf.xlu0
      %v1380 = vpop.trf.xlu0
      %v1381 = vpop.trf.xlu0
      %v1382 = vpop.trf.xlu0
      %v1383 = vpop.trf.xlu0
      %v1384 = vpop.trf.xlu0
      %v1385 = vpop.trf.xlu0
      %1386 = vxpose.xlu0.b32.start [1/16] %v313, 128
      %1387 = vxpose.xlu0.b32.cont [2/16] 0.0, 128
      %1388 = vxpose.xlu0.b32.cont [3/16] 0.0, 128
      %1389 = vxpose.xlu0.b32.cont [4/16] 0.0, 128
      %1390 = vxpose.xlu0.b32.cont [5/16] 0.0, 128
      %1391 = vxpose.xlu0.b32.cont [6/16] 0.0, 128
      %1392 = vxpose.xlu0.b32.cont [7/16] 0.0, 128
      %1393 = vxpose.xlu0.b32.cont [8/16] 0.0, 128
      %1394 = vxpose.xlu0.b32.cont [9/16] 0.0, 128
      %1395 = vxpose.xlu0.b32.cont [10/16] 0.0, 128
      %1396 = vxpose.xlu0.b32.cont [11/16] 0.0, 128
      %1397 = vxpose.xlu0.b32.cont [12/16] 0.0, 128
      %1398 = vxpose.xlu0.b32.cont [13/16] 0.0, 128
      %1399 = vxpose.xlu0.b32.cont [14/16] 0.0, 128
      %1400 = vxpose.xlu0.b32.cont [15/16] 0.0, 128
      %1401 = vxpose.xlu0.b32.end [16/16] 0.0, 128
      %v1402 = vpop.trf.xlu0
      %v1403 = vpop.trf.xlu0
      %v1404 = vpop.trf.xlu0
      %v1405 = vpop.trf.xlu0
      %v1406 = vpop.trf.xlu0
      %v1407 = vpop.trf.xlu0
      %v1408 = vpop.trf.xlu0
      %v1409 = vpop.trf.xlu0
      %v1410 = vpop.trf.xlu0
      %v1411 = vpop.trf.xlu0
      %v1412 = vpop.trf.xlu0
      %v1413 = vpop.trf.xlu0
      %v1414 = vpop.trf.xlu0
      %v1415 = vpop.trf.xlu0
      %v1416 = vpop.trf.xlu0
      %v1417 = vpop.trf.xlu0
      %1418 = vxpose.xlu0.b32.start [1/16] %v314, 128
      %1419 = vxpose.xlu0.b32.cont [2/16] 0.0, 128
      %1420 = vxpose.xlu0.b32.cont [3/16] 0.0, 128
      %1421 = vxpose.xlu0.b32.cont [4/16] 0.0, 128
      %1422 = vxpose.xlu0.b32.cont [5/16] 0.0, 128
      %1423 = vxpose.xlu0.b32.cont [6/16] 0.0, 128
      %1424 = vxpose.xlu0.b32.cont [7/16] 0.0, 128
      %1425 = vxpose.xlu0.b32.cont [8/16] 0.0, 128
      %1426 = vxpose.xlu0.b32.cont [9/16] 0.0, 128
      %1427 = vxpose.xlu0.b32.cont [10/16] 0.0, 128
      %1428 = vxpose.xlu0.b32.cont [11/16] 0.0, 128
      %1429 = vxpose.xlu0.b32.cont [12/16] 0.0, 128
      %1430 = vxpose.xlu0.b32.cont [13/16] 0.0, 128
      %1431 = vxpose.xlu0.b32.cont [14/16] 0.0, 128
      %1432 = vxpose.xlu0.b32.cont [15/16] 0.0, 128
      %1433 = vxpose.xlu0.b32.end [16/16] 0.0, 128
      %v1434 = vpop.trf.xlu0
      %v1435 = vpop.trf.xlu0
      %v1436 = vpop.trf.xlu0
      %v1437 = vpop.trf.xlu0
      %v1438 = vpop.trf.xlu0
      %v1439 = vpop.trf.xlu0
      %v1440 = vpop.trf.xlu0
      %v1441 = vpop.trf.xlu0
      %v1442 = vpop.trf.xlu0
      %v1443 = vpop.trf.xlu0
      %v1444 = vpop.trf.xlu0
      %v1445 = vpop.trf.xlu0
      %v1446 = vpop.trf.xlu0
      %v1447 = vpop.trf.xlu0
      %v1448 = vpop.trf.xlu0
      %v1449 = vpop.trf.xlu0
      %1450 = vxpose.xlu0.b32.start [1/16] %v315, 128
      %1451 = vxpose.xlu0.b32.cont [2/16] 0.0, 128
      %1452 = vxpose.xlu0.b32.cont [3/16] 0.0, 128
      %1453 = vxpose.xlu0.b32.cont [4/16] 0.0, 128
      %1454 = vxpose.xlu0.b32.cont [5/16] 0.0, 128
      %1455 = vxpose.xlu0.b32.cont [6/16] 0.0, 128
      %1456 = vxpose.xlu0.b32.cont [7/16] 0.0, 128
      %1457 = vxpose.xlu0.b32.cont [8/16] 0.0, 128
      %1458 = vxpose.xlu0.b32.cont [9/16] 0.0, 128
      %1459 = vxpose.xlu0.b32.cont [10/16] 0.0, 128
      %1460 = vxpose.xlu0.b32.cont [11/16] 0.0, 128
      %1461 = vxpose.xlu0.b32.cont [12/16] 0.0, 128
      %1462 = vxpose.xlu0.b32.cont [13/16] 0.0, 128
      %1463 = vxpose.xlu0.b32.cont [14/16] 0.0, 128
      %1464 = vxpose.xlu0.b32.cont [15/16] 0.0, 128
      %1465 = vxpose.xlu0.b32.end [16/16] 0.0, 128
      %v1466 = vpop.trf.xlu0
      %v1467 = vpop.trf.xlu0
      %v1468 = vpop.trf.xlu0
      %v1469 = vpop.trf.xlu0
      %v1470 = vpop.trf.xlu0
      %v1471 = vpop.trf.xlu0
      %v1472 = vpop.trf.xlu0
      %v1473 = vpop.trf.xlu0
      %v1474 = vpop.trf.xlu0
      %v1475 = vpop.trf.xlu0
      %v1476 = vpop.trf.xlu0
      %v1477 = vpop.trf.xlu0
      %v1478 = vpop.trf.xlu0
      %v1479 = vpop.trf.xlu0
      %v1480 = vpop.trf.xlu0
      %v1481 = vpop.trf.xlu0
      %1482 = vxpose.xlu0.b32.start [1/16] %v316, 128
      %1483 = vxpose.xlu0.b32.cont [2/16] 0.0, 128
      %1484 = vxpose.xlu0.b32.cont [3/16] 0.0, 128
      %1485 = vxpose.xlu0.b32.cont [4/16] 0.0, 128
      %1486 = vxpose.xlu0.b32.cont [5/16] 0.0, 128
      %1487 = vxpose.xlu0.b32.cont [6/16] 0.0, 128
      %1488 = vxpose.xlu0.b32.cont [7/16] 0.0, 128
      %1489 = vxpose.xlu0.b32.cont [8/16] 0.0, 128
      %1490 = vxpose.xlu0.b32.cont [9/16] 0.0, 128
      %1491 = vxpose.xlu0.b32.cont [10/16] 0.0, 128
      %1492 = vxpose.xlu0.b32.cont [11/16] 0.0, 128
      %1493 = vxpose.xlu0.b32.cont [12/16] 0.0, 128
      %1494 = vxpose.xlu0.b32.cont [13/16] 0.0, 128
      %1495 = vxpose.xlu0.b32.cont [14/16] 0.0, 128
      %1496 = vxpose.xlu0.b32.cont [15/16] 0.0, 128
      %1497 = vxpose.xlu0.b32.end [16/16] 0.0, 128
      %v1498 = vpop.trf.xlu0
      %v1499 = vpop.trf.xlu0
      %v1500 = vpop.trf.xlu0
      %v1501 = vpop.trf.xlu0
      %v1502 = vpop.trf.xlu0
      %v1503 = vpop.trf.xlu0
      %v1504 = vpop.trf.xlu0
      %v1505 = vpop.trf.xlu0
      %v1506 = vpop.trf.xlu0
      %v1507 = vpop.trf.xlu0
      %v1508 = vpop.trf.xlu0
      %v1509 = vpop.trf.xlu0
      %v1510 = vpop.trf.xlu0
      %v1511 = vpop.trf.xlu0
      %v1512 = vpop.trf.xlu0
      %v1513 = vpop.trf.xlu0
      %1514 = vxpose.xlu0.b32.start [1/16] %v317, 128
      %1515 = vxpose.xlu0.b32.cont [2/16] 0.0, 128
      %1516 = vxpose.xlu0.b32.cont [3/16] 0.0, 128
      %1517 = vxpose.xlu0.b32.cont [4/16] 0.0, 128
      %1518 = vxpose.xlu0.b32.cont [5/16] 0.0, 128
      %1519 = vxpose.xlu0.b32.cont [6/16] 0.0, 128
      %1520 = vxpose.xlu0.b32.cont [7/16] 0.0, 128
      %1521 = vxpose.xlu0.b32.cont [8/16] 0.0, 128
      %1522 = vxpose.xlu0.b32.cont [9/16] 0.0, 128
      %1523 = vxpose.xlu0.b32.cont [10/16] 0.0, 128
      %1524 = vxpose.xlu0.b32.cont [11/16] 0.0, 128
      %1525 = vxpose.xlu0.b32.cont [12/16] 0.0, 128
      %1526 = vxpose.xlu0.b32.cont [13/16] 0.0, 128
      %1527 = vxpose.xlu0.b32.cont [14/16] 0.0, 128
      %1528 = vxpose.xlu0.b32.cont [15/16] 0.0, 128
      %1529 = vxpose.xlu0.b32.end [16/16] 0.0, 128
      %v1530 = vpop.trf.xlu0
      %v1531 = vpop.trf.xlu0
      %v1532 = vpop.trf.xlu0
      %v1533 = vpop.trf.xlu0
      %v1534 = vpop.trf.xlu0
      %v1535 = vpop.trf.xlu0
      %v1536 = vpop.trf.xlu0
      %v1537 = vpop.trf.xlu0
      %v1538 = vpop.trf.xlu0
      %v1539 = vpop.trf.xlu0
      %v1540 = vpop.trf.xlu0
      %v1541 = vpop.trf.xlu0
      %v1542 = vpop.trf.xlu0
      %v1543 = vpop.trf.xlu0
      %v1544 = vpop.trf.xlu0
      %v1545 = vpop.trf.xlu0
      %1546 = vxpose.xlu0.b32.start [1/16] %v318, 128
      %1547 = vxpose.xlu0.b32.cont [2/16] 0.0, 128
      %1548 = vxpose.xlu0.b32.cont [3/16] 0.0, 128
      %1549 = vxpose.xlu0.b32.cont [4/16] 0.0, 128
      %1550 = vxpose.xlu0.b32.cont [5/16] 0.0, 128
      %1551 = vxpose.xlu0.b32.cont [6/16] 0.0, 128
      %1552 = vxpose.xlu0.b32.cont [7/16] 0.0, 128
      %1553 = vxpose.xlu0.b32.cont [8/16] 0.0, 128
      %1554 = vxpose.xlu0.b32.cont [9/16] 0.0, 128
      %1555 = vxpose.xlu0.b32.cont [10/16] 0.0, 128
      %1556 = vxpose.xlu0.b32.cont [11/16] 0.0, 128
      %1557 = vxpose.xlu0.b32.cont [12/16] 0.0, 128
      %1558 = vxpose.xlu0.b32.cont [13/16] 0.0, 128
      %1559 = vxpose.xlu0.b32.cont [14/16] 0.0, 128
      %1560 = vxpose.xlu0.b32.cont [15/16] 0.0, 128
      %1561 = vxpose.xlu0.b32.end [16/16] 0.0, 128
      %v1562 = vpop.trf.xlu0
      %v1563 = vpop.trf.xlu0
      %v1564 = vpop.trf.xlu0
      %v1565 = vpop.trf.xlu0
      %v1566 = vpop.trf.xlu0
      %v1567 = vpop.trf.xlu0
      %v1568 = vpop.trf.xlu0
      %v1569 = vpop.trf.xlu0
      %v1570 = vpop.trf.xlu0
      %v1571 = vpop.trf.xlu0
      %v1572 = vpop.trf.xlu0
      %v1573 = vpop.trf.xlu0
      %v1574 = vpop.trf.xlu0
      %v1575 = vpop.trf.xlu0
      %v1576 = vpop.trf.xlu0
      %v1577 = vpop.trf.xlu0
      %1578 = vxpose.xlu0.b32.start [1/16] %v319, 128
      %1579 = vxpose.xlu0.b32.cont [2/16] 0.0, 128
      %1580 = vxpose.xlu0.b32.cont [3/16] 0.0, 128
      %1581 = vxpose.xlu0.b32.cont [4/16] 0.0, 128
      %1582 = vxpose.xlu0.b32.cont [5/16] 0.0, 128
      %1583 = vxpose.xlu0.b32.cont [6/16] 0.0, 128
      %1584 = vxpose.xlu0.b32.cont [7/16] 0.0, 128
      %1585 = vxpose.xlu0.b32.cont [8/16] 0.0, 128
      %1586 = vxpose.xlu0.b32.cont [9/16] 0.0, 128
      %1587 = vxpose.xlu0.b32.cont [10/16] 0.0, 128
      %1588 = vxpose.xlu0.b32.cont [11/16] 0.0, 128
      %1589 = vxpose.xlu0.b32.cont [12/16] 0.0, 128
      %1590 = vxpose.xlu0.b32.cont [13/16] 0.0, 128
      %1591 = vxpose.xlu0.b32.cont [14/16] 0.0, 128
      %1592 = vxpose.xlu0.b32.cont [15/16] 0.0, 128
      %1593 = vxpose.xlu0.b32.end [16/16] 0.0, 128
      %v1594 = vpop.trf.xlu0
      %v1595 = vpop.trf.xlu0
      %v1596 = vpop.trf.xlu0
      %v1597 = vpop.trf.xlu0
      %v1598 = vpop.trf.xlu0
      %v1599 = vpop.trf.xlu0
      %v1600 = vpop.trf.xlu0
      %v1601 = vpop.trf.xlu0
      %v1602 = vpop.trf.xlu0
      %v1603 = vpop.trf.xlu0
      %v1604 = vpop.trf.xlu0
      %v1605 = vpop.trf.xlu0
      %v1606 = vpop.trf.xlu0
      %v1607 = vpop.trf.xlu0
      %v1608 = vpop.trf.xlu0
      %v1609 = vpop.trf.xlu0
      %1610 = vxpose.xlu0.b32.start [1/16] %v320, 128
      %1611 = vxpose.xlu0.b32.cont [2/16] 0.0, 128
      %1612 = vxpose.xlu0.b32.cont [3/16] 0.0, 128
      %1613 = vxpose.xlu0.b32.cont [4/16] 0.0, 128
      %1614 = vxpose.xlu0.b32.cont [5/16] 0.0, 128
      %1615 = vxpose.xlu0.b32.cont [6/16] 0.0, 128
      %1616 = vxpose.xlu0.b32.cont [7/16] 0.0, 128
      %1617 = vxpose.xlu0.b32.cont [8/16] 0.0, 128
      %1618 = vxpose.xlu0.b32.cont [9/16] 0.0, 128
      %1619 = vxpose.xlu0.b32.cont [10/16] 0.0, 128
      %1620 = vxpose.xlu0.b32.cont [11/16] 0.0, 128
      %1621 = vxpose.xlu0.b32.cont [12/16] 0.0, 128
      %1622 = vxpose.xlu0.b32.cont [13/16] 0.0, 128
      %1623 = vxpose.xlu0.b32.cont [14/16] 0.0, 128
      %1624 = vxpose.xlu0.b32.cont [15/16] 0.0, 128
      %1625 = vxpose.xlu0.b32.end [16/16] 0.0, 128
      %v1626 = vpop.trf.xlu0
      %v1627 = vpop.trf.xlu0
      %v1628 = vpop.trf.xlu0
      %v1629 = vpop.trf.xlu0
      %v1630 = vpop.trf.xlu0
      %v1631 = vpop.trf.xlu0
      %v1632 = vpop.trf.xlu0
      %v1633 = vpop.trf.xlu0
      %v1634 = vpop.trf.xlu0
      %v1635 = vpop.trf.xlu0
      %v1636 = vpop.trf.xlu0
      %v1637 = vpop.trf.xlu0
      %v1638 = vpop.trf.xlu0
      %v1639 = vpop.trf.xlu0
      %v1640 = vpop.trf.xlu0
      %v1641 = vpop.trf.xlu0
      %1642 = vxpose.xlu0.b32.start [1/16] %v321, 128
      %1643 = vxpose.xlu0.b32.cont [2/16] 0.0, 128
      %1644 = vxpose.xlu0.b32.cont [3/16] 0.0, 128
      %1645 = vxpose.xlu0.b32.cont [4/16] 0.0, 128
      %1646 = vxpose.xlu0.b32.cont [5/16] 0.0, 128
      %1647 = vxpose.xlu0.b32.cont [6/16] 0.0, 128
      %1648 = vxpose.xlu0.b32.cont [7/16] 0.0, 128
      %1649 = vxpose.xlu0.b32.cont [8/16] 0.0, 128
      %1650 = vxpose.xlu0.b32.cont [9/16] 0.0, 128
      %1651 = vxpose.xlu0.b32.cont [10/16] 0.0, 128
      %1652 = vxpose.xlu0.b32.cont [11/16] 0.0, 128
      %1653 = vxpose.xlu0.b32.cont [12/16] 0.0, 128
      %1654 = vxpose.xlu0.b32.cont [13/16] 0.0, 128
      %1655 = vxpose.xlu0.b32.cont [14/16] 0.0, 128
      %1656 = vxpose.xlu0.b32.cont [15/16] 0.0, 128
      %1657 = vxpose.xlu0.b32.end [16/16] 0.0, 128
      %v1658 = vpop.trf.xlu0
      %v1659 = vpop.trf.xlu0
      %v1660 = vpop.trf.xlu0
      %v1661 = vpop.trf.xlu0
      %v1662 = vpop.trf.xlu0
      %v1663 = vpop.trf.xlu0
      %v1664 = vpop.trf.xlu0
      %v1665 = vpop.trf.xlu0
      %v1666 = vpop.trf.xlu0
      %v1667 = vpop.trf.xlu0
      %v1668 = vpop.trf.xlu0
      %v1669 = vpop.trf.xlu0
      %v1670 = vpop.trf.xlu0
      %v1671 = vpop.trf.xlu0
      %v1672 = vpop.trf.xlu0
      %v1673 = vpop.trf.xlu0
      %1674 = vxpose.xlu0.b32.start [1/16] %v322, 128
      %1675 = vxpose.xlu0.b32.cont [2/16] 0.0, 128
      %1676 = vxpose.xlu0.b32.cont [3/16] 0.0, 128
      %1677 = vxpose.xlu0.b32.cont [4/16] 0.0, 128
      %1678 = vxpose.xlu0.b32.cont [5/16] 0.0, 128
      %1679 = vxpose.xlu0.b32.cont [6/16] 0.0, 128
      %1680 = vxpose.xlu0.b32.cont [7/16] 0.0, 128
      %1681 = vxpose.xlu0.b32.cont [8/16] 0.0, 128
      %1682 = vxpose.xlu0.b32.cont [9/16] 0.0, 128
      %1683 = vxpose.xlu0.b32.cont [10/16] 0.0, 128
      %1684 = vxpose.xlu0.b32.cont [11/16] 0.0, 128
      %1685 = vxpose.xlu0.b32.cont [12/16] 0.0, 128
      %1686 = vxpose.xlu0.b32.cont [13/16] 0.0, 128
      %1687 = vxpose.xlu0.b32.cont [14/16] 0.0, 128
      %1688 = vxpose.xlu0.b32.cont [15/16] 0.0, 128
      %1689 = vxpose.xlu0.b32.end [16/16] 0.0, 128
      %v1690 = vpop.trf.xlu0
      %v1691 = vpop.trf.xlu0
      %v1692 = vpop.trf.xlu0
      %v1693 = vpop.trf.xlu0
      %v1694 = vpop.trf.xlu0
      %v1695 = vpop.trf.xlu0
      %v1696 = vpop.trf.xlu0
      %v1697 = vpop.trf.xlu0
      %v1698 = vpop.trf.xlu0
      %v1699 = vpop.trf.xlu0
      %v1700 = vpop.trf.xlu0
      %v1701 = vpop.trf.xlu0
      %v1702 = vpop.trf.xlu0
      %v1703 = vpop.trf.xlu0
      %v1704 = vpop.trf.xlu0
      %v1705 = vpop.trf.xlu0
      %1706 = vxpose.xlu0.b32.start [1/16] %v323, 128
      %1707 = vxpose.xlu0.b32.cont [2/16] 0.0, 128
      %1708 = vxpose.xlu0.b32.cont [3/16] 0.0, 128
      %1709 = vxpose.xlu0.b32.cont [4/16] 0.0, 128
      %1710 = vxpose.xlu0.b32.cont [5/16] 0.0, 128
      %1711 = vxpose.xlu0.b32.cont [6/16] 0.0, 128
      %1712 = vxpose.xlu0.b32.cont [7/16] 0.0, 128
      %1713 = vxpose.xlu0.b32.cont [8/16] 0.0, 128
      %1714 = vxpose.xlu0.b32.cont [9/16] 0.0, 128
      %1715 = vxpose.xlu0.b32.cont [10/16] 0.0, 128
      %1716 = vxpose.xlu0.b32.cont [11/16] 0.0, 128
      %1717 = vxpose.xlu0.b32.cont [12/16] 0.0, 128
      %1718 = vxpose.xlu0.b32.cont [13/16] 0.0, 128
      %1719 = vxpose.xlu0.b32.cont [14/16] 0.0, 128
      %1720 = vxpose.xlu0.b32.cont [15/16] 0.0, 128
      %1721 = vxpose.xlu0.b32.end [16/16] 0.0, 128
      %v1722 = vpop.trf.xlu0
      %v1723 = vpop.trf.xlu0
      %v1724 = vpop.trf.xlu0
      %v1725 = vpop.trf.xlu0
      %v1726 = vpop.trf.xlu0
      %v1727 = vpop.trf.xlu0
      %v1728 = vpop.trf.xlu0
      %v1729 = vpop.trf.xlu0
      %v1730 = vpop.trf.xlu0
      %v1731 = vpop.trf.xlu0
      %v1732 = vpop.trf.xlu0
      %v1733 = vpop.trf.xlu0
      %v1734 = vpop.trf.xlu0
      %v1735 = vpop.trf.xlu0
      %v1736 = vpop.trf.xlu0
      %v1737 = vpop.trf.xlu0
      %1738 = vxpose.xlu0.b32.start [1/16] %v324, 128
      %1739 = vxpose.xlu0.b32.cont [2/16] 0.0, 128
      %1740 = vxpose.xlu0.b32.cont [3/16] 0.0, 128
      %1741 = vxpose.xlu0.b32.cont [4/16] 0.0, 128
      %1742 = vxpose.xlu0.b32.cont [5/16] 0.0, 128
      %1743 = vxpose.xlu0.b32.cont [6/16] 0.0, 128
      %1744 = vxpose.xlu0.b32.cont [7/16] 0.0, 128
      %1745 = vxpose.xlu0.b32.cont [8/16] 0.0, 128
      %1746 = vxpose.xlu0.b32.cont [9/16] 0.0, 128
      %1747 = vxpose.xlu0.b32.cont [10/16] 0.0, 128
      %1748 = vxpose.xlu0.b32.cont [11/16] 0.0, 128
      %1749 = vxpose.xlu0.b32.cont [12/16] 0.0, 128
      %1750 = vxpose.xlu0.b32.cont [13/16] 0.0, 128
      %1751 = vxpose.xlu0.b32.cont [14/16] 0.0, 128
      %1752 = vxpose.xlu0.b32.cont [15/16] 0.0, 128
      %1753 = vxpose.xlu0.b32.end [16/16] 0.0, 128
      %v1754 = vpop.trf.xlu0
      %v1755 = vpop.trf.xlu0
      %v1756 = vpop.trf.xlu0
      %v1757 = vpop.trf.xlu0
      %v1758 = vpop.trf.xlu0
      %v1759 = vpop.trf.xlu0
      %v1760 = vpop.trf.xlu0
      %v1761 = vpop.trf.xlu0
      %v1762 = vpop.trf.xlu0
      %v1763 = vpop.trf.xlu0
      %v1764 = vpop.trf.xlu0
      %v1765 = vpop.trf.xlu0
      %v1766 = vpop.trf.xlu0
      %v1767 = vpop.trf.xlu0
      %v1768 = vpop.trf.xlu0
      %v1769 = vpop.trf.xlu0
      %1770 = vxpose.xlu0.b32.start [1/16] %v325, 128
      %1771 = vxpose.xlu0.b32.cont [2/16] 0.0, 128
      %1772 = vxpose.xlu0.b32.cont [3/16] 0.0, 128
      %1773 = vxpose.xlu0.b32.cont [4/16] 0.0, 128
      %1774 = vxpose.xlu0.b32.cont [5/16] 0.0, 128
      %1775 = vxpose.xlu0.b32.cont [6/16] 0.0, 128
      %1776 = vxpose.xlu0.b32.cont [7/16] 0.0, 128
      %1777 = vxpose.xlu0.b32.cont [8/16] 0.0, 128
      %1778 = vxpose.xlu0.b32.cont [9/16] 0.0, 128
      %1779 = vxpose.xlu0.b32.cont [10/16] 0.0, 128
      %1780 = vxpose.xlu0.b32.cont [11/16] 0.0, 128
      %1781 = vxpose.xlu0.b32.cont [12/16] 0.0, 128
      %1782 = vxpose.xlu0.b32.cont [13/16] 0.0, 128
      %1783 = vxpose.xlu0.b32.cont [14/16] 0.0, 128
      %1784 = vxpose.xlu0.b32.cont [15/16] 0.0, 128
      %1785 = vxpose.xlu0.b32.end [16/16] 0.0, 128
      %v1786 = vpop.trf.xlu0
      %v1787 = vpop.trf.xlu0
      %v1788 = vpop.trf.xlu0
      %v1789 = vpop.trf.xlu0
      %v1790 = vpop.trf.xlu0
      %v1791 = vpop.trf.xlu0
      %v1792 = vpop.trf.xlu0
      %v1793 = vpop.trf.xlu0
      %v1794 = vpop.trf.xlu0
      %v1795 = vpop.trf.xlu0
      %v1796 = vpop.trf.xlu0
      %v1797 = vpop.trf.xlu0
      %v1798 = vpop.trf.xlu0
      %v1799 = vpop.trf.xlu0
      %v1800 = vpop.trf.xlu0
      %v1801 = vpop.trf.xlu0
      %1802 = vxpose.xlu0.b32.start [1/16] %v326, 128
      %1803 = vxpose.xlu0.b32.cont [2/16] 0.0, 128
      %1804 = vxpose.xlu0.b32.cont [3/16] 0.0, 128
      %1805 = vxpose.xlu0.b32.cont [4/16] 0.0, 128
      %1806 = vxpose.xlu0.b32.cont [5/16] 0.0, 128
      %1807 = vxpose.xlu0.b32.cont [6/16] 0.0, 128
      %1808 = vxpose.xlu0.b32.cont [7/16] 0.0, 128
      %1809 = vxpose.xlu0.b32.cont [8/16] 0.0, 128
      %1810 = vxpose.xlu0.b32.cont [9/16] 0.0, 128
      %1811 = vxpose.xlu0.b32.cont [10/16] 0.0, 128
      %1812 = vxpose.xlu0.b32.cont [11/16] 0.0, 128
      %1813 = vxpose.xlu0.b32.cont [12/16] 0.0, 128
      %1814 = vxpose.xlu0.b32.cont [13/16] 0.0, 128
      %1815 = vxpose.xlu0.b32.cont [14/16] 0.0, 128
      %1816 = vxpose.xlu0.b32.cont [15/16] 0.0, 128
      %1817 = vxpose.xlu0.b32.end [16/16] 0.0, 128
      %v1818 = vpop.trf.xlu0
      %v1819 = vpop.trf.xlu0
      %v1820 = vpop.trf.xlu0
      %v1821 = vpop.trf.xlu0
      %v1822 = vpop.trf.xlu0
      %v1823 = vpop.trf.xlu0
      %v1824 = vpop.trf.xlu0
      %v1825 = vpop.trf.xlu0
      %v1826 = vpop.trf.xlu0
      %v1827 = vpop.trf.xlu0
      %v1828 = vpop.trf.xlu0
      %v1829 = vpop.trf.xlu0
      %v1830 = vpop.trf.xlu0
      %v1831 = vpop.trf.xlu0
      %v1832 = vpop.trf.xlu0
      %v1833 = vpop.trf.xlu0
      %1834 = vxpose.xlu0.b32.start [1/16] %v327, 128
      %1835 = vxpose.xlu0.b32.cont [2/16] 0.0, 128
      %1836 = vxpose.xlu0.b32.cont [3/16] 0.0, 128
      %1837 = vxpose.xlu0.b32.cont [4/16] 0.0, 128
      %1838 = vxpose.xlu0.b32.cont [5/16] 0.0, 128
      %1839 = vxpose.xlu0.b32.cont [6/16] 0.0, 128
      %1840 = vxpose.xlu0.b32.cont [7/16] 0.0, 128
      %1841 = vxpose.xlu0.b32.cont [8/16] 0.0, 128
      %1842 = vxpose.xlu0.b32.cont [9/16] 0.0, 128
      %1843 = vxpose.xlu0.b32.cont [10/16] 0.0, 128
      %1844 = vxpose.xlu0.b32.cont [11/16] 0.0, 128
      %1845 = vxpose.xlu0.b32.cont [12/16] 0.0, 128
      %1846 = vxpose.xlu0.b32.cont [13/16] 0.0, 128
      %1847 = vxpose.xlu0.b32.cont [14/16] 0.0, 128
      %1848 = vxpose.xlu0.b32.cont [15/16] 0.0, 128
      %1849 = vxpose.xlu0.b32.end [16/16] 0.0, 128
      %v1850 = vpop.trf.xlu0
      %v1851 = vpop.trf.xlu0
      %v1852 = vpop.trf.xlu0
      %v1853 = vpop.trf.xlu0
      %v1854 = vpop.trf.xlu0
      %v1855 = vpop.trf.xlu0
      %v1856 = vpop.trf.xlu0
      %v1857 = vpop.trf.xlu0
      %v1858 = vpop.trf.xlu0
      %v1859 = vpop.trf.xlu0
      %v1860 = vpop.trf.xlu0
      %v1861 = vpop.trf.xlu0
      %v1862 = vpop.trf.xlu0
      %v1863 = vpop.trf.xlu0
      %v1864 = vpop.trf.xlu0
      %v1865 = vpop.trf.xlu0
      %1866 = vxpose.xlu0.b32.start [1/16] %v328, 128
      %1867 = vxpose.xlu0.b32.cont [2/16] 0.0, 128
      %1868 = vxpose.xlu0.b32.cont [3/16] 0.0, 128
      %1869 = vxpose.xlu0.b32.cont [4/16] 0.0, 128
      %1870 = vxpose.xlu0.b32.cont [5/16] 0.0, 128
      %1871 = vxpose.xlu0.b32.cont [6/16] 0.0, 128
      %1872 = vxpose.xlu0.b32.cont [7/16] 0.0, 128
      %1873 = vxpose.xlu0.b32.cont [8/16] 0.0, 128
      %1874 = vxpose.xlu0.b32.cont [9/16] 0.0, 128
      %1875 = vxpose.xlu0.b32.cont [10/16] 0.0, 128
      %1876 = vxpose.xlu0.b32.cont [11/16] 0.0, 128
      %1877 = vxpose.xlu0.b32.cont [12/16] 0.0, 128
      %1878 = vxpose.xlu0.b32.cont [13/16] 0.0, 128
      %1879 = vxpose.xlu0.b32.cont [14/16] 0.0, 128
      %1880 = vxpose.xlu0.b32.cont [15/16] 0.0, 128
      %1881 = vxpose.xlu0.b32.end [16/16] 0.0, 128
      %v1882 = vpop.trf.xlu0
      %v1883 = vpop.trf.xlu0
      %v1884 = vpop.trf.xlu0
      %v1885 = vpop.trf.xlu0
      %v1886 = vpop.trf.xlu0
      %v1887 = vpop.trf.xlu0
      %v1888 = vpop.trf.xlu0
      %v1889 = vpop.trf.xlu0
      %v1890 = vpop.trf.xlu0
      %v1891 = vpop.trf.xlu0
      %v1892 = vpop.trf.xlu0
      %v1893 = vpop.trf.xlu0
      %v1894 = vpop.trf.xlu0
      %v1895 = vpop.trf.xlu0
      %v1896 = vpop.trf.xlu0
      %v1897 = vpop.trf.xlu0
      %1898 = vxpose.xlu0.b32.start [1/16] %v329, 128
      %1899 = vxpose.xlu0.b32.cont [2/16] 0.0, 128
      %1900 = vxpose.xlu0.b32.cont [3/16] 0.0, 128
      %1901 = vxpose.xlu0.b32.cont [4/16] 0.0, 128
      %1902 = vxpose.xlu0.b32.cont [5/16] 0.0, 128
      %1903 = vxpose.xlu0.b32.cont [6/16] 0.0, 128
      %1904 = vxpose.xlu0.b32.cont [7/16] 0.0, 128
      %1905 = vxpose.xlu0.b32.cont [8/16] 0.0, 128
      %1906 = vxpose.xlu0.b32.cont [9/16] 0.0, 128
      %1907 = vxpose.xlu0.b32.cont [10/16] 0.0, 128
      %1908 = vxpose.xlu0.b32.cont [11/16] 0.0, 128
      %1909 = vxpose.xlu0.b32.cont [12/16] 0.0, 128
      %1910 = vxpose.xlu0.b32.cont [13/16] 0.0, 128
      %1911 = vxpose.xlu0.b32.cont [14/16] 0.0, 128
      %1912 = vxpose.xlu0.b32.cont [15/16] 0.0, 128
      %1913 = vxpose.xlu0.b32.end [16/16] 0.0, 128
      %v1914 = vpop.trf.xlu0
      %v1915 = vpop.trf.xlu0
      %v1916 = vpop.trf.xlu0
      %v1917 = vpop.trf.xlu0
      %v1918 = vpop.trf.xlu0
      %v1919 = vpop.trf.xlu0
      %v1920 = vpop.trf.xlu0
      %v1921 = vpop.trf.xlu0
      %v1922 = vpop.trf.xlu0
      %v1923 = vpop.trf.xlu0
      %v1924 = vpop.trf.xlu0
      %v1925 = vpop.trf.xlu0
      %v1926 = vpop.trf.xlu0
      %v1927 = vpop.trf.xlu0
      %v1928 = vpop.trf.xlu0
      %v1929 = vpop.trf.xlu0
      %1930 = vxpose.xlu0.b32.start [1/16] %v330, 128
      %1931 = vxpose.xlu0.b32.cont [2/16] 0.0, 128
      %1932 = vxpose.xlu0.b32.cont [3/16] 0.0, 128
      %1933 = vxpose.xlu0.b32.cont [4/16] 0.0, 128
      %1934 = vxpose.xlu0.b32.cont [5/16] 0.0, 128
      %1935 = vxpose.xlu0.b32.cont [6/16] 0.0, 128
      %1936 = vxpose.xlu0.b32.cont [7/16] 0.0, 128
      %1937 = vxpose.xlu0.b32.cont [8/16] 0.0, 128
      %1938 = vxpose.xlu0.b32.cont [9/16] 0.0, 128
      %1939 = vxpose.xlu0.b32.cont [10/16] 0.0, 128
      %1940 = vxpose.xlu0.b32.cont [11/16] 0.0, 128
      %1941 = vxpose.xlu0.b32.cont [12/16] 0.0, 128
      %1942 = vxpose.xlu0.b32.cont [13/16] 0.0, 128
      %1943 = vxpose.xlu0.b32.cont [14/16] 0.0, 128
      %1944 = vxpose.xlu0.b32.cont [15/16] 0.0, 128
      %1945 = vxpose.xlu0.b32.end [16/16] 0.0, 128
      %v1946 = vpop.trf.xlu0
      %v1947 = vpop.trf.xlu0
      %v1948 = vpop.trf.xlu0
      %v1949 = vpop.trf.xlu0
      %v1950 = vpop.trf.xlu0
      %v1951 = vpop.trf.xlu0
      %v1952 = vpop.trf.xlu0
      %v1953 = vpop.trf.xlu0
      %v1954 = vpop.trf.xlu0
      %v1955 = vpop.trf.xlu0
      %v1956 = vpop.trf.xlu0
      %v1957 = vpop.trf.xlu0
      %v1958 = vpop.trf.xlu0
      %v1959 = vpop.trf.xlu0
      %v1960 = vpop.trf.xlu0
      %v1961 = vpop.trf.xlu0
      %1962 = vxpose.xlu0.b32.start [1/16] %v331, 128
      %1963 = vxpose.xlu0.b32.cont [2/16] 0.0, 128
      %1964 = vxpose.xlu0.b32.cont [3/16] 0.0, 128
      %1965 = vxpose.xlu0.b32.cont [4/16] 0.0, 128
      %1966 = vxpose.xlu0.b32.cont [5/16] 0.0, 128
      %1967 = vxpose.xlu0.b32.cont [6/16] 0.0, 128
      %1968 = vxpose.xlu0.b32.cont [7/16] 0.0, 128
      %1969 = vxpose.xlu0.b32.cont [8/16] 0.0, 128
      %1970 = vxpose.xlu0.b32.cont [9/16] 0.0, 128
      %1971 = vxpose.xlu0.b32.cont [10/16] 0.0, 128
      %1972 = vxpose.xlu0.b32.cont [11/16] 0.0, 128
      %1973 = vxpose.xlu0.b32.cont [12/16] 0.0, 128
      %1974 = vxpose.xlu0.b32.cont [13/16] 0.0, 128
      %1975 = vxpose.xlu0.b32.cont [14/16] 0.0, 128
      %1976 = vxpose.xlu0.b32.cont [15/16] 0.0, 128
      %1977 = vxpose.xlu0.b32.end [16/16] 0.0, 128
      %v1978 = vpop.trf.xlu0
      %v1979 = vpop.trf.xlu0
      %v1980 = vpop.trf.xlu0
      %v1981 = vpop.trf.xlu0
      %v1982 = vpop.trf.xlu0
      %v1983 = vpop.trf.xlu0
      %v1984 = vpop.trf.xlu0
      %v1985 = vpop.trf.xlu0
      %v1986 = vpop.trf.xlu0
      %v1987 = vpop.trf.xlu0
      %v1988 = vpop.trf.xlu0
      %v1989 = vpop.trf.xlu0
      %v1990 = vpop.trf.xlu0
      %v1991 = vpop.trf.xlu0
      %v1992 = vpop.trf.xlu0
      %v1993 = vpop.trf.xlu0
      %1994 = vxpose.xlu0.b32.start [1/16] %v332, 128
      %1995 = vxpose.xlu0.b32.cont [2/16] 0.0, 128
      %1996 = vxpose.xlu0.b32.cont [3/16] 0.0, 128
      %1997 = vxpose.xlu0.b32.cont [4/16] 0.0, 128
      %1998 = vxpose.xlu0.b32.cont [5/16] 0.0, 128
      %1999 = vxpose.xlu0.b32.cont [6/16] 0.0, 128
      %2000 = vxpose.xlu0.b32.cont [7/16] 0.0, 128
      %2001 = vxpose.xlu0.b32.cont [8/16] 0.0, 128
      %2002 = vxpose.xlu0.b32.cont [9/16] 0.0, 128
      %2003 = vxpose.xlu0.b32.cont [10/16] 0.0, 128
      %2004 = vxpose.xlu0.b32.cont [11/16] 0.0, 128
      %2005 = vxpose.xlu0.b32.cont [12/16] 0.0, 128
      %2006 = vxpose.xlu0.b32.cont [13/16] 0.0, 128
      %2007 = vxpose.xlu0.b32.cont [14/16] 0.0, 128
      %2008 = vxpose.xlu0.b32.cont [15/16] 0.0, 128
      %2009 = vxpose.xlu0.b32.end [16/16] 0.0, 128
      %v2010 = vpop.trf.xlu0
      %v2011 = vpop.trf.xlu0
      %v2012 = vpop.trf.xlu0
      %v2013 = vpop.trf.xlu0
      %v2014 = vpop.trf.xlu0
      %v2015 = vpop.trf.xlu0
      %v2016 = vpop.trf.xlu0
      %v2017 = vpop.trf.xlu0
      %v2018 = vpop.trf.xlu0
      %v2019 = vpop.trf.xlu0
      %v2020 = vpop.trf.xlu0
      %v2021 = vpop.trf.xlu0
      %v2022 = vpop.trf.xlu0
      %v2023 = vpop.trf.xlu0
      %v2024 = vpop.trf.xlu0
      %v2025 = vpop.trf.xlu0
      %2026 = vxpose.xlu0.b32.start [1/16] %v333, 128
      %2027 = vxpose.xlu0.b32.cont [2/16] 0.0, 128
      %2028 = vxpose.xlu0.b32.cont [3/16] 0.0, 128
      %2029 = vxpose.xlu0.b32.cont [4/16] 0.0, 128
      %2030 = vxpose.xlu0.b32.cont [5/16] 0.0, 128
      %2031 = vxpose.xlu0.b32.cont [6/16] 0.0, 128
      %2032 = vxpose.xlu0.b32.cont [7/16] 0.0, 128
      %2033 = vxpose.xlu0.b32.cont [8/16] 0.0, 128
      %2034 = vxpose.xlu0.b32.cont [9/16] 0.0, 128
      %2035 = vxpose.xlu0.b32.cont [10/16] 0.0, 128
      %2036 = vxpose.xlu0.b32.cont [11/16] 0.0, 128
      %2037 = vxpose.xlu0.b32.cont [12/16] 0.0, 128
      %2038 = vxpose.xlu0.b32.cont [13/16] 0.0, 128
      %2039 = vxpose.xlu0.b32.cont [14/16] 0.0, 128
      %2040 = vxpose.xlu0.b32.cont [15/16] 0.0, 128
      %2041 = vxpose.xlu0.b32.end [16/16] 0.0, 128
      %v2042 = vpop.trf.xlu0
      %v2043 = vpop.trf.xlu0
      %v2044 = vpop.trf.xlu0
      %v2045 = vpop.trf.xlu0
      %v2046 = vpop.trf.xlu0
      %v2047 = vpop.trf.xlu0
      %v2048 = vpop.trf.xlu0
      %v2049 = vpop.trf.xlu0
      %v2050 = vpop.trf.xlu0
      %v2051 = vpop.trf.xlu0
      %v2052 = vpop.trf.xlu0
      %v2053 = vpop.trf.xlu0
      %v2054 = vpop.trf.xlu0
      %v2055 = vpop.trf.xlu0
      %v2056 = vpop.trf.xlu0
      %v2057 = vpop.trf.xlu0
      %2058 = vxpose.xlu0.b32.start [1/16] %v334, 128
      %2059 = vxpose.xlu0.b32.cont [2/16] 0.0, 128
      %2060 = vxpose.xlu0.b32.cont [3/16] 0.0, 128
      %2061 = vxpose.xlu0.b32.cont [4/16] 0.0, 128
      %2062 = vxpose.xlu0.b32.cont [5/16] 0.0, 128
      %2063 = vxpose.xlu0.b32.cont [6/16] 0.0, 128
      %2064 = vxpose.xlu0.b32.cont [7/16] 0.0, 128
      %2065 = vxpose.xlu0.b32.cont [8/16] 0.0, 128
      %2066 = vxpose.xlu0.b32.cont [9/16] 0.0, 128
      %2067 = vxpose.xlu0.b32.cont [10/16] 0.0, 128
      %2068 = vxpose.xlu0.b32.cont [11/16] 0.0, 128
      %2069 = vxpose.xlu0.b32.cont [12/16] 0.0, 128
      %2070 = vxpose.xlu0.b32.cont [13/16] 0.0, 128
      %2071 = vxpose.xlu0.b32.cont [14/16] 0.0, 128
      %2072 = vxpose.xlu0.b32.cont [15/16] 0.0, 128
      %2073 = vxpose.xlu0.b32.end [16/16] 0.0, 128
      %v2074 = vpop.trf.xlu0
      %v2075 = vpop.trf.xlu0
      %v2076 = vpop.trf.xlu0
      %v2077 = vpop.trf.xlu0
      %v2078 = vpop.trf.xlu0
      %v2079 = vpop.trf.xlu0
      %v2080 = vpop.trf.xlu0
      %v2081 = vpop.trf.xlu0
      %v2082 = vpop.trf.xlu0
      %v2083 = vpop.trf.xlu0
      %v2084 = vpop.trf.xlu0
      %v2085 = vpop.trf.xlu0
      %v2086 = vpop.trf.xlu0
      %v2087 = vpop.trf.xlu0
      %v2088 = vpop.trf.xlu0
      %v2089 = vpop.trf.xlu0
      %2090 = vxpose.xlu0.b32.start [1/16] %v335, 128
      %2091 = vxpose.xlu0.b32.cont [2/16] 0.0, 128
      %2092 = vxpose.xlu0.b32.cont [3/16] 0.0, 128
      %2093 = vxpose.xlu0.b32.cont [4/16] 0.0, 128
      %2094 = vxpose.xlu0.b32.cont [5/16] 0.0, 128
      %2095 = vxpose.xlu0.b32.cont [6/16] 0.0, 128
      %2096 = vxpose.xlu0.b32.cont [7/16] 0.0, 128
      %2097 = vxpose.xlu0.b32.cont [8/16] 0.0, 128
      %2098 = vxpose.xlu0.b32.cont [9/16] 0.0, 128
      %2099 = vxpose.xlu0.b32.cont [10/16] 0.0, 128
      %2100 = vxpose.xlu0.b32.cont [11/16] 0.0, 128
      %2101 = vxpose.xlu0.b32.cont [12/16] 0.0, 128
      %2102 = vxpose.xlu0.b32.cont [13/16] 0.0, 128
      %2103 = vxpose.xlu0.b32.cont [14/16] 0.0, 128
      %2104 = vxpose.xlu0.b32.cont [15/16] 0.0, 128
      %2105 = vxpose.xlu0.b32.end [16/16] 0.0, 128
      %v2106 = vpop.trf.xlu0
      %v2107 = vpop.trf.xlu0
      %v2108 = vpop.trf.xlu0
      %v2109 = vpop.trf.xlu0
      %v2110 = vpop.trf.xlu0
      %v2111 = vpop.trf.xlu0
      %v2112 = vpop.trf.xlu0
      %v2113 = vpop.trf.xlu0
      %v2114 = vpop.trf.xlu0
      %v2115 = vpop.trf.xlu0
      %v2116 = vpop.trf.xlu0
      %v2117 = vpop.trf.xlu0
      %v2118 = vpop.trf.xlu0
      %v2119 = vpop.trf.xlu0
      %v2120 = vpop.trf.xlu0
      %v2121 = vpop.trf.xlu0
      %v2122 = vrot.slane %v1434, 4
      %v2123 = vsel %vm1242, %v2122, %v1370
      %v2124 = vrot.slane %v1370, 4
      %v2125 = vsel %vm1242, %v1434, %v2124
      %v2127 = vunpack.c.l.s4 1983009808
      %v2128 = vunpack.c.0.s8 %v2127
      %v2129 = vperm.slane %v2123, %v2128
      %v2131 = vunpack.c.l.s4 1983009808
      %v2132 = vunpack.c.0.s8 %v2131
      %v2133 = vperm.slane %v2125, %v2132
      %v2134 = vrot.slane %v1466, 4
      %v2135 = vsel %vm1242, %v2134, %v1402
      %v2136 = vrot.slane %v1402, 4
      %v2137 = vsel %vm1242, %v1466, %v2136
      %v2139 = vunpack.c.l.s4 1983009808
      %v2140 = vunpack.c.0.s8 %v2139
      %v2141 = vperm.slane %v2135, %v2140
      %v2143 = vunpack.c.l.s4 1983009808
      %v2144 = vunpack.c.0.s8 %v2143
      %v2145 = vperm.slane %v2137, %v2144
      %v2146 = vrot.slane %v1562, 4
      %v2147 = vsel %vm1242, %v2146, %v1498
      %v2148 = vrot.slane %v1498, 4
      %v2149 = vsel %vm1242, %v1562, %v2148
      %v2151 = vunpack.c.l.s4 1983009808
      %v2152 = vunpack.c.0.s8 %v2151
      %v2153 = vperm.slane %v2147, %v2152
      %v2155 = vunpack.c.l.s4 1983009808
      %v2156 = vunpack.c.0.s8 %v2155
      %v2157 = vperm.slane %v2149, %v2156
      %v2158 = vrot.slane %v1594, 4
      %v2159 = vsel %vm1242, %v2158, %v1530
      %v2160 = vrot.slane %v1530, 4
      %v2161 = vsel %vm1242, %v1594, %v2160
      %v2163 = vunpack.c.l.s4 1983009808
      %v2164 = vunpack.c.0.s8 %v2163
      %v2165 = vperm.slane %v2159, %v2164
      %v2167 = vunpack.c.l.s4 1983009808
      %v2168 = vunpack.c.0.s8 %v2167
      %v2169 = vperm.slane %v2161, %v2168
      %v2170 = vrot.slane %v2141, 4
      %v2171 = vsel %vm1242, %v2170, %v2129
      %v2172 = vrot.slane %v2129, 4
      %v2173 = vsel %vm1242, %v2141, %v2172
      %v2175 = vunpack.c.l.s4 1934713408
      %v2176 = vunpack.c.0.s8 %v2175
      %v2177 = vperm.slane %v2171, %v2176
      %v2179 = vunpack.c.l.s4 1934713408
      %v2180 = vunpack.c.0.s8 %v2179
      %v2181 = vperm.slane %v2173, %v2180
      %v2182 = vrot.slane %v2145, 4
      %v2183 = vsel %vm1242, %v2182, %v2133
      %v2184 = vrot.slane %v2133, 4
      %v2185 = vsel %vm1242, %v2145, %v2184
      %v2187 = vunpack.c.l.s4 1934713408
      %v2188 = vunpack.c.0.s8 %v2187
      %v2189 = vperm.slane %v2183, %v2188
      %v2191 = vunpack.c.l.s4 1934713408
      %v2192 = vunpack.c.0.s8 %v2191
      %v2193 = vperm.slane %v2185, %v2192
      %v2194 = vrot.slane %v2165, 4
      %v2195 = vsel %vm1242, %v2194, %v2153
      %v2196 = vrot.slane %v2153, 4
      %v2197 = vsel %vm1242, %v2165, %v2196
      %v2199 = vunpack.c.l.s4 1934713408
      %v2200 = vunpack.c.0.s8 %v2199
      %v2201 = vperm.slane %v2195, %v2200
      %v2203 = vunpack.c.l.s4 1934713408
      %v2204 = vunpack.c.0.s8 %v2203
      %v2205 = vperm.slane %v2197, %v2204
      %v2206 = vrot.slane %v2169, 4
      %v2207 = vsel %vm1242, %v2206, %v2157
      %v2208 = vrot.slane %v2157, 4
      %v2209 = vsel %vm1242, %v2169, %v2208
      %v2211 = vunpack.c.l.s4 1934713408
      %v2212 = vunpack.c.0.s8 %v2211
      %v2213 = vperm.slane %v2207, %v2212
      %v2215 = vunpack.c.l.s4 1934713408
      %v2216 = vunpack.c.0.s8 %v2215
      %v2217 = vperm.slane %v2209, %v2216
      %v2218 = vrot.slane %v2201, 4
      %v2219 = vsel %vm1242, %v2218, %v2177
      %v2220 = vrot.slane %v2177, 4
      %v2221 = vsel %vm1242, %v2201, %v2220
      %v2222 = vrot.slane %v2205, 4
      %v2223 = vsel %vm1242, %v2222, %v2181
      %v2224 = vrot.slane %v2181, 4
      %v2225 = vsel %vm1242, %v2205, %v2224
      %v2226 = vrot.slane %v2213, 4
      %v2227 = vsel %vm1242, %v2226, %v2189
      %v2228 = vrot.slane %v2189, 4
      %v2229 = vsel %vm1242, %v2213, %v2228
      %v2230 = vrot.slane %v2217, 4
      %v2231 = vsel %vm1242, %v2230, %v2193
      %v2232 = vrot.slane %v2193, 4
      %v2233 = vsel %vm1242, %v2217, %v2232
      %v2234 = vrot.slane %v1690, 4
      %v2235 = vsel %vm1242, %v2234, %v1626
      %v2236 = vrot.slane %v1626, 4
      %v2237 = vsel %vm1242, %v1690, %v2236
      %v2239 = vunpack.c.l.s4 1983009808
      %v2240 = vunpack.c.0.s8 %v2239
      %v2241 = vperm.slane %v2235, %v2240
      %v2243 = vunpack.c.l.s4 1983009808
      %v2244 = vunpack.c.0.s8 %v2243
      %v2245 = vperm.slane %v2237, %v2244
      %v2246 = vrot.slane %v1722, 4
      %v2247 = vsel %vm1242, %v2246, %v1658
      %v2248 = vrot.slane %v1658, 4
      %v2249 = vsel %vm1242, %v1722, %v2248
      %v2251 = vunpack.c.l.s4 1983009808
      %v2252 = vunpack.c.0.s8 %v2251
      %v2253 = vperm.slane %v2247, %v2252
      %v2255 = vunpack.c.l.s4 1983009808
      %v2256 = vunpack.c.0.s8 %v2255
      %v2257 = vperm.slane %v2249, %v2256
      %v2258 = vrot.slane %v1818, 4
      %v2259 = vsel %vm1242, %v2258, %v1754
      %v2260 = vrot.slane %v1754, 4
      %v2261 = vsel %vm1242, %v1818, %v2260
      %v2263 = vunpack.c.l.s4 1983009808
      %v2264 = vunpack.c.0.s8 %v2263
      %v2265 = vperm.slane %v2259, %v2264
      %v2267 = vunpack.c.l.s4 1983009808
      %v2268 = vunpack.c.0.s8 %v2267
      %v2269 = vperm.slane %v2261, %v2268
      %v2270 = vrot.slane %v1850, 4
      %v2271 = vsel %vm1242, %v2270, %v1786
      %v2272 = vrot.slane %v1786, 4
      %v2273 = vsel %vm1242, %v1850, %v2272
      %v2275 = vunpack.c.l.s4 1983009808
      %v2276 = vunpack.c.0.s8 %v2275
      %v2277 = vperm.slane %v2271, %v2276
      %v2279 = vunpack.c.l.s4 1983009808
      %v2280 = vunpack.c.0.s8 %v2279
      %v2281 = vperm.slane %v2273, %v2280
      %v2282 = vrot.slane %v2253, 4
      %v2283 = vsel %vm1242, %v2282, %v2241
      %v2284 = vrot.slane %v2241, 4
      %v2285 = vsel %vm1242, %v2253, %v2284
      %v2287 = vunpack.c.l.s4 1934713408
      %v2288 = vunpack.c.0.s8 %v2287
      %v2289 = vperm.slane %v2283, %v2288
      %v2291 = vunpack.c.l.s4 1934713408
      %v2292 = vunpack.c.0.s8 %v2291
      %v2293 = vperm.slane %v2285, %v2292
      %v2294 = vrot.slane %v2257, 4
      %v2295 = vsel %vm1242, %v2294, %v2245
      %v2296 = vrot.slane %v2245, 4
      %v2297 = vsel %vm1242, %v2257, %v2296
      %v2299 = vunpack.c.l.s4 1934713408
      %v2300 = vunpack.c.0.s8 %v2299
      %v2301 = vperm.slane %v2295, %v2300
      %v2303 = vunpack.c.l.s4 1934713408
      %v2304 = vunpack.c.0.s8 %v2303
      %v2305 = vperm.slane %v2297, %v2304
      %v2306 = vrot.slane %v2277, 4
      %v2307 = vsel %vm1242, %v2306, %v2265
      %v2308 = vrot.slane %v2265, 4
      %v2309 = vsel %vm1242, %v2277, %v2308
      %v2311 = vunpack.c.l.s4 1934713408
      %v2312 = vunpack.c.0.s8 %v2311
      %v2313 = vperm.slane %v2307, %v2312
      %v2315 = vunpack.c.l.s4 1934713408
      %v2316 = vunpack.c.0.s8 %v2315
      %v2317 = vperm.slane %v2309, %v2316
      %v2318 = vrot.slane %v2281, 4
      %v2319 = vsel %vm1242, %v2318, %v2269
      %v2320 = vrot.slane %v2269, 4
      %v2321 = vsel %vm1242, %v2281, %v2320
      %v2323 = vunpack.c.l.s4 1934713408
      %v2324 = vunpack.c.0.s8 %v2323
      %v2325 = vperm.slane %v2319, %v2324
      %v2327 = vunpack.c.l.s4 1934713408
      %v2328 = vunpack.c.0.s8 %v2327
      %v2329 = vperm.slane %v2321, %v2328
      %v2330 = vrot.slane %v2313, 4
      %v2331 = vsel %vm1242, %v2330, %v2289
      %v2332 = vrot.slane %v2289, 4
      %v2333 = vsel %vm1242, %v2313, %v2332
      %v2334 = vrot.slane %v2317, 4
      %v2335 = vsel %vm1242, %v2334, %v2293
      %v2336 = vrot.slane %v2293, 4
      %v2337 = vsel %vm1242, %v2317, %v2336
      %v2338 = vrot.slane %v2325, 4
      %v2339 = vsel %vm1242, %v2338, %v2301
      %v2340 = vrot.slane %v2301, 4
      %v2341 = vsel %vm1242, %v2325, %v2340
      %v2342 = vrot.slane %v2329, 4
      %v2343 = vsel %vm1242, %v2342, %v2305
      %v2344 = vrot.slane %v2305, 4
      %v2345 = vsel %vm1242, %v2329, %v2344
      %v2346 = vrot.slane %v1946, 4
      %v2347 = vsel %vm1242, %v2346, %v1882
      %v2348 = vrot.slane %v1882, 4
      %v2349 = vsel %vm1242, %v1946, %v2348
      %v2351 = vunpack.c.l.s4 1983009808
      %v2352 = vunpack.c.0.s8 %v2351
      %v2353 = vperm.slane %v2347, %v2352
      %v2355 = vunpack.c.l.s4 1983009808
      %v2356 = vunpack.c.0.s8 %v2355
      %v2357 = vperm.slane %v2349, %v2356
      %v2358 = vrot.slane %v1978, 4
      %v2359 = vsel %vm1242, %v2358, %v1914
      %v2360 = vrot.slane %v1914, 4
      %v2361 = vsel %vm1242, %v1978, %v2360
      %v2363 = vunpack.c.l.s4 1983009808
      %v2364 = vunpack.c.0.s8 %v2363
      %v2365 = vperm.slane %v2359, %v2364
      %v2367 = vunpack.c.l.s4 1983009808
      %v2368 = vunpack.c.0.s8 %v2367
      %v2369 = vperm.slane %v2361, %v2368
      %v2370 = vrot.slane %v2074, 4
      %v2371 = vsel %vm1242, %v2370, %v2010
      %v2372 = vrot.slane %v2010, 4
      %v2373 = vsel %vm1242, %v2074, %v2372
      %v2375 = vunpack.c.l.s4 1983009808
      %v2376 = vunpack.c.0.s8 %v2375
      %v2377 = vperm.slane %v2371, %v2376
      %v2379 = vunpack.c.l.s4 1983009808
      %v2380 = vunpack.c.0.s8 %v2379
      %v2381 = vperm.slane %v2373, %v2380
      %v2382 = vrot.slane %v2106, 4
      %v2383 = vsel %vm1242, %v2382, %v2042
      %v2384 = vrot.slane %v2042, 4
      %v2385 = vsel %vm1242, %v2106, %v2384
      %v2387 = vunpack.c.l.s4 1983009808
      %v2388 = vunpack.c.0.s8 %v2387
      %v2389 = vperm.slane %v2383, %v2388
      %v2391 = vunpack.c.l.s4 1983009808
      %v2392 = vunpack.c.0.s8 %v2391
      %v2393 = vperm.slane %v2385, %v2392
      %v2394 = vrot.slane %v2365, 4
      %v2395 = vsel %vm1242, %v2394, %v2353
      %v2396 = vrot.slane %v2353, 4
      %v2397 = vsel %vm1242, %v2365, %v2396
      %v2399 = vunpack.c.l.s4 1934713408
      %v2400 = vunpack.c.0.s8 %v2399
      %v2401 = vperm.slane %v2395, %v2400
      %v2403 = vunpack.c.l.s4 1934713408
      %v2404 = vunpack.c.0.s8 %v2403
      %v2405 = vperm.slane %v2397, %v2404
      %v2406 = vrot.slane %v2369, 4
      %v2407 = vsel %vm1242, %v2406, %v2357
      %v2408 = vrot.slane %v2357, 4
      %v2409 = vsel %vm1242, %v2369, %v2408
      %v2411 = vunpack.c.l.s4 1934713408
      %v2412 = vunpack.c.0.s8 %v2411
      %v2413 = vperm.slane %v2407, %v2412
      %v2415 = vunpack.c.l.s4 1934713408
      %v2416 = vunpack.c.0.s8 %v2415
      %v2417 = vperm.slane %v2409, %v2416
      %v2418 = vrot.slane %v2389, 4
      %v2419 = vsel %vm1242, %v2418, %v2377
      %v2420 = vrot.slane %v2377, 4
      %v2421 = vsel %vm1242, %v2389, %v2420
      %v2423 = vunpack.c.l.s4 1934713408
      %v2424 = vunpack.c.0.s8 %v2423
      %v2425 = vperm.slane %v2419, %v2424
      %v2427 = vunpack.c.l.s4 1934713408
      %v2428 = vunpack.c.0.s8 %v2427
      %v2429 = vperm.slane %v2421, %v2428
      %v2430 = vrot.slane %v2393, 4
      %v2431 = vsel %vm1242, %v2430, %v2381
      %v2432 = vrot.slane %v2381, 4
      %v2433 = vsel %vm1242, %v2393, %v2432
      %v2435 = vunpack.c.l.s4 1934713408
      %v2436 = vunpack.c.0.s8 %v2435
      %v2437 = vperm.slane %v2431, %v2436
      %v2439 = vunpack.c.l.s4 1934713408
      %v2440 = vunpack.c.0.s8 %v2439
      %v2441 = vperm.slane %v2433, %v2440
      %v2442 = vrot.slane %v2425, 4
      %v2443 = vsel %vm1242, %v2442, %v2401
      %v2444 = vrot.slane %v2401, 4
      %v2445 = vsel %vm1242, %v2425, %v2444
      %v2446 = vrot.slane %v2429, 4
      %v2447 = vsel %vm1242, %v2446, %v2405
      %v2448 = vrot.slane %v2405, 4
      %v2449 = vsel %vm1242, %v2429, %v2448
      %v2450 = vrot.slane %v2437, 4
      %v2451 = vsel %vm1242, %v2450, %v2413
      %v2452 = vrot.slane %v2413, 4
      %v2453 = vsel %vm1242, %v2437, %v2452
      %v2454 = vrot.slane %v2441, 4
      %v2455 = vsel %vm1242, %v2454, %v2417
      %v2456 = vrot.slane %v2417, 4
      %v2457 = vsel %vm1242, %v2441, %v2456
      %2458 = vxpose.xlu0.b32.start [1/16] %v2219, 128
      %2459 = vxpose.xlu0.b32.cont [2/16] %v2331, 128
      %2460 = vxpose.xlu0.b32.cont [3/16] %v2443, 128
      %2461 = vxpose.xlu0.b32.cont [4/16] 0.0, 128
      %2462 = vxpose.xlu0.b32.cont [5/16] 0.0, 128
      %2463 = vxpose.xlu0.b32.cont [6/16] 0.0, 128
      %2464 = vxpose.xlu0.b32.cont [7/16] 0.0, 128
      %2465 = vxpose.xlu0.b32.cont [8/16] 0.0, 128
      %2466 = vxpose.xlu0.b32.cont [9/16] 0.0, 128
      %2467 = vxpose.xlu0.b32.cont [10/16] 0.0, 128
      %2468 = vxpose.xlu0.b32.cont [11/16] 0.0, 128
      %2469 = vxpose.xlu0.b32.cont [12/16] 0.0, 128
      %2470 = vxpose.xlu0.b32.cont [13/16] 0.0, 128
      %2471 = vxpose.xlu0.b32.cont [14/16] 0.0, 128
      %2472 = vxpose.xlu0.b32.cont [15/16] 0.0, 128
      %2473 = vxpose.xlu0.b32.end [16/16] 0.0, 128
      %v2474 = vpop.trf.xlu0
      %v2475 = vpop.trf.xlu0
      %v2476 = vpop.trf.xlu0
      %v2477 = vpop.trf.xlu0
      %v2478 = vpop.trf.xlu0
      %v2479 = vpop.trf.xlu0
      %v2480 = vpop.trf.xlu0
      %v2481 = vpop.trf.xlu0
      %v2482 = vpop.trf.xlu0
      %v2483 = vpop.trf.xlu0
      %v2484 = vpop.trf.xlu0
      %v2485 = vpop.trf.xlu0
      %v2486 = vpop.trf.xlu0
      %v2487 = vpop.trf.xlu0
      %v2488 = vpop.trf.xlu0
      %v2489 = vpop.trf.xlu0
      %2490 = vxpose.xlu0.b32.start [1/16] %v2221, 128
      %2491 = vxpose.xlu0.b32.cont [2/16] %v2333, 128
      %2492 = vxpose.xlu0.b32.cont [3/16] %v2445, 128
      %2493 = vxpose.xlu0.b32.cont [4/16] 0.0, 128
      %2494 = vxpose.xlu0.b32.cont [5/16] 0.0, 128
      %2495 = vxpose.xlu0.b32.cont [6/16] 0.0, 128
      %2496 = vxpose.xlu0.b32.cont [7/16] 0.0, 128
      %2497 = vxpose.xlu0.b32.cont [8/16] 0.0, 128
      %2498 = vxpose.xlu0.b32.cont [9/16] 0.0, 128
      %2499 = vxpose.xlu0.b32.cont [10/16] 0.0, 128
      %2500 = vxpose.xlu0.b32.cont [11/16] 0.0, 128
      %2501 = vxpose.xlu0.b32.cont [12/16] 0.0, 128
      %2502 = vxpose.xlu0.b32.cont [13/16] 0.0, 128
      %2503 = vxpose.xlu0.b32.cont [14/16] 0.0, 128
      %2504 = vxpose.xlu0.b32.cont [15/16] 0.0, 128
      %2505 = vxpose.xlu0.b32.end [16/16] 0.0, 128
      %v2506 = vpop.trf.xlu0
      %v2507 = vpop.trf.xlu0
      %v2508 = vpop.trf.xlu0
      %v2509 = vpop.trf.xlu0
      %v2510 = vpop.trf.xlu0
      %v2511 = vpop.trf.xlu0
      %v2512 = vpop.trf.xlu0
      %v2513 = vpop.trf.xlu0
      %v2514 = vpop.trf.xlu0
      %v2515 = vpop.trf.xlu0
      %v2516 = vpop.trf.xlu0
      %v2517 = vpop.trf.xlu0
      %v2518 = vpop.trf.xlu0
      %v2519 = vpop.trf.xlu0
      %v2520 = vpop.trf.xlu0
      %v2521 = vpop.trf.xlu0
      %2522 = vxpose.xlu0.b32.start [1/16] %v2223, 128
      %2523 = vxpose.xlu0.b32.cont [2/16] %v2335, 128
      %2524 = vxpose.xlu0.b32.cont [3/16] %v2447, 128
      %2525 = vxpose.xlu0.b32.cont [4/16] 0.0, 128
      %2526 = vxpose.xlu0.b32.cont [5/16] 0.0, 128
      %2527 = vxpose.xlu0.b32.cont [6/16] 0.0, 128
      %2528 = vxpose.xlu0.b32.cont [7/16] 0.0, 128
      %2529 = vxpose.xlu0.b32.cont [8/16] 0.0, 128
      %2530 = vxpose.xlu0.b32.cont [9/16] 0.0, 128
      %2531 = vxpose.xlu0.b32.cont [10/16] 0.0, 128
      %2532 = vxpose.xlu0.b32.cont [11/16] 0.0, 128
      %2533 = vxpose.xlu0.b32.cont [12/16] 0.0, 128
      %2534 = vxpose.xlu0.b32.cont [13/16] 0.0, 128
      %2535 = vxpose.xlu0.b32.cont [14/16] 0.0, 128
      %2536 = vxpose.xlu0.b32.cont [15/16] 0.0, 128
      %2537 = vxpose.xlu0.b32.end [16/16] 0.0, 128
      %v2538 = vpop.trf.xlu0
      %v2539 = vpop.trf.xlu0
      %v2540 = vpop.trf.xlu0
      %v2541 = vpop.trf.xlu0
      %v2542 = vpop.trf.xlu0
      %v2543 = vpop.trf.xlu0
      %v2544 = vpop.trf.xlu0
      %v2545 = vpop.trf.xlu0
      %v2546 = vpop.trf.xlu0
      %v2547 = vpop.trf.xlu0
      %v2548 = vpop.trf.xlu0
      %v2549 = vpop.trf.xlu0
      %v2550 = vpop.trf.xlu0
      %v2551 = vpop.trf.xlu0
      %v2552 = vpop.trf.xlu0
      %v2553 = vpop.trf.xlu0
      %2554 = vxpose.xlu0.b32.start [1/16] %v2225, 128
      %2555 = vxpose.xlu0.b32.cont [2/16] %v2337, 128
      %2556 = vxpose.xlu0.b32.cont [3/16] %v2449, 128
      %2557 = vxpose.xlu0.b32.cont [4/16] 0.0, 128
      %2558 = vxpose.xlu0.b32.cont [5/16] 0.0, 128
      %2559 = vxpose.xlu0.b32.cont [6/16] 0.0, 128
      %2560 = vxpose.xlu0.b32.cont [7/16] 0.0, 128
      %2561 = vxpose.xlu0.b32.cont [8/16] 0.0, 128
      %2562 = vxpose.xlu0.b32.cont [9/16] 0.0, 128
      %2563 = vxpose.xlu0.b32.cont [10/16] 0.0, 128
      %2564 = vxpose.xlu0.b32.cont [11/16] 0.0, 128
      %2565 = vxpose.xlu0.b32.cont [12/16] 0.0, 128
      %2566 = vxpose.xlu0.b32.cont [13/16] 0.0, 128
      %2567 = vxpose.xlu0.b32.cont [14/16] 0.0, 128
      %2568 = vxpose.xlu0.b32.cont [15/16] 0.0, 128
      %2569 = vxpose.xlu0.b32.end [16/16] 0.0, 128
      %v2570 = vpop.trf.xlu0
      %v2571 = vpop.trf.xlu0
      %v2572 = vpop.trf.xlu0
      %v2573 = vpop.trf.xlu0
      %v2574 = vpop.trf.xlu0
      %v2575 = vpop.trf.xlu0
      %v2576 = vpop.trf.xlu0
      %v2577 = vpop.trf.xlu0
      %v2578 = vpop.trf.xlu0
      %v2579 = vpop.trf.xlu0
      %v2580 = vpop.trf.xlu0
      %v2581 = vpop.trf.xlu0
      %v2582 = vpop.trf.xlu0
      %v2583 = vpop.trf.xlu0
      %v2584 = vpop.trf.xlu0
      %v2585 = vpop.trf.xlu0
      %2586 = vxpose.xlu0.b32.start [1/16] %v2227, 128
      %2587 = vxpose.xlu0.b32.cont [2/16] %v2339, 128
      %2588 = vxpose.xlu0.b32.cont [3/16] %v2451, 128
      %2589 = vxpose.xlu0.b32.cont [4/16] 0.0, 128
      %2590 = vxpose.xlu0.b32.cont [5/16] 0.0, 128
      %2591 = vxpose.xlu0.b32.cont [6/16] 0.0, 128
      %2592 = vxpose.xlu0.b32.cont [7/16] 0.0, 128
      %2593 = vxpose.xlu0.b32.cont [8/16] 0.0, 128
      %2594 = vxpose.xlu0.b32.cont [9/16] 0.0, 128
      %2595 = vxpose.xlu0.b32.cont [10/16] 0.0, 128
      %2596 = vxpose.xlu0.b32.cont [11/16] 0.0, 128
      %2597 = vxpose.xlu0.b32.cont [12/16] 0.0, 128
      %2598 = vxpose.xlu0.b32.cont [13/16] 0.0, 128
      %2599 = vxpose.xlu0.b32.cont [14/16] 0.0, 128
      %2600 = vxpose.xlu0.b32.cont [15/16] 0.0, 128
      %2601 = vxpose.xlu0.b32.end [16/16] 0.0, 128
      %v2602 = vpop.trf.xlu0
      %v2603 = vpop.trf.xlu0
      %v2604 = vpop.trf.xlu0
      %v2605 = vpop.trf.xlu0
      %v2606 = vpop.trf.xlu0
      %v2607 = vpop.trf.xlu0
      %v2608 = vpop.trf.xlu0
      %v2609 = vpop.trf.xlu0
      %v2610 = vpop.trf.xlu0
      %v2611 = vpop.trf.xlu0
      %v2612 = vpop.trf.xlu0
      %v2613 = vpop.trf.xlu0
      %v2614 = vpop.trf.xlu0
      %v2615 = vpop.trf.xlu0
      %v2616 = vpop.trf.xlu0
      %v2617 = vpop.trf.xlu0
      %2618 = vxpose.xlu0.b32.start [1/16] %v2229, 128
      %2619 = vxpose.xlu0.b32.cont [2/16] %v2341, 128
      %2620 = vxpose.xlu0.b32.cont [3/16] %v2453, 128
      %2621 = vxpose.xlu0.b32.cont [4/16] 0.0, 128
      %2622 = vxpose.xlu0.b32.cont [5/16] 0.0, 128
      %2623 = vxpose.xlu0.b32.cont [6/16] 0.0, 128
      %2624 = vxpose.xlu0.b32.cont [7/16] 0.0, 128
      %2625 = vxpose.xlu0.b32.cont [8/16] 0.0, 128
      %2626 = vxpose.xlu0.b32.cont [9/16] 0.0, 128
      %2627 = vxpose.xlu0.b32.cont [10/16] 0.0, 128
      %2628 = vxpose.xlu0.b32.cont [11/16] 0.0, 128
      %2629 = vxpose.xlu0.b32.cont [12/16] 0.0, 128
      %2630 = vxpose.xlu0.b32.cont [13/16] 0.0, 128
      %2631 = vxpose.xlu0.b32.cont [14/16] 0.0, 128
      %2632 = vxpose.xlu0.b32.cont [15/16] 0.0, 128
      %2633 = vxpose.xlu0.b32.end [16/16] 0.0, 128
      %v2634 = vpop.trf.xlu0
      %v2635 = vpop.trf.xlu0
      %v2636 = vpop.trf.xlu0
      %v2637 = vpop.trf.xlu0
      %v2638 = vpop.trf.xlu0
      %v2639 = vpop.trf.xlu0
      %v2640 = vpop.trf.xlu0
      %v2641 = vpop.trf.xlu0
      %v2642 = vpop.trf.xlu0
      %v2643 = vpop.trf.xlu0
      %v2644 = vpop.trf.xlu0
      %v2645 = vpop.trf.xlu0
      %v2646 = vpop.trf.xlu0
      %v2647 = vpop.trf.xlu0
      %v2648 = vpop.trf.xlu0
      %v2649 = vpop.trf.xlu0
      %2650 = vxpose.xlu0.b32.start [1/16] %v2231, 128
      %2651 = vxpose.xlu0.b32.cont [2/16] %v2343, 128
      %2652 = vxpose.xlu0.b32.cont [3/16] %v2455, 128
      %2653 = vxpose.xlu0.b32.cont [4/16] 0.0, 128
      %2654 = vxpose.xlu0.b32.cont [5/16] 0.0, 128
      %2655 = vxpose.xlu0.b32.cont [6/16] 0.0, 128
      %2656 = vxpose.xlu0.b32.cont [7/16] 0.0, 128
      %2657 = vxpose.xlu0.b32.cont [8/16] 0.0, 128
      %2658 = vxpose.xlu0.b32.cont [9/16] 0.0, 128
      %2659 = vxpose.xlu0.b32.cont [10/16] 0.0, 128
      %2660 = vxpose.xlu0.b32.cont [11/16] 0.0, 128
      %2661 = vxpose.xlu0.b32.cont [12/16] 0.0, 128
      %2662 = vxpose.xlu0.b32.cont [13/16] 0.0, 128
      %2663 = vxpose.xlu0.b32.cont [14/16] 0.0, 128
      %2664 = vxpose.xlu0.b32.cont [15/16] 0.0, 128
      %2665 = vxpose.xlu0.b32.end [16/16] 0.0, 128
      %v2666 = vpop.trf.xlu0
      %v2667 = vpop.trf.xlu0
      %v2668 = vpop.trf.xlu0
      %v2669 = vpop.trf.xlu0
      %v2670 = vpop.trf.xlu0
      %v2671 = vpop.trf.xlu0
      %v2672 = vpop.trf.xlu0
      %v2673 = vpop.trf.xlu0
      %v2674 = vpop.trf.xlu0
      %v2675 = vpop.trf.xlu0
      %v2676 = vpop.trf.xlu0
      %v2677 = vpop.trf.xlu0
      %v2678 = vpop.trf.xlu0
      %v2679 = vpop.trf.xlu0
      %v2680 = vpop.trf.xlu0
      %v2681 = vpop.trf.xlu0
      %2682 = vxpose.xlu0.b32.start [1/16] %v2233, 128
      %2683 = vxpose.xlu0.b32.cont [2/16] %v2345, 128
      %2684 = vxpose.xlu0.b32.cont [3/16] %v2457, 128
      %2685 = vxpose.xlu0.b32.cont [4/16] 0.0, 128
      %2686 = vxpose.xlu0.b32.cont [5/16] 0.0, 128
      %2687 = vxpose.xlu0.b32.cont [6/16] 0.0, 128
      %2688 = vxpose.xlu0.b32.cont [7/16] 0.0, 128
      %2689 = vxpose.xlu0.b32.cont [8/16] 0.0, 128
      %2690 = vxpose.xlu0.b32.cont [9/16] 0.0, 128
      %2691 = vxpose.xlu0.b32.cont [10/16] 0.0, 128
      %2692 = vxpose.xlu0.b32.cont [11/16] 0.0, 128
      %2693 = vxpose.xlu0.b32.cont [12/16] 0.0, 128
      %2694 = vxpose.xlu0.b32.cont [13/16] 0.0, 128
      %2695 = vxpose.xlu0.b32.cont [14/16] 0.0, 128
      %2696 = vxpose.xlu0.b32.cont [15/16] 0.0, 128
      %2697 = vxpose.xlu0.b32.end [16/16] 0.0, 128
      %v2698 = vpop.trf.xlu0
      %v2699 = vpop.trf.xlu0
      %v2700 = vpop.trf.xlu0
      %v2701 = vpop.trf.xlu0
      %v2702 = vpop.trf.xlu0
      %v2703 = vpop.trf.xlu0
      %v2704 = vpop.trf.xlu0
      %v2705 = vpop.trf.xlu0
      %v2706 = vpop.trf.xlu0
      %v2707 = vpop.trf.xlu0
      %v2708 = vpop.trf.xlu0
      %v2709 = vpop.trf.xlu0
      %v2710 = vpop.trf.xlu0
      %v2711 = vpop.trf.xlu0
      %v2712 = vpop.trf.xlu0
      %v2713 = vpop.trf.xlu0
      %v2714 = vrot.slane %v2538, 4
      %v2715 = vsel %vm1242, %v2714, %v2474
      %v2717 = vunpack.c.l.s4 1983009808
      %v2718 = vunpack.c.0.s8 %v2717
      %v2719 = vperm.slane %v2715, %v2718
      %v2720 = vrot.slane %v2570, 4
      %v2721 = vsel %vm1242, %v2720, %v2506
      %v2723 = vunpack.c.l.s4 1983009808
      %v2724 = vunpack.c.0.s8 %v2723
      %v2725 = vperm.slane %v2721, %v2724
      %v2726 = vrot.slane %v2666, 4
      %v2727 = vsel %vm1242, %v2726, %v2602
      %v2729 = vunpack.c.l.s4 1983009808
      %v2730 = vunpack.c.0.s8 %v2729
      %v2731 = vperm.slane %v2727, %v2730
      %v2732 = vrot.slane %v2698, 4
      %v2733 = vsel %vm1242, %v2732, %v2634
      %v2735 = vunpack.c.l.s4 1983009808
      %v2736 = vunpack.c.0.s8 %v2735
      %v2737 = vperm.slane %v2733, %v2736
      %v2738 = vrot.slane %v2725, 4
      %v2739 = vsel %vm1242, %v2738, %v2719
      %v2740 = vrot.slane %v2719, 4
      %v2741 = vsel %vm1242, %v2725, %v2740
      %v2743 = vunpack.c.l.s4 1934713408
      %v2744 = vunpack.c.0.s8 %v2743
      %v2745 = vperm.slane %v2739, %v2744
      %v2747 = vunpack.c.l.s4 1934713408
      %v2748 = vunpack.c.0.s8 %v2747
      %v2749 = vperm.slane %v2741, %v2748
      %v2750 = vrot.slane %v2737, 4
      %v2751 = vsel %vm1242, %v2750, %v2731
      %v2752 = vrot.slane %v2731, 4
      %v2753 = vsel %vm1242, %v2737, %v2752
      %v2755 = vunpack.c.l.s4 1934713408
      %v2756 = vunpack.c.0.s8 %v2755
      %v2757 = vperm.slane %v2751, %v2756
      %v2759 = vunpack.c.l.s4 1934713408
      %v2760 = vunpack.c.0.s8 %v2759
      %v2761 = vperm.slane %v2753, %v2760
      %v2762 = vrot.slane %v2757, 4
      %v2763 = vsel %vm1242, %v2762, %v2745
      %v2764 = vrot.slane %v2745, 4
      %v2765 = vsel %vm1242, %v2757, %v2764
      %v2766 = vrot.slane %v2761, 4
      %v2767 = vsel %vm1242, %v2766, %v2749
      %v2768 = vrot.slane %v2749, 4
      %v2769 = vsel %vm1242, %v2761, %v2768
      %v2771 = vsel %vm636, %v1347, 0
      %2773 = vmatpush.msra.mxu0 0.0
      %2774 = vmatpush.msra.mxu0 0.0
      %2775 = vmatpush.msra.mxu0 0.0
      %2776 = vmatpush.msra.mxu0 0.0
      %2777 = vmatpush.msra.mxu0 0.0
      %2778 = vmatpush.msra.mxu0 0.0
      %2779 = vmatpush.msra.mxu0 0.0
      %2780 = vmatpush.msra.mxu0 0.0
      %2781 = vmatpush.msra.mxu0 0.0
      %2782 = vmatpush.msra.mxu0 0.0
      %2783 = vmatpush.msra.mxu0 0.0
      %2784 = vmatpush.msra.mxu0 0.0
      %2785 = vmatpush.msra.mxu0 0.0
      %2786 = vmatpush.msra.mxu0 0.0
      %2787 = vmatpush.msra.mxu0 0.0
      %2788 = vmatpush.msra.mxu0 %v2763
      %2789 = vmatmul.f32.gmra.mxu0 %v2771
      %v2790 = vpop.f32.mrf.mxu0
      %v2791 = vadd.f32 %v1291, %v2790
      %2792 = vdwg.mxu0
      %v2794 = vsel %vm636, %v1349, 0
      %2796 = vmatpush.msra.mxu0 0.0
      %2797 = vmatpush.msra.mxu0 0.0
      %2798 = vmatpush.msra.mxu0 0.0
      %2799 = vmatpush.msra.mxu0 0.0
      %2800 = vmatpush.msra.mxu0 0.0
      %2801 = vmatpush.msra.mxu0 0.0
      %2802 = vmatpush.msra.mxu0 0.0
      %2803 = vmatpush.msra.mxu0 0.0
      %2804 = vmatpush.msra.mxu0 0.0
      %2805 = vmatpush.msra.mxu0 0.0
      %2806 = vmatpush.msra.mxu0 0.0
      %2807 = vmatpush.msra.mxu0 0.0
      %2808 = vmatpush.msra.mxu0 0.0
      %2809 = vmatpush.msra.mxu0 0.0
      %2810 = vmatpush.msra.mxu0 0.0
      %2811 = vmatpush.msra.mxu0 %v2765
      %2812 = vmatmul.f32.gmra.mxu0 %v2794
      %v2813 = vpop.f32.mrf.mxu0
      %v2814 = vadd.f32 %v1293, %v2813
      %2815 = vdwg.mxu0
      %v2817 = vsel %vm636, %v1351, 0
      %2819 = vmatpush.msra.mxu0 0.0
      %2820 = vmatpush.msra.mxu0 0.0
      %2821 = vmatpush.msra.mxu0 0.0
      %2822 = vmatpush.msra.mxu0 0.0
      %2823 = vmatpush.msra.mxu0 0.0
      %2824 = vmatpush.msra.mxu0 0.0
      %2825 = vmatpush.msra.mxu0 0.0
      %2826 = vmatpush.msra.mxu0 0.0
      %2827 = vmatpush.msra.mxu0 0.0
      %2828 = vmatpush.msra.mxu0 0.0
      %2829 = vmatpush.msra.mxu0 0.0
      %2830 = vmatpush.msra.mxu0 0.0
      %2831 = vmatpush.msra.mxu0 0.0
      %2832 = vmatpush.msra.mxu0 0.0
      %2833 = vmatpush.msra.mxu0 0.0
      %2834 = vmatpush.msra.mxu0 %v2767
      %2835 = vmatmul.f32.gmra.mxu0 %v2817
      %v2836 = vpop.f32.mrf.mxu0
      %v2837 = vadd.f32 %v1295, %v2836
      %2838 = vdwg.mxu0
      %v2840 = vsel %vm636, %v1353, 0
      %2842 = vmatpush.msra.mxu0 0.0
      %2843 = vmatpush.msra.mxu0 0.0
      %2844 = vmatpush.msra.mxu0 0.0
      %2845 = vmatpush.msra.mxu0 0.0
      %2846 = vmatpush.msra.mxu0 0.0
      %2847 = vmatpush.msra.mxu0 0.0
      %2848 = vmatpush.msra.mxu0 0.0
      %2849 = vmatpush.msra.mxu0 0.0
      %2850 = vmatpush.msra.mxu0 0.0
      %2851 = vmatpush.msra.mxu0 0.0
      %2852 = vmatpush.msra.mxu0 0.0
      %2853 = vmatpush.msra.mxu0 0.0
      %2854 = vmatpush.msra.mxu0 0.0
      %2855 = vmatpush.msra.mxu0 0.0
      %2856 = vmatpush.msra.mxu0 0.0
      %2857 = vmatpush.msra.mxu0 %v2769
      %2858 = vmatmul.f32.gmra.mxu0 %v2840
      %v2859 = vpop.f32.mrf.mxu0
      %v2860 = vadd.f32 %v1297, %v2859
      %2861 = vdwg.mxu0
      %vm2862 = vcmask 195584
      %v2863 = vsel %vm2862, %v2791, -inf
      %2864 = vmax.xlane.f32.xlu0 %v2863
      %v2865 = vpop.xlane.xlu0 %2864
      %v2866 = vsel %vm2862, %v2814, -inf
      %2867 = vmax.xlane.f32.xlu0 %v2866
      %v2868 = vpop.xlane.xlu0 %2867
      %v2869 = vsel %vm2862, %v2837, -inf
      %2870 = vmax.xlane.f32.xlu0 %v2869
      %v2871 = vpop.xlane.xlu0 %2870
      %v2872 = vsel %vm2862, %v2860, -inf
      %2873 = vmax.xlane.f32.xlu0 %v2872
      %v2874 = vpop.xlane.xlu0 %2873
      %v2875 = vsub.f32 %v2791, %v2865
      %v2876 = vsub.f32 %v2814, %v2868
      %v2877 = vsub.f32 %v2837, %v2871
      %v2878 = vsub.f32 %v2860, %v2874
      %v2879 = vmul.f32 %v2875, 1.442695
      %v2880 = vpow.pop %v2879
      %v2881 = vmul.f32 %v2876, 1.442695
      %v2882 = vpow.pop %v2881
      %v2883 = vmul.f32 %v2877, 1.442695
      %v2884 = vpow.pop %v2883
      %v2885 = vmul.f32 %v2878, 1.442695
      %v2886 = vpow.pop %v2885
      %v2887 = vsel %vm2862, %v2880, 0.0
      %2888 = vadd.xlane.f32.xlu0 %v2887
      %v2889 = vpop.xlane.xlu0 %2888
      %v2890 = vsel %vm2862, %v2882, 0.0
      %2891 = vadd.xlane.f32.xlu0 %v2890
      %v2892 = vpop.xlane.xlu0 %2891
      %v2893 = vsel %vm2862, %v2884, 0.0
      %2894 = vadd.xlane.f32.xlu0 %v2893
      %v2895 = vpop.xlane.xlu0 %2894
      %v2896 = vsel %vm2862, %v2886, 0.0
      %2897 = vadd.xlane.f32.xlu0 %v2896
      %v2898 = vpop.xlane.xlu0 %2897
      %v2899 = vrcp.pop %v2889
      %v2900 = vmul.f32 %v2889, %v2899
      %v2901 = vsub.f32 1.0, %v2900
      %v2902 = vmul.f32 %v2899, %v2901
      %v2903 = vadd.f32 %v2899, %v2902
      %vm2904 = vweird.f32 %v2889
      %vm2905 = vweird.f32 %v2899
      %vm2906 = vmor %vm2904, %vm2905
      %v2907 = vsel %vm2906, %v2899, %v2903
      %v2908 = vand.u32 2147483647, %v2889
      %vm2909 = vcmp.eq.f32.partialorder %v2908, 8.507059e+37
      %v2910 = vand.u32 %v2889, 2147483648
      %v2911 = vor.u32 1.1754944e-38, %v2910
      %v2912 = vsel %vm2909, %v2911, %v2907
      %v2913 = vmul.f32 %v2880, %v2912
      %v2914 = vrcp.pop %v2892
      %v2915 = vmul.f32 %v2892, %v2914
      %v2916 = vsub.f32 1.0, %v2915
      %v2917 = vmul.f32 %v2914, %v2916
      %v2918 = vadd.f32 %v2914, %v2917
      %vm2919 = vweird.f32 %v2892
      %vm2920 = vweird.f32 %v2914
      %vm2921 = vmor %vm2919, %vm2920
      %v2922 = vsel %vm2921, %v2914, %v2918
      %v2923 = vand.u32 2147483647, %v2892
      %vm2924 = vcmp.eq.f32.partialorder %v2923, 8.507059e+37
      %v2925 = vand.u32 %v2892, 2147483648
      %v2926 = vor.u32 1.1754944e-38, %v2925
      %v2927 = vsel %vm2924, %v2926, %v2922
      %v2928 = vmul.f32 %v2882, %v2927
      %v2929 = vrcp.pop %v2895
      %v2930 = vmul.f32 %v2895, %v2929
      %v2931 = vsub.f32 1.0, %v2930
      %v2932 = vmul.f32 %v2929, %v2931
      %v2933 = vadd.f32 %v2929, %v2932
      %vm2934 = vweird.f32 %v2895
      %vm2935 = vweird.f32 %v2929
      %vm2936 = vmor %vm2934, %vm2935
      %v2937 = vsel %vm2936, %v2929, %v2933
      %v2938 = vand.u32 2147483647, %v2895
      %vm2939 = vcmp.eq.f32.partialorder %v2938, 8.507059e+37
      %v2940 = vand.u32 %v2895, 2147483648
      %v2941 = vor.u32 1.1754944e-38, %v2940
      %v2942 = vsel %vm2939, %v2941, %v2937
      %v2943 = vmul.f32 %v2884, %v2942
      %v2944 = vrcp.pop %v2898
      %v2945 = vmul.f32 %v2898, %v2944
      %v2946 = vsub.f32 1.0, %v2945
      %v2947 = vmul.f32 %v2944, %v2946
      %v2948 = vadd.f32 %v2944, %v2947
      %vm2949 = vweird.f32 %v2898
      %vm2950 = vweird.f32 %v2944
      %vm2951 = vmor %vm2949, %vm2950
      %v2952 = vsel %vm2951, %v2944, %v2948
      %v2953 = vand.u32 2147483647, %v2898
      %vm2954 = vcmp.eq.f32.partialorder %v2953, 8.507059e+37
      %v2955 = vand.u32 %v2898, 2147483648
      %v2956 = vor.u32 1.1754944e-38, %v2955
      %v2957 = vsel %vm2954, %v2956, %v2952
      %v2958 = vmul.f32 %v2886, %v2957
      %2959 = vxpose.xlu0.b32.start [1/16] %v336, 128
      %2960 = vxpose.xlu0.b32.cont [2/16] 0.0, 128
      %2961 = vxpose.xlu0.b32.cont [3/16] 0.0, 128
      %2962 = vxpose.xlu0.b32.cont [4/16] 0.0, 128
      %2963 = vxpose.xlu0.b32.cont [5/16] 0.0, 128
      %2964 = vxpose.xlu0.b32.cont [6/16] 0.0, 128
      %2965 = vxpose.xlu0.b32.cont [7/16] 0.0, 128
      %2966 = vxpose.xlu0.b32.cont [8/16] 0.0, 128
      %2967 = vxpose.xlu0.b32.cont [9/16] 0.0, 128
      %2968 = vxpose.xlu0.b32.cont [10/16] 0.0, 128
      %2969 = vxpose.xlu0.b32.cont [11/16] 0.0, 128
      %2970 = vxpose.xlu0.b32.cont [12/16] 0.0, 128
      %2971 = vxpose.xlu0.b32.cont [13/16] 0.0, 128
      %2972 = vxpose.xlu0.b32.cont [14/16] 0.0, 128
      %2973 = vxpose.xlu0.b32.cont [15/16] 0.0, 128
      %2974 = vxpose.xlu0.b32.end [16/16] 0.0, 128
      %v2975 = vpop.trf.xlu0
      %v2976 = vpop.trf.xlu0
      %v2977 = vpop.trf.xlu0
      %v2978 = vpop.trf.xlu0
      %v2979 = vpop.trf.xlu0
      %v2980 = vpop.trf.xlu0
      %v2981 = vpop.trf.xlu0
      %v2982 = vpop.trf.xlu0
      %v2983 = vpop.trf.xlu0
      %v2984 = vpop.trf.xlu0
      %v2985 = vpop.trf.xlu0
      %v2986 = vpop.trf.xlu0
      %v2987 = vpop.trf.xlu0
      %v2988 = vpop.trf.xlu0
      %v2989 = vpop.trf.xlu0
      %v2990 = vpop.trf.xlu0
      %2991 = vxpose.xlu0.b32.start [1/16] %v337, 128
      %2992 = vxpose.xlu0.b32.cont [2/16] 0.0, 128
      %2993 = vxpose.xlu0.b32.cont [3/16] 0.0, 128
      %2994 = vxpose.xlu0.b32.cont [4/16] 0.0, 128
      %2995 = vxpose.xlu0.b32.cont [5/16] 0.0, 128
      %2996 = vxpose.xlu0.b32.cont [6/16] 0.0, 128
      %2997 = vxpose.xlu0.b32.cont [7/16] 0.0, 128
      %2998 = vxpose.xlu0.b32.cont [8/16] 0.0, 128
      %2999 = vxpose.xlu0.b32.cont [9/16] 0.0, 128
      %3000 = vxpose.xlu0.b32.cont [10/16] 0.0, 128
      %3001 = vxpose.xlu0.b32.cont [11/16] 0.0, 128
      %3002 = vxpose.xlu0.b32.cont [12/16] 0.0, 128
      %3003 = vxpose.xlu0.b32.cont [13/16] 0.0, 128
      %3004 = vxpose.xlu0.b32.cont [14/16] 0.0, 128
      %3005 = vxpose.xlu0.b32.cont [15/16] 0.0, 128
      %3006 = vxpose.xlu0.b32.end [16/16] 0.0, 128
      %v3007 = vpop.trf.xlu0
      %v3008 = vpop.trf.xlu0
      %v3009 = vpop.trf.xlu0
      %v3010 = vpop.trf.xlu0
      %v3011 = vpop.trf.xlu0
      %v3012 = vpop.trf.xlu0
      %v3013 = vpop.trf.xlu0
      %v3014 = vpop.trf.xlu0
      %v3015 = vpop.trf.xlu0
      %v3016 = vpop.trf.xlu0
      %v3017 = vpop.trf.xlu0
      %v3018 = vpop.trf.xlu0
      %v3019 = vpop.trf.xlu0
      %v3020 = vpop.trf.xlu0
      %v3021 = vpop.trf.xlu0
      %v3022 = vpop.trf.xlu0
      %3023 = vxpose.xlu0.b32.start [1/16] %v338, 128
      %3024 = vxpose.xlu0.b32.cont [2/16] 0.0, 128
      %3025 = vxpose.xlu0.b32.cont [3/16] 0.0, 128
      %3026 = vxpose.xlu0.b32.cont [4/16] 0.0, 128
      %3027 = vxpose.xlu0.b32.cont [5/16] 0.0, 128
      %3028 = vxpose.xlu0.b32.cont [6/16] 0.0, 128
      %3029 = vxpose.xlu0.b32.cont [7/16] 0.0, 128
      %3030 = vxpose.xlu0.b32.cont [8/16] 0.0, 128
      %3031 = vxpose.xlu0.b32.cont [9/16] 0.0, 128
      %3032 = vxpose.xlu0.b32.cont [10/16] 0.0, 128
      %3033 = vxpose.xlu0.b32.cont [11/16] 0.0, 128
      %3034 = vxpose.xlu0.b32.cont [12/16] 0.0, 128
      %3035 = vxpose.xlu0.b32.cont [13/16] 0.0, 128
      %3036 = vxpose.xlu0.b32.cont [14/16] 0.0, 128
      %3037 = vxpose.xlu0.b32.cont [15/16] 0.0, 128
      %3038 = vxpose.xlu0.b32.end [16/16] 0.0, 128
      %v3039 = vpop.trf.xlu0
      %v3040 = vpop.trf.xlu0
      %v3041 = vpop.trf.xlu0
      %v3042 = vpop.trf.xlu0
      %v3043 = vpop.trf.xlu0
      %v3044 = vpop.trf.xlu0
      %v3045 = vpop.trf.xlu0
      %v3046 = vpop.trf.xlu0
      %v3047 = vpop.trf.xlu0
      %v3048 = vpop.trf.xlu0
      %v3049 = vpop.trf.xlu0
      %v3050 = vpop.trf.xlu0
      %v3051 = vpop.trf.xlu0
      %v3052 = vpop.trf.xlu0
      %v3053 = vpop.trf.xlu0
      %v3054 = vpop.trf.xlu0
      %3055 = vxpose.xlu0.b32.start [1/16] %v339, 128
      %3056 = vxpose.xlu0.b32.cont [2/16] 0.0, 128
      %3057 = vxpose.xlu0.b32.cont [3/16] 0.0, 128
      %3058 = vxpose.xlu0.b32.cont [4/16] 0.0, 128
      %3059 = vxpose.xlu0.b32.cont [5/16] 0.0, 128
      %3060 = vxpose.xlu0.b32.cont [6/16] 0.0, 128
      %3061 = vxpose.xlu0.b32.cont [7/16] 0.0, 128
      %3062 = vxpose.xlu0.b32.cont [8/16] 0.0, 128
      %3063 = vxpose.xlu0.b32.cont [9/16] 0.0, 128
      %3064 = vxpose.xlu0.b32.cont [10/16] 0.0, 128
      %3065 = vxpose.xlu0.b32.cont [11/16] 0.0, 128
      %3066 = vxpose.xlu0.b32.cont [12/16] 0.0, 128
      %3067 = vxpose.xlu0.b32.cont [13/16] 0.0, 128
      %3068 = vxpose.xlu0.b32.cont [14/16] 0.0, 128
      %3069 = vxpose.xlu0.b32.cont [15/16] 0.0, 128
      %3070 = vxpose.xlu0.b32.end [16/16] 0.0, 128
      %v3071 = vpop.trf.xlu0
      %v3072 = vpop.trf.xlu0
      %v3073 = vpop.trf.xlu0
      %v3074 = vpop.trf.xlu0
      %v3075 = vpop.trf.xlu0
      %v3076 = vpop.trf.xlu0
      %v3077 = vpop.trf.xlu0
      %v3078 = vpop.trf.xlu0
      %v3079 = vpop.trf.xlu0
      %v3080 = vpop.trf.xlu0
      %v3081 = vpop.trf.xlu0
      %v3082 = vpop.trf.xlu0
      %v3083 = vpop.trf.xlu0
      %v3084 = vpop.trf.xlu0
      %v3085 = vpop.trf.xlu0
      %v3086 = vpop.trf.xlu0
      %3087 = vxpose.xlu0.b32.start [1/16] %v340, 128
      %3088 = vxpose.xlu0.b32.cont [2/16] 0.0, 128
      %3089 = vxpose.xlu0.b32.cont [3/16] 0.0, 128
      %3090 = vxpose.xlu0.b32.cont [4/16] 0.0, 128
      %3091 = vxpose.xlu0.b32.cont [5/16] 0.0, 128
      %3092 = vxpose.xlu0.b32.cont [6/16] 0.0, 128
      %3093 = vxpose.xlu0.b32.cont [7/16] 0.0, 128
      %3094 = vxpose.xlu0.b32.cont [8/16] 0.0, 128
      %3095 = vxpose.xlu0.b32.cont [9/16] 0.0, 128
      %3096 = vxpose.xlu0.b32.cont [10/16] 0.0, 128
      %3097 = vxpose.xlu0.b32.cont [11/16] 0.0, 128
      %3098 = vxpose.xlu0.b32.cont [12/16] 0.0, 128
      %3099 = vxpose.xlu0.b32.cont [13/16] 0.0, 128
      %3100 = vxpose.xlu0.b32.cont [14/16] 0.0, 128
      %3101 = vxpose.xlu0.b32.cont [15/16] 0.0, 128
      %3102 = vxpose.xlu0.b32.end [16/16] 0.0, 128
      %v3103 = vpop.trf.xlu0
      %v3104 = vpop.trf.xlu0
      %v3105 = vpop.trf.xlu0
      %v3106 = vpop.trf.xlu0
      %v3107 = vpop.trf.xlu0
      %v3108 = vpop.trf.xlu0
      %v3109 = vpop.trf.xlu0
      %v3110 = vpop.trf.xlu0
      %v3111 = vpop.trf.xlu0
      %v3112 = vpop.trf.xlu0
      %v3113 = vpop.trf.xlu0
      %v3114 = vpop.trf.xlu0
      %v3115 = vpop.trf.xlu0
      %v3116 = vpop.trf.xlu0
      %v3117 = vpop.trf.xlu0
      %v3118 = vpop.trf.xlu0
      %3119 = vxpose.xlu0.b32.start [1/16] %v341, 128
      %3120 = vxpose.xlu0.b32.cont [2/16] 0.0, 128
      %3121 = vxpose.xlu0.b32.cont [3/16] 0.0, 128
      %3122 = vxpose.xlu0.b32.cont [4/16] 0.0, 128
      %3123 = vxpose.xlu0.b32.cont [5/16] 0.0, 128
      %3124 = vxpose.xlu0.b32.cont [6/16] 0.0, 128
      %3125 = vxpose.xlu0.b32.cont [7/16] 0.0, 128
      %3126 = vxpose.xlu0.b32.cont [8/16] 0.0, 128
      %3127 = vxpose.xlu0.b32.cont [9/16] 0.0, 128
      %3128 = vxpose.xlu0.b32.cont [10/16] 0.0, 128
      %3129 = vxpose.xlu0.b32.cont [11/16] 0.0, 128
      %3130 = vxpose.xlu0.b32.cont [12/16] 0.0, 128
      %3131 = vxpose.xlu0.b32.cont [13/16] 0.0, 128
      %3132 = vxpose.xlu0.b32.cont [14/16] 0.0, 128
      %3133 = vxpose.xlu0.b32.cont [15/16] 0.0, 128
      %3134 = vxpose.xlu0.b32.end [16/16] 0.0, 128
      %v3135 = vpop.trf.xlu0
      %v3136 = vpop.trf.xlu0
      %v3137 = vpop.trf.xlu0
      %v3138 = vpop.trf.xlu0
      %v3139 = vpop.trf.xlu0
      %v3140 = vpop.trf.xlu0
      %v3141 = vpop.trf.xlu0
      %v3142 = vpop.trf.xlu0
      %v3143 = vpop.trf.xlu0
      %v3144 = vpop.trf.xlu0
      %v3145 = vpop.trf.xlu0
      %v3146 = vpop.trf.xlu0
      %v3147 = vpop.trf.xlu0
      %v3148 = vpop.trf.xlu0
      %v3149 = vpop.trf.xlu0
      %v3150 = vpop.trf.xlu0
      %3151 = vxpose.xlu0.b32.start [1/16] %v342, 128
      %3152 = vxpose.xlu0.b32.cont [2/16] 0.0, 128
      %3153 = vxpose.xlu0.b32.cont [3/16] 0.0, 128
      %3154 = vxpose.xlu0.b32.cont [4/16] 0.0, 128
      %3155 = vxpose.xlu0.b32.cont [5/16] 0.0, 128
      %3156 = vxpose.xlu0.b32.cont [6/16] 0.0, 128
      %3157 = vxpose.xlu0.b32.cont [7/16] 0.0, 128
      %3158 = vxpose.xlu0.b32.cont [8/16] 0.0, 128
      %3159 = vxpose.xlu0.b32.cont [9/16] 0.0, 128
      %3160 = vxpose.xlu0.b32.cont [10/16] 0.0, 128
      %3161 = vxpose.xlu0.b32.cont [11/16] 0.0, 128
      %3162 = vxpose.xlu0.b32.cont [12/16] 0.0, 128
      %3163 = vxpose.xlu0.b32.cont [13/16] 0.0, 128
      %3164 = vxpose.xlu0.b32.cont [14/16] 0.0, 128
      %3165 = vxpose.xlu0.b32.cont [15/16] 0.0, 128
      %3166 = vxpose.xlu0.b32.end [16/16] 0.0, 128
      %v3167 = vpop.trf.xlu0
      %v3168 = vpop.trf.xlu0
      %v3169 = vpop.trf.xlu0
      %v3170 = vpop.trf.xlu0
      %v3171 = vpop.trf.xlu0
      %v3172 = vpop.trf.xlu0
      %v3173 = vpop.trf.xlu0
      %v3174 = vpop.trf.xlu0
      %v3175 = vpop.trf.xlu0
      %v3176 = vpop.trf.xlu0
      %v3177 = vpop.trf.xlu0
      %v3178 = vpop.trf.xlu0
      %v3179 = vpop.trf.xlu0
      %v3180 = vpop.trf.xlu0
      %v3181 = vpop.trf.xlu0
      %v3182 = vpop.trf.xlu0
      %3183 = vxpose.xlu0.b32.start [1/16] %v343, 128
      %3184 = vxpose.xlu0.b32.cont [2/16] 0.0, 128
      %3185 = vxpose.xlu0.b32.cont [3/16] 0.0, 128
      %3186 = vxpose.xlu0.b32.cont [4/16] 0.0, 128
      %3187 = vxpose.xlu0.b32.cont [5/16] 0.0, 128
      %3188 = vxpose.xlu0.b32.cont [6/16] 0.0, 128
      %3189 = vxpose.xlu0.b32.cont [7/16] 0.0, 128
      %3190 = vxpose.xlu0.b32.cont [8/16] 0.0, 128
      %3191 = vxpose.xlu0.b32.cont [9/16] 0.0, 128
      %3192 = vxpose.xlu0.b32.cont [10/16] 0.0, 128
      %3193 = vxpose.xlu0.b32.cont [11/16] 0.0, 128
      %3194 = vxpose.xlu0.b32.cont [12/16] 0.0, 128
      %3195 = vxpose.xlu0.b32.cont [13/16] 0.0, 128
      %3196 = vxpose.xlu0.b32.cont [14/16] 0.0, 128
      %3197 = vxpose.xlu0.b32.cont [15/16] 0.0, 128
      %3198 = vxpose.xlu0.b32.end [16/16] 0.0, 128
      %v3199 = vpop.trf.xlu0
      %v3200 = vpop.trf.xlu0
      %v3201 = vpop.trf.xlu0
      %v3202 = vpop.trf.xlu0
      %v3203 = vpop.trf.xlu0
      %v3204 = vpop.trf.xlu0
      %v3205 = vpop.trf.xlu0
      %v3206 = vpop.trf.xlu0
      %v3207 = vpop.trf.xlu0
      %v3208 = vpop.trf.xlu0
      %v3209 = vpop.trf.xlu0
      %v3210 = vpop.trf.xlu0
      %v3211 = vpop.trf.xlu0
      %v3212 = vpop.trf.xlu0
      %v3213 = vpop.trf.xlu0
      %v3214 = vpop.trf.xlu0
      %3215 = vxpose.xlu0.b32.start [1/16] %v344, 128
      %3216 = vxpose.xlu0.b32.cont [2/16] 0.0, 128
      %3217 = vxpose.xlu0.b32.cont [3/16] 0.0, 128
      %3218 = vxpose.xlu0.b32.cont [4/16] 0.0, 128
      %3219 = vxpose.xlu0.b32.cont [5/16] 0.0, 128
      %3220 = vxpose.xlu0.b32.cont [6/16] 0.0, 128
      %3221 = vxpose.xlu0.b32.cont [7/16] 0.0, 128
      %3222 = vxpose.xlu0.b32.cont [8/16] 0.0, 128
      %3223 = vxpose.xlu0.b32.cont [9/16] 0.0, 128
      %3224 = vxpose.xlu0.b32.cont [10/16] 0.0, 128
      %3225 = vxpose.xlu0.b32.cont [11/16] 0.0, 128
      %3226 = vxpose.xlu0.b32.cont [12/16] 0.0, 128
      %3227 = vxpose.xlu0.b32.cont [13/16] 0.0, 128
      %3228 = vxpose.xlu0.b32.cont [14/16] 0.0, 128
      %3229 = vxpose.xlu0.b32.cont [15/16] 0.0, 128
      %3230 = vxpose.xlu0.b32.end [16/16] 0.0, 128
      %v3231 = vpop.trf.xlu0
      %v3232 = vpop.trf.xlu0
      %v3233 = vpop.trf.xlu0
      %v3234 = vpop.trf.xlu0
      %v3235 = vpop.trf.xlu0
      %v3236 = vpop.trf.xlu0
      %v3237 = vpop.trf.xlu0
      %v3238 = vpop.trf.xlu0
      %v3239 = vpop.trf.xlu0
      %v3240 = vpop.trf.xlu0
      %v3241 = vpop.trf.xlu0
      %v3242 = vpop.trf.xlu0
      %v3243 = vpop.trf.xlu0
      %v3244 = vpop.trf.xlu0
      %v3245 = vpop.trf.xlu0
      %v3246 = vpop.trf.xlu0
      %3247 = vxpose.xlu0.b32.start [1/16] %v345, 128
      %3248 = vxpose.xlu0.b32.cont [2/16] 0.0, 128
      %3249 = vxpose.xlu0.b32.cont [3/16] 0.0, 128
      %3250 = vxpose.xlu0.b32.cont [4/16] 0.0, 128
      %3251 = vxpose.xlu0.b32.cont [5/16] 0.0, 128
      %3252 = vxpose.xlu0.b32.cont [6/16] 0.0, 128
      %3253 = vxpose.xlu0.b32.cont [7/16] 0.0, 128
      %3254 = vxpose.xlu0.b32.cont [8/16] 0.0, 128
      %3255 = vxpose.xlu0.b32.cont [9/16] 0.0, 128
      %3256 = vxpose.xlu0.b32.cont [10/16] 0.0, 128
      %3257 = vxpose.xlu0.b32.cont [11/16] 0.0, 128
      %3258 = vxpose.xlu0.b32.cont [12/16] 0.0, 128
      %3259 = vxpose.xlu0.b32.cont [13/16] 0.0, 128
      %3260 = vxpose.xlu0.b32.cont [14/16] 0.0, 128
      %3261 = vxpose.xlu0.b32.cont [15/16] 0.0, 128
      %3262 = vxpose.xlu0.b32.end [16/16] 0.0, 128
      %v3263 = vpop.trf.xlu0
      %v3264 = vpop.trf.xlu0
      %v3265 = vpop.trf.xlu0
      %v3266 = vpop.trf.xlu0
      %v3267 = vpop.trf.xlu0
      %v3268 = vpop.trf.xlu0
      %v3269 = vpop.trf.xlu0
      %v3270 = vpop.trf.xlu0
      %v3271 = vpop.trf.xlu0
      %v3272 = vpop.trf.xlu0
      %v3273 = vpop.trf.xlu0
      %v3274 = vpop.trf.xlu0
      %v3275 = vpop.trf.xlu0
      %v3276 = vpop.trf.xlu0
      %v3277 = vpop.trf.xlu0
      %v3278 = vpop.trf.xlu0
      %3279 = vxpose.xlu0.b32.start [1/16] %v346, 128
      %3280 = vxpose.xlu0.b32.cont [2/16] 0.0, 128
      %3281 = vxpose.xlu0.b32.cont [3/16] 0.0, 128
      %3282 = vxpose.xlu0.b32.cont [4/16] 0.0, 128
      %3283 = vxpose.xlu0.b32.cont [5/16] 0.0, 128
      %3284 = vxpose.xlu0.b32.cont [6/16] 0.0, 128
      %3285 = vxpose.xlu0.b32.cont [7/16] 0.0, 128
      %3286 = vxpose.xlu0.b32.cont [8/16] 0.0, 128
      %3287 = vxpose.xlu0.b32.cont [9/16] 0.0, 128
      %3288 = vxpose.xlu0.b32.cont [10/16] 0.0, 128
      %3289 = vxpose.xlu0.b32.cont [11/16] 0.0, 128
      %3290 = vxpose.xlu0.b32.cont [12/16] 0.0, 128
      %3291 = vxpose.xlu0.b32.cont [13/16] 0.0, 128
      %3292 = vxpose.xlu0.b32.cont [14/16] 0.0, 128
      %3293 = vxpose.xlu0.b32.cont [15/16] 0.0, 128
      %3294 = vxpose.xlu0.b32.end [16/16] 0.0, 128
      %v3295 = vpop.trf.xlu0
      %v3296 = vpop.trf.xlu0
      %v3297 = vpop.trf.xlu0
      %v3298 = vpop.trf.xlu0
      %v3299 = vpop.trf.xlu0
      %v3300 = vpop.trf.xlu0
      %v3301 = vpop.trf.xlu0
      %v3302 = vpop.trf.xlu0
      %v3303 = vpop.trf.xlu0
      %v3304 = vpop.trf.xlu0
      %v3305 = vpop.trf.xlu0
      %v3306 = vpop.trf.xlu0
      %v3307 = vpop.trf.xlu0
      %v3308 = vpop.trf.xlu0
      %v3309 = vpop.trf.xlu0
      %v3310 = vpop.trf.xlu0
      %3311 = vxpose.xlu0.b32.start [1/16] %v347, 128
      %3312 = vxpose.xlu0.b32.cont [2/16] 0.0, 128
      %3313 = vxpose.xlu0.b32.cont [3/16] 0.0, 128
      %3314 = vxpose.xlu0.b32.cont [4/16] 0.0, 128
      %3315 = vxpose.xlu0.b32.cont [5/16] 0.0, 128
      %3316 = vxpose.xlu0.b32.cont [6/16] 0.0, 128
      %3317 = vxpose.xlu0.b32.cont [7/16] 0.0, 128
      %3318 = vxpose.xlu0.b32.cont [8/16] 0.0, 128
      %3319 = vxpose.xlu0.b32.cont [9/16] 0.0, 128
      %3320 = vxpose.xlu0.b32.cont [10/16] 0.0, 128
      %3321 = vxpose.xlu0.b32.cont [11/16] 0.0, 128
      %3322 = vxpose.xlu0.b32.cont [12/16] 0.0, 128
      %3323 = vxpose.xlu0.b32.cont [13/16] 0.0, 128
      %3324 = vxpose.xlu0.b32.cont [14/16] 0.0, 128
      %3325 = vxpose.xlu0.b32.cont [15/16] 0.0, 128
      %3326 = vxpose.xlu0.b32.end [16/16] 0.0, 128
      %v3327 = vpop.trf.xlu0
      %v3328 = vpop.trf.xlu0
      %v3329 = vpop.trf.xlu0
      %v3330 = vpop.trf.xlu0
      %v3331 = vpop.trf.xlu0
      %v3332 = vpop.trf.xlu0
      %v3333 = vpop.trf.xlu0
      %v3334 = vpop.trf.xlu0
      %v3335 = vpop.trf.xlu0
      %v3336 = vpop.trf.xlu0
      %v3337 = vpop.trf.xlu0
      %v3338 = vpop.trf.xlu0
      %v3339 = vpop.trf.xlu0
      %v3340 = vpop.trf.xlu0
      %v3341 = vpop.trf.xlu0
      %v3342 = vpop.trf.xlu0
      %3343 = vxpose.xlu0.b32.start [1/16] %v348, 128
      %3344 = vxpose.xlu0.b32.cont [2/16] 0.0, 128
      %3345 = vxpose.xlu0.b32.cont [3/16] 0.0, 128
      %3346 = vxpose.xlu0.b32.cont [4/16] 0.0, 128
      %3347 = vxpose.xlu0.b32.cont [5/16] 0.0, 128
      %3348 = vxpose.xlu0.b32.cont [6/16] 0.0, 128
      %3349 = vxpose.xlu0.b32.cont [7/16] 0.0, 128
      %3350 = vxpose.xlu0.b32.cont [8/16] 0.0, 128
      %3351 = vxpose.xlu0.b32.cont [9/16] 0.0, 128
      %3352 = vxpose.xlu0.b32.cont [10/16] 0.0, 128
      %3353 = vxpose.xlu0.b32.cont [11/16] 0.0, 128
      %3354 = vxpose.xlu0.b32.cont [12/16] 0.0, 128
      %3355 = vxpose.xlu0.b32.cont [13/16] 0.0, 128
      %3356 = vxpose.xlu0.b32.cont [14/16] 0.0, 128
      %3357 = vxpose.xlu0.b32.cont [15/16] 0.0, 128
      %3358 = vxpose.xlu0.b32.end [16/16] 0.0, 128
      %v3359 = vpop.trf.xlu0
      %v3360 = vpop.trf.xlu0
      %v3361 = vpop.trf.xlu0
      %v3362 = vpop.trf.xlu0
      %v3363 = vpop.trf.xlu0
      %v3364 = vpop.trf.xlu0
      %v3365 = vpop.trf.xlu0
      %v3366 = vpop.trf.xlu0
      %v3367 = vpop.trf.xlu0
      %v3368 = vpop.trf.xlu0
      %v3369 = vpop.trf.xlu0
      %v3370 = vpop.trf.xlu0
      %v3371 = vpop.trf.xlu0
      %v3372 = vpop.trf.xlu0
      %v3373 = vpop.trf.xlu0
      %v3374 = vpop.trf.xlu0
      %3375 = vxpose.xlu0.b32.start [1/16] %v349, 128
      %3376 = vxpose.xlu0.b32.cont [2/16] 0.0, 128
      %3377 = vxpose.xlu0.b32.cont [3/16] 0.0, 128
      %3378 = vxpose.xlu0.b32.cont [4/16] 0.0, 128
      %3379 = vxpose.xlu0.b32.cont [5/16] 0.0, 128
      %3380 = vxpose.xlu0.b32.cont [6/16] 0.0, 128
      %3381 = vxpose.xlu0.b32.cont [7/16] 0.0, 128
      %3382 = vxpose.xlu0.b32.cont [8/16] 0.0, 128
      %3383 = vxpose.xlu0.b32.cont [9/16] 0.0, 128
      %3384 = vxpose.xlu0.b32.cont [10/16] 0.0, 128
      %3385 = vxpose.xlu0.b32.cont [11/16] 0.0, 128
      %3386 = vxpose.xlu0.b32.cont [12/16] 0.0, 128
      %3387 = vxpose.xlu0.b32.cont [13/16] 0.0, 128
      %3388 = vxpose.xlu0.b32.cont [14/16] 0.0, 128
      %3389 = vxpose.xlu0.b32.cont [15/16] 0.0, 128
      %3390 = vxpose.xlu0.b32.end [16/16] 0.0, 128
      %v3391 = vpop.trf.xlu0
      %v3392 = vpop.trf.xlu0
      %v3393 = vpop.trf.xlu0
      %v3394 = vpop.trf.xlu0
      %v3395 = vpop.trf.xlu0
      %v3396 = vpop.trf.xlu0
      %v3397 = vpop.trf.xlu0
      %v3398 = vpop.trf.xlu0
      %v3399 = vpop.trf.xlu0
      %v3400 = vpop.trf.xlu0
      %v3401 = vpop.trf.xlu0
      %v3402 = vpop.trf.xlu0
      %v3403 = vpop.trf.xlu0
      %v3404 = vpop.trf.xlu0
      %v3405 = vpop.trf.xlu0
      %v3406 = vpop.trf.xlu0
      %3407 = vxpose.xlu0.b32.start [1/16] %v350, 128
      %3408 = vxpose.xlu0.b32.cont [2/16] 0.0, 128
      %3409 = vxpose.xlu0.b32.cont [3/16] 0.0, 128
      %3410 = vxpose.xlu0.b32.cont [4/16] 0.0, 128
      %3411 = vxpose.xlu0.b32.cont [5/16] 0.0, 128
      %3412 = vxpose.xlu0.b32.cont [6/16] 0.0, 128
      %3413 = vxpose.xlu0.b32.cont [7/16] 0.0, 128
      %3414 = vxpose.xlu0.b32.cont [8/16] 0.0, 128
      %3415 = vxpose.xlu0.b32.cont [9/16] 0.0, 128
      %3416 = vxpose.xlu0.b32.cont [10/16] 0.0, 128
      %3417 = vxpose.xlu0.b32.cont [11/16] 0.0, 128
      %3418 = vxpose.xlu0.b32.cont [12/16] 0.0, 128
      %3419 = vxpose.xlu0.b32.cont [13/16] 0.0, 128
      %3420 = vxpose.xlu0.b32.cont [14/16] 0.0, 128
      %3421 = vxpose.xlu0.b32.cont [15/16] 0.0, 128
      %3422 = vxpose.xlu0.b32.end [16/16] 0.0, 128
      %v3423 = vpop.trf.xlu0
      %v3424 = vpop.trf.xlu0
      %v3425 = vpop.trf.xlu0
      %v3426 = vpop.trf.xlu0
      %v3427 = vpop.trf.xlu0
      %v3428 = vpop.trf.xlu0
      %v3429 = vpop.trf.xlu0
      %v3430 = vpop.trf.xlu0
      %v3431 = vpop.trf.xlu0
      %v3432 = vpop.trf.xlu0
      %v3433 = vpop.trf.xlu0
      %v3434 = vpop.trf.xlu0
      %v3435 = vpop.trf.xlu0
      %v3436 = vpop.trf.xlu0
      %v3437 = vpop.trf.xlu0
      %v3438 = vpop.trf.xlu0
      %3439 = vxpose.xlu0.b32.start [1/16] %v351, 128
      %3440 = vxpose.xlu0.b32.cont [2/16] 0.0, 128
      %3441 = vxpose.xlu0.b32.cont [3/16] 0.0, 128
      %3442 = vxpose.xlu0.b32.cont [4/16] 0.0, 128
      %3443 = vxpose.xlu0.b32.cont [5/16] 0.0, 128
      %3444 = vxpose.xlu0.b32.cont [6/16] 0.0, 128
      %3445 = vxpose.xlu0.b32.cont [7/16] 0.0, 128
      %3446 = vxpose.xlu0.b32.cont [8/16] 0.0, 128
      %3447 = vxpose.xlu0.b32.cont [9/16] 0.0, 128
      %3448 = vxpose.xlu0.b32.cont [10/16] 0.0, 128
      %3449 = vxpose.xlu0.b32.cont [11/16] 0.0, 128
      %3450 = vxpose.xlu0.b32.cont [12/16] 0.0, 128
      %3451 = vxpose.xlu0.b32.cont [13/16] 0.0, 128
      %3452 = vxpose.xlu0.b32.cont [14/16] 0.0, 128
      %3453 = vxpose.xlu0.b32.cont [15/16] 0.0, 128
      %3454 = vxpose.xlu0.b32.end [16/16] 0.0, 128
      %v3455 = vpop.trf.xlu0
      %v3456 = vpop.trf.xlu0
      %v3457 = vpop.trf.xlu0
      %v3458 = vpop.trf.xlu0
      %v3459 = vpop.trf.xlu0
      %v3460 = vpop.trf.xlu0
      %v3461 = vpop.trf.xlu0
      %v3462 = vpop.trf.xlu0
      %v3463 = vpop.trf.xlu0
      %v3464 = vpop.trf.xlu0
      %v3465 = vpop.trf.xlu0
      %v3466 = vpop.trf.xlu0
      %v3467 = vpop.trf.xlu0
      %v3468 = vpop.trf.xlu0
      %v3469 = vpop.trf.xlu0
      %v3470 = vpop.trf.xlu0
      %3471 = vxpose.xlu0.b32.start [1/16] %v352, 128
      %3472 = vxpose.xlu0.b32.cont [2/16] 0.0, 128
      %3473 = vxpose.xlu0.b32.cont [3/16] 0.0, 128
      %3474 = vxpose.xlu0.b32.cont [4/16] 0.0, 128
      %3475 = vxpose.xlu0.b32.cont [5/16] 0.0, 128
      %3476 = vxpose.xlu0.b32.cont [6/16] 0.0, 128
      %3477 = vxpose.xlu0.b32.cont [7/16] 0.0, 128
      %3478 = vxpose.xlu0.b32.cont [8/16] 0.0, 128
      %3479 = vxpose.xlu0.b32.cont [9/16] 0.0, 128
      %3480 = vxpose.xlu0.b32.cont [10/16] 0.0, 128
      %3481 = vxpose.xlu0.b32.cont [11/16] 0.0, 128
      %3482 = vxpose.xlu0.b32.cont [12/16] 0.0, 128
      %3483 = vxpose.xlu0.b32.cont [13/16] 0.0, 128
      %3484 = vxpose.xlu0.b32.cont [14/16] 0.0, 128
      %3485 = vxpose.xlu0.b32.cont [15/16] 0.0, 128
      %3486 = vxpose.xlu0.b32.end [16/16] 0.0, 128
      %v3487 = vpop.trf.xlu0
      %v3488 = vpop.trf.xlu0
      %v3489 = vpop.trf.xlu0
      %v3490 = vpop.trf.xlu0
      %v3491 = vpop.trf.xlu0
      %v3492 = vpop.trf.xlu0
      %v3493 = vpop.trf.xlu0
      %v3494 = vpop.trf.xlu0
      %v3495 = vpop.trf.xlu0
      %v3496 = vpop.trf.xlu0
      %v3497 = vpop.trf.xlu0
      %v3498 = vpop.trf.xlu0
      %v3499 = vpop.trf.xlu0
      %v3500 = vpop.trf.xlu0
      %v3501 = vpop.trf.xlu0
      %v3502 = vpop.trf.xlu0
      %3503 = vxpose.xlu0.b32.start [1/16] %v353, 128
      %3504 = vxpose.xlu0.b32.cont [2/16] 0.0, 128
      %3505 = vxpose.xlu0.b32.cont [3/16] 0.0, 128
      %3506 = vxpose.xlu0.b32.cont [4/16] 0.0, 128
      %3507 = vxpose.xlu0.b32.cont [5/16] 0.0, 128
      %3508 = vxpose.xlu0.b32.cont [6/16] 0.0, 128
      %3509 = vxpose.xlu0.b32.cont [7/16] 0.0, 128
      %3510 = vxpose.xlu0.b32.cont [8/16] 0.0, 128
      %3511 = vxpose.xlu0.b32.cont [9/16] 0.0, 128
      %3512 = vxpose.xlu0.b32.cont [10/16] 0.0, 128
      %3513 = vxpose.xlu0.b32.cont [11/16] 0.0, 128
      %3514 = vxpose.xlu0.b32.cont [12/16] 0.0, 128
      %3515 = vxpose.xlu0.b32.cont [13/16] 0.0, 128
      %3516 = vxpose.xlu0.b32.cont [14/16] 0.0, 128
      %3517 = vxpose.xlu0.b32.cont [15/16] 0.0, 128
      %3518 = vxpose.xlu0.b32.end [16/16] 0.0, 128
      %v3519 = vpop.trf.xlu0
      %v3520 = vpop.trf.xlu0
      %v3521 = vpop.trf.xlu0
      %v3522 = vpop.trf.xlu0
      %v3523 = vpop.trf.xlu0
      %v3524 = vpop.trf.xlu0
      %v3525 = vpop.trf.xlu0
      %v3526 = vpop.trf.xlu0
      %v3527 = vpop.trf.xlu0
      %v3528 = vpop.trf.xlu0
      %v3529 = vpop.trf.xlu0
      %v3530 = vpop.trf.xlu0
      %v3531 = vpop.trf.xlu0
      %v3532 = vpop.trf.xlu0
      %v3533 = vpop.trf.xlu0
      %v3534 = vpop.trf.xlu0
      %3535 = vxpose.xlu0.b32.start [1/16] %v354, 128
      %3536 = vxpose.xlu0.b32.cont [2/16] 0.0, 128
      %3537 = vxpose.xlu0.b32.cont [3/16] 0.0, 128
      %3538 = vxpose.xlu0.b32.cont [4/16] 0.0, 128
      %3539 = vxpose.xlu0.b32.cont [5/16] 0.0, 128
      %3540 = vxpose.xlu0.b32.cont [6/16] 0.0, 128
      %3541 = vxpose.xlu0.b32.cont [7/16] 0.0, 128
      %3542 = vxpose.xlu0.b32.cont [8/16] 0.0, 128
      %3543 = vxpose.xlu0.b32.cont [9/16] 0.0, 128
      %3544 = vxpose.xlu0.b32.cont [10/16] 0.0, 128
      %3545 = vxpose.xlu0.b32.cont [11/16] 0.0, 128
      %3546 = vxpose.xlu0.b32.cont [12/16] 0.0, 128
      %3547 = vxpose.xlu0.b32.cont [13/16] 0.0, 128
      %3548 = vxpose.xlu0.b32.cont [14/16] 0.0, 128
      %3549 = vxpose.xlu0.b32.cont [15/16] 0.0, 128
      %3550 = vxpose.xlu0.b32.end [16/16] 0.0, 128
      %v3551 = vpop.trf.xlu0
      %v3552 = vpop.trf.xlu0
      %v3553 = vpop.trf.xlu0
      %v3554 = vpop.trf.xlu0
      %v3555 = vpop.trf.xlu0
      %v3556 = vpop.trf.xlu0
      %v3557 = vpop.trf.xlu0
      %v3558 = vpop.trf.xlu0
      %v3559 = vpop.trf.xlu0
      %v3560 = vpop.trf.xlu0
      %v3561 = vpop.trf.xlu0
      %v3562 = vpop.trf.xlu0
      %v3563 = vpop.trf.xlu0
      %v3564 = vpop.trf.xlu0
      %v3565 = vpop.trf.xlu0
      %v3566 = vpop.trf.xlu0
      %3567 = vxpose.xlu0.b32.start [1/16] %v355, 128
      %3568 = vxpose.xlu0.b32.cont [2/16] 0.0, 128
      %3569 = vxpose.xlu0.b32.cont [3/16] 0.0, 128
      %3570 = vxpose.xlu0.b32.cont [4/16] 0.0, 128
      %3571 = vxpose.xlu0.b32.cont [5/16] 0.0, 128
      %3572 = vxpose.xlu0.b32.cont [6/16] 0.0, 128
      %3573 = vxpose.xlu0.b32.cont [7/16] 0.0, 128
      %3574 = vxpose.xlu0.b32.cont [8/16] 0.0, 128
      %3575 = vxpose.xlu0.b32.cont [9/16] 0.0, 128
      %3576 = vxpose.xlu0.b32.cont [10/16] 0.0, 128
      %3577 = vxpose.xlu0.b32.cont [11/16] 0.0, 128
      %3578 = vxpose.xlu0.b32.cont [12/16] 0.0, 128
      %3579 = vxpose.xlu0.b32.cont [13/16] 0.0, 128
      %3580 = vxpose.xlu0.b32.cont [14/16] 0.0, 128
      %3581 = vxpose.xlu0.b32.cont [15/16] 0.0, 128
      %3582 = vxpose.xlu0.b32.end [16/16] 0.0, 128
      %v3583 = vpop.trf.xlu0
      %v3584 = vpop.trf.xlu0
      %v3585 = vpop.trf.xlu0
      %v3586 = vpop.trf.xlu0
      %v3587 = vpop.trf.xlu0
      %v3588 = vpop.trf.xlu0
      %v3589 = vpop.trf.xlu0
      %v3590 = vpop.trf.xlu0
      %v3591 = vpop.trf.xlu0
      %v3592 = vpop.trf.xlu0
      %v3593 = vpop.trf.xlu0
      %v3594 = vpop.trf.xlu0
      %v3595 = vpop.trf.xlu0
      %v3596 = vpop.trf.xlu0
      %v3597 = vpop.trf.xlu0
      %v3598 = vpop.trf.xlu0
      %3599 = vxpose.xlu0.b32.start [1/16] %v356, 128
      %3600 = vxpose.xlu0.b32.cont [2/16] 0.0, 128
      %3601 = vxpose.xlu0.b32.cont [3/16] 0.0, 128
      %3602 = vxpose.xlu0.b32.cont [4/16] 0.0, 128
      %3603 = vxpose.xlu0.b32.cont [5/16] 0.0, 128
      %3604 = vxpose.xlu0.b32.cont [6/16] 0.0, 128
      %3605 = vxpose.xlu0.b32.cont [7/16] 0.0, 128
      %3606 = vxpose.xlu0.b32.cont [8/16] 0.0, 128
      %3607 = vxpose.xlu0.b32.cont [9/16] 0.0, 128
      %3608 = vxpose.xlu0.b32.cont [10/16] 0.0, 128
      %3609 = vxpose.xlu0.b32.cont [11/16] 0.0, 128
      %3610 = vxpose.xlu0.b32.cont [12/16] 0.0, 128
      %3611 = vxpose.xlu0.b32.cont [13/16] 0.0, 128
      %3612 = vxpose.xlu0.b32.cont [14/16] 0.0, 128
      %3613 = vxpose.xlu0.b32.cont [15/16] 0.0, 128
      %3614 = vxpose.xlu0.b32.end [16/16] 0.0, 128
      %v3615 = vpop.trf.xlu0
      %v3616 = vpop.trf.xlu0
      %v3617 = vpop.trf.xlu0
      %v3618 = vpop.trf.xlu0
      %v3619 = vpop.trf.xlu0
      %v3620 = vpop.trf.xlu0
      %v3621 = vpop.trf.xlu0
      %v3622 = vpop.trf.xlu0
      %v3623 = vpop.trf.xlu0
      %v3624 = vpop.trf.xlu0
      %v3625 = vpop.trf.xlu0
      %v3626 = vpop.trf.xlu0
      %v3627 = vpop.trf.xlu0
      %v3628 = vpop.trf.xlu0
      %v3629 = vpop.trf.xlu0
      %v3630 = vpop.trf.xlu0
      %3631 = vxpose.xlu0.b32.start [1/16] %v357, 128
      %3632 = vxpose.xlu0.b32.cont [2/16] 0.0, 128
      %3633 = vxpose.xlu0.b32.cont [3/16] 0.0, 128
      %3634 = vxpose.xlu0.b32.cont [4/16] 0.0, 128
      %3635 = vxpose.xlu0.b32.cont [5/16] 0.0, 128
      %3636 = vxpose.xlu0.b32.cont [6/16] 0.0, 128
      %3637 = vxpose.xlu0.b32.cont [7/16] 0.0, 128
      %3638 = vxpose.xlu0.b32.cont [8/16] 0.0, 128
      %3639 = vxpose.xlu0.b32.cont [9/16] 0.0, 128
      %3640 = vxpose.xlu0.b32.cont [10/16] 0.0, 128
      %3641 = vxpose.xlu0.b32.cont [11/16] 0.0, 128
      %3642 = vxpose.xlu0.b32.cont [12/16] 0.0, 128
      %3643 = vxpose.xlu0.b32.cont [13/16] 0.0, 128
      %3644 = vxpose.xlu0.b32.cont [14/16] 0.0, 128
      %3645 = vxpose.xlu0.b32.cont [15/16] 0.0, 128
      %3646 = vxpose.xlu0.b32.end [16/16] 0.0, 128
      %v3647 = vpop.trf.xlu0
      %v3648 = vpop.trf.xlu0
      %v3649 = vpop.trf.xlu0
      %v3650 = vpop.trf.xlu0
      %v3651 = vpop.trf.xlu0
      %v3652 = vpop.trf.xlu0
      %v3653 = vpop.trf.xlu0
      %v3654 = vpop.trf.xlu0
      %v3655 = vpop.trf.xlu0
      %v3656 = vpop.trf.xlu0
      %v3657 = vpop.trf.xlu0
      %v3658 = vpop.trf.xlu0
      %v3659 = vpop.trf.xlu0
      %v3660 = vpop.trf.xlu0
      %v3661 = vpop.trf.xlu0
      %v3662 = vpop.trf.xlu0
      %3663 = vxpose.xlu0.b32.start [1/16] %v358, 128
      %3664 = vxpose.xlu0.b32.cont [2/16] 0.0, 128
      %3665 = vxpose.xlu0.b32.cont [3/16] 0.0, 128
      %3666 = vxpose.xlu0.b32.cont [4/16] 0.0, 128
      %3667 = vxpose.xlu0.b32.cont [5/16] 0.0, 128
      %3668 = vxpose.xlu0.b32.cont [6/16] 0.0, 128
      %3669 = vxpose.xlu0.b32.cont [7/16] 0.0, 128
      %3670 = vxpose.xlu0.b32.cont [8/16] 0.0, 128
      %3671 = vxpose.xlu0.b32.cont [9/16] 0.0, 128
      %3672 = vxpose.xlu0.b32.cont [10/16] 0.0, 128
      %3673 = vxpose.xlu0.b32.cont [11/16] 0.0, 128
      %3674 = vxpose.xlu0.b32.cont [12/16] 0.0, 128
      %3675 = vxpose.xlu0.b32.cont [13/16] 0.0, 128
      %3676 = vxpose.xlu0.b32.cont [14/16] 0.0, 128
      %3677 = vxpose.xlu0.b32.cont [15/16] 0.0, 128
      %3678 = vxpose.xlu0.b32.end [16/16] 0.0, 128
      %v3679 = vpop.trf.xlu0
      %v3680 = vpop.trf.xlu0
      %v3681 = vpop.trf.xlu0
      %v3682 = vpop.trf.xlu0
      %v3683 = vpop.trf.xlu0
      %v3684 = vpop.trf.xlu0
      %v3685 = vpop.trf.xlu0
      %v3686 = vpop.trf.xlu0
      %v3687 = vpop.trf.xlu0
      %v3688 = vpop.trf.xlu0
      %v3689 = vpop.trf.xlu0
      %v3690 = vpop.trf.xlu0
      %v3691 = vpop.trf.xlu0
      %v3692 = vpop.trf.xlu0
      %v3693 = vpop.trf.xlu0
      %v3694 = vpop.trf.xlu0
      %3695 = vxpose.xlu0.b32.start [1/16] %v359, 128
      %3696 = vxpose.xlu0.b32.cont [2/16] 0.0, 128
      %3697 = vxpose.xlu0.b32.cont [3/16] 0.0, 128
      %3698 = vxpose.xlu0.b32.cont [4/16] 0.0, 128
      %3699 = vxpose.xlu0.b32.cont [5/16] 0.0, 128
      %3700 = vxpose.xlu0.b32.cont [6/16] 0.0, 128
      %3701 = vxpose.xlu0.b32.cont [7/16] 0.0, 128
      %3702 = vxpose.xlu0.b32.cont [8/16] 0.0, 128
      %3703 = vxpose.xlu0.b32.cont [9/16] 0.0, 128
      %3704 = vxpose.xlu0.b32.cont [10/16] 0.0, 128
      %3705 = vxpose.xlu0.b32.cont [11/16] 0.0, 128
      %3706 = vxpose.xlu0.b32.cont [12/16] 0.0, 128
      %3707 = vxpose.xlu0.b32.cont [13/16] 0.0, 128
      %3708 = vxpose.xlu0.b32.cont [14/16] 0.0, 128
      %3709 = vxpose.xlu0.b32.cont [15/16] 0.0, 128
      %3710 = vxpose.xlu0.b32.end [16/16] 0.0, 128
      %v3711 = vpop.trf.xlu0
      %v3712 = vpop.trf.xlu0
      %v3713 = vpop.trf.xlu0
      %v3714 = vpop.trf.xlu0
      %v3715 = vpop.trf.xlu0
      %v3716 = vpop.trf.xlu0
      %v3717 = vpop.trf.xlu0
      %v3718 = vpop.trf.xlu0
      %v3719 = vpop.trf.xlu0
      %v3720 = vpop.trf.xlu0
      %v3721 = vpop.trf.xlu0
      %v3722 = vpop.trf.xlu0
      %v3723 = vpop.trf.xlu0
      %v3724 = vpop.trf.xlu0
      %v3725 = vpop.trf.xlu0
      %v3726 = vpop.trf.xlu0
      %v3727 = vrot.slane %v3039, 4
      %v3728 = vsel %vm1242, %v3727, %v2975
      %v3729 = vrot.slane %v2975, 4
      %v3730 = vsel %vm1242, %v3039, %v3729
      %v3732 = vunpack.c.l.s4 1983009808
      %v3733 = vunpack.c.0.s8 %v3732
      %v3734 = vperm.slane %v3728, %v3733
      %v3736 = vunpack.c.l.s4 1983009808
      %v3737 = vunpack.c.0.s8 %v3736
      %v3738 = vperm.slane %v3730, %v3737
      %v3739 = vrot.slane %v3071, 4
      %v3740 = vsel %vm1242, %v3739, %v3007
      %v3741 = vrot.slane %v3007, 4
      %v3742 = vsel %vm1242, %v3071, %v3741
      %v3744 = vunpack.c.l.s4 1983009808
      %v3745 = vunpack.c.0.s8 %v3744
      %v3746 = vperm.slane %v3740, %v3745
      %v3748 = vunpack.c.l.s4 1983009808
      %v3749 = vunpack.c.0.s8 %v3748
      %v3750 = vperm.slane %v3742, %v3749
      %v3751 = vrot.slane %v3167, 4
      %v3752 = vsel %vm1242, %v3751, %v3103
      %v3753 = vrot.slane %v3103, 4
      %v3754 = vsel %vm1242, %v3167, %v3753
      %v3756 = vunpack.c.l.s4 1983009808
      %v3757 = vunpack.c.0.s8 %v3756
      %v3758 = vperm.slane %v3752, %v3757
      %v3760 = vunpack.c.l.s4 1983009808
      %v3761 = vunpack.c.0.s8 %v3760
      %v3762 = vperm.slane %v3754, %v3761
      %v3763 = vrot.slane %v3199, 4
      %v3764 = vsel %vm1242, %v3763, %v3135
      %v3765 = vrot.slane %v3135, 4
      %v3766 = vsel %vm1242, %v3199, %v3765
      %v3768 = vunpack.c.l.s4 1983009808
      %v3769 = vunpack.c.0.s8 %v3768
      %v3770 = vperm.slane %v3764, %v3769
      %v3772 = vunpack.c.l.s4 1983009808
      %v3773 = vunpack.c.0.s8 %v3772
      %v3774 = vperm.slane %v3766, %v3773
      %v3775 = vrot.slane %v3746, 4
      %v3776 = vsel %vm1242, %v3775, %v3734
      %v3777 = vrot.slane %v3734, 4
      %v3778 = vsel %vm1242, %v3746, %v3777
      %v3780 = vunpack.c.l.s4 1934713408
      %v3781 = vunpack.c.0.s8 %v3780
      %v3782 = vperm.slane %v3776, %v3781
      %v3784 = vunpack.c.l.s4 1934713408
      %v3785 = vunpack.c.0.s8 %v3784
      %v3786 = vperm.slane %v3778, %v3785
      %v3787 = vrot.slane %v3750, 4
      %v3788 = vsel %vm1242, %v3787, %v3738
      %v3789 = vrot.slane %v3738, 4
      %v3790 = vsel %vm1242, %v3750, %v3789
      %v3792 = vunpack.c.l.s4 1934713408
      %v3793 = vunpack.c.0.s8 %v3792
      %v3794 = vperm.slane %v3788, %v3793
      %v3796 = vunpack.c.l.s4 1934713408
      %v3797 = vunpack.c.0.s8 %v3796
      %v3798 = vperm.slane %v3790, %v3797
      %v3799 = vrot.slane %v3770, 4
      %v3800 = vsel %vm1242, %v3799, %v3758
      %v3801 = vrot.slane %v3758, 4
      %v3802 = vsel %vm1242, %v3770, %v3801
      %v3804 = vunpack.c.l.s4 1934713408
      %v3805 = vunpack.c.0.s8 %v3804
      %v3806 = vperm.slane %v3800, %v3805
      %v3808 = vunpack.c.l.s4 1934713408
      %v3809 = vunpack.c.0.s8 %v3808
      %v3810 = vperm.slane %v3802, %v3809
      %v3811 = vrot.slane %v3774, 4
      %v3812 = vsel %vm1242, %v3811, %v3762
      %v3813 = vrot.slane %v3762, 4
      %v3814 = vsel %vm1242, %v3774, %v3813
      %v3816 = vunpack.c.l.s4 1934713408
      %v3817 = vunpack.c.0.s8 %v3816
      %v3818 = vperm.slane %v3812, %v3817
      %v3820 = vunpack.c.l.s4 1934713408
      %v3821 = vunpack.c.0.s8 %v3820
      %v3822 = vperm.slane %v3814, %v3821
      %v3823 = vrot.slane %v3806, 4
      %v3824 = vsel %vm1242, %v3823, %v3782
      %v3825 = vrot.slane %v3782, 4
      %v3826 = vsel %vm1242, %v3806, %v3825
      %v3827 = vrot.slane %v3810, 4
      %v3828 = vsel %vm1242, %v3827, %v3786
      %v3829 = vrot.slane %v3786, 4
      %v3830 = vsel %vm1242, %v3810, %v3829
      %v3831 = vrot.slane %v3818, 4
      %v3832 = vsel %vm1242, %v3831, %v3794
      %v3833 = vrot.slane %v3794, 4
      %v3834 = vsel %vm1242, %v3818, %v3833
      %v3835 = vrot.slane %v3822, 4
      %v3836 = vsel %vm1242, %v3835, %v3798
      %v3837 = vrot.slane %v3798, 4
      %v3838 = vsel %vm1242, %v3822, %v3837
      %v3839 = vrot.slane %v3295, 4
      %v3840 = vsel %vm1242, %v3839, %v3231
      %v3841 = vrot.slane %v3231, 4
      %v3842 = vsel %vm1242, %v3295, %v3841
      %v3844 = vunpack.c.l.s4 1983009808
      %v3845 = vunpack.c.0.s8 %v3844
      %v3846 = vperm.slane %v3840, %v3845
      %v3848 = vunpack.c.l.s4 1983009808
      %v3849 = vunpack.c.0.s8 %v3848
      %v3850 = vperm.slane %v3842, %v3849
      %v3851 = vrot.slane %v3327, 4
      %v3852 = vsel %vm1242, %v3851, %v3263
      %v3853 = vrot.slane %v3263, 4
      %v3854 = vsel %vm1242, %v3327, %v3853
      %v3856 = vunpack.c.l.s4 1983009808
      %v3857 = vunpack.c.0.s8 %v3856
      %v3858 = vperm.slane %v3852, %v3857
      %v3860 = vunpack.c.l.s4 1983009808
      %v3861 = vunpack.c.0.s8 %v3860
      %v3862 = vperm.slane %v3854, %v3861
      %v3863 = vrot.slane %v3423, 4
      %v3864 = vsel %vm1242, %v3863, %v3359
      %v3865 = vrot.slane %v3359, 4
      %v3866 = vsel %vm1242, %v3423, %v3865
      %v3868 = vunpack.c.l.s4 1983009808
      %v3869 = vunpack.c.0.s8 %v3868
      %v3870 = vperm.slane %v3864, %v3869
      %v3872 = vunpack.c.l.s4 1983009808
      %v3873 = vunpack.c.0.s8 %v3872
      %v3874 = vperm.slane %v3866, %v3873
      %v3875 = vrot.slane %v3455, 4
      %v3876 = vsel %vm1242, %v3875, %v3391
      %v3877 = vrot.slane %v3391, 4
      %v3878 = vsel %vm1242, %v3455, %v3877
      %v3880 = vunpack.c.l.s4 1983009808
      %v3881 = vunpack.c.0.s8 %v3880
      %v3882 = vperm.slane %v3876, %v3881
      %v3884 = vunpack.c.l.s4 1983009808
      %v3885 = vunpack.c.0.s8 %v3884
      %v3886 = vperm.slane %v3878, %v3885
      %v3887 = vrot.slane %v3858, 4
      %v3888 = vsel %vm1242, %v3887, %v3846
      %v3889 = vrot.slane %v3846, 4
      %v3890 = vsel %vm1242, %v3858, %v3889
      %v3892 = vunpack.c.l.s4 1934713408
      %v3893 = vunpack.c.0.s8 %v3892
      %v3894 = vperm.slane %v3888, %v3893
      %v3896 = vunpack.c.l.s4 1934713408
      %v3897 = vunpack.c.0.s8 %v3896
      %v3898 = vperm.slane %v3890, %v3897
      %v3899 = vrot.slane %v3862, 4
      %v3900 = vsel %vm1242, %v3899, %v3850
      %v3901 = vrot.slane %v3850, 4
      %v3902 = vsel %vm1242, %v3862, %v3901
      %v3904 = vunpack.c.l.s4 1934713408
      %v3905 = vunpack.c.0.s8 %v3904
      %v3906 = vperm.slane %v3900, %v3905
      %v3908 = vunpack.c.l.s4 1934713408
      %v3909 = vunpack.c.0.s8 %v3908
      %v3910 = vperm.slane %v3902, %v3909
      %v3911 = vrot.slane %v3882, 4
      %v3912 = vsel %vm1242, %v3911, %v3870
      %v3913 = vrot.slane %v3870, 4
      %v3914 = vsel %vm1242, %v3882, %v3913
      %v3916 = vunpack.c.l.s4 1934713408
      %v3917 = vunpack.c.0.s8 %v3916
      %v3918 = vperm.slane %v3912, %v3917
      %v3920 = vunpack.c.l.s4 1934713408
      %v3921 = vunpack.c.0.s8 %v3920
      %v3922 = vperm.slane %v3914, %v3921
      %v3923 = vrot.slane %v3886, 4
      %v3924 = vsel %vm1242, %v3923, %v3874
      %v3925 = vrot.slane %v3874, 4
      %v3926 = vsel %vm1242, %v3886, %v3925
      %v3928 = vunpack.c.l.s4 1934713408
      %v3929 = vunpack.c.0.s8 %v3928
      %v3930 = vperm.slane %v3924, %v3929
      %v3932 = vunpack.c.l.s4 1934713408
      %v3933 = vunpack.c.0.s8 %v3932
      %v3934 = vperm.slane %v3926, %v3933
      %v3935 = vrot.slane %v3918, 4
      %v3936 = vsel %vm1242, %v3935, %v3894
      %v3937 = vrot.slane %v3894, 4
      %v3938 = vsel %vm1242, %v3918, %v3937
      %v3939 = vrot.slane %v3922, 4
      %v3940 = vsel %vm1242, %v3939, %v3898
      %v3941 = vrot.slane %v3898, 4
      %v3942 = vsel %vm1242, %v3922, %v3941
      %v3943 = vrot.slane %v3930, 4
      %v3944 = vsel %vm1242, %v3943, %v3906
      %v3945 = vrot.slane %v3906, 4
      %v3946 = vsel %vm1242, %v3930, %v3945
      %v3947 = vrot.slane %v3934, 4
      %v3948 = vsel %vm1242, %v3947, %v3910
      %v3949 = vrot.slane %v3910, 4
      %v3950 = vsel %vm1242, %v3934, %v3949
      %v3951 = vrot.slane %v3551, 4
      %v3952 = vsel %vm1242, %v3951, %v3487
      %v3953 = vrot.slane %v3487, 4
      %v3954 = vsel %vm1242, %v3551, %v3953
      %v3956 = vunpack.c.l.s4 1983009808
      %v3957 = vunpack.c.0.s8 %v3956
      %v3958 = vperm.slane %v3952, %v3957
      %v3960 = vunpack.c.l.s4 1983009808
      %v3961 = vunpack.c.0.s8 %v3960
      %v3962 = vperm.slane %v3954, %v3961
      %v3963 = vrot.slane %v3583, 4
      %v3964 = vsel %vm1242, %v3963, %v3519
      %v3965 = vrot.slane %v3519, 4
      %v3966 = vsel %vm1242, %v3583, %v3965
      %v3968 = vunpack.c.l.s4 1983009808
      %v3969 = vunpack.c.0.s8 %v3968
      %v3970 = vperm.slane %v3964, %v3969
      %v3972 = vunpack.c.l.s4 1983009808
      %v3973 = vunpack.c.0.s8 %v3972
      %v3974 = vperm.slane %v3966, %v3973
      %v3975 = vrot.slane %v3679, 4
      %v3976 = vsel %vm1242, %v3975, %v3615
      %v3977 = vrot.slane %v3615, 4
      %v3978 = vsel %vm1242, %v3679, %v3977
      %v3980 = vunpack.c.l.s4 1983009808
      %v3981 = vunpack.c.0.s8 %v3980
      %v3982 = vperm.slane %v3976, %v3981
      %v3984 = vunpack.c.l.s4 1983009808
      %v3985 = vunpack.c.0.s8 %v3984
      %v3986 = vperm.slane %v3978, %v3985
      %v3987 = vrot.slane %v3711, 4
      %v3988 = vsel %vm1242, %v3987, %v3647
      %v3989 = vrot.slane %v3647, 4
      %v3990 = vsel %vm1242, %v3711, %v3989
      %v3992 = vunpack.c.l.s4 1983009808
      %v3993 = vunpack.c.0.s8 %v3992
      %v3994 = vperm.slane %v3988, %v3993
      %v3996 = vunpack.c.l.s4 1983009808
      %v3997 = vunpack.c.0.s8 %v3996
      %v3998 = vperm.slane %v3990, %v3997
      %v3999 = vrot.slane %v3970, 4
      %v4000 = vsel %vm1242, %v3999, %v3958
      %v4001 = vrot.slane %v3958, 4
      %v4002 = vsel %vm1242, %v3970, %v4001
      %v4004 = vunpack.c.l.s4 1934713408
      %v4005 = vunpack.c.0.s8 %v4004
      %v4006 = vperm.slane %v4000, %v4005
      %v4008 = vunpack.c.l.s4 1934713408
      %v4009 = vunpack.c.0.s8 %v4008
      %v4010 = vperm.slane %v4002, %v4009
      %v4011 = vrot.slane %v3974, 4
      %v4012 = vsel %vm1242, %v4011, %v3962
      %v4013 = vrot.slane %v3962, 4
      %v4014 = vsel %vm1242, %v3974, %v4013
      %v4016 = vunpack.c.l.s4 1934713408
      %v4017 = vunpack.c.0.s8 %v4016
      %v4018 = vperm.slane %v4012, %v4017
      %v4020 = vunpack.c.l.s4 1934713408
      %v4021 = vunpack.c.0.s8 %v4020
      %v4022 = vperm.slane %v4014, %v4021
      %v4023 = vrot.slane %v3994, 4
      %v4024 = vsel %vm1242, %v4023, %v3982
      %v4025 = vrot.slane %v3982, 4
      %v4026 = vsel %vm1242, %v3994, %v4025
      %v4028 = vunpack.c.l.s4 1934713408
      %v4029 = vunpack.c.0.s8 %v4028
      %v4030 = vperm.slane %v4024, %v4029
      %v4032 = vunpack.c.l.s4 1934713408
      %v4033 = vunpack.c.0.s8 %v4032
      %v4034 = vperm.slane %v4026, %v4033
      %v4035 = vrot.slane %v3998, 4
      %v4036 = vsel %vm1242, %v4035, %v3986
      %v4037 = vrot.slane %v3986, 4
      %v4038 = vsel %vm1242, %v3998, %v4037
      %v4040 = vunpack.c.l.s4 1934713408
      %v4041 = vunpack.c.0.s8 %v4040
      %v4042 = vperm.slane %v4036, %v4041
      %v4044 = vunpack.c.l.s4 1934713408
      %v4045 = vunpack.c.0.s8 %v4044
      %v4046 = vperm.slane %v4038, %v4045
      %v4047 = vrot.slane %v4030, 4
      %v4048 = vsel %vm1242, %v4047, %v4006
      %v4049 = vrot.slane %v4006, 4
      %v4050 = vsel %vm1242, %v4030, %v4049
      %v4051 = vrot.slane %v4034, 4
      %v4052 = vsel %vm1242, %v4051, %v4010
      %v4053 = vrot.slane %v4010, 4
      %v4054 = vsel %vm1242, %v4034, %v4053
      %v4055 = vrot.slane %v4042, 4
      %v4056 = vsel %vm1242, %v4055, %v4018
      %v4057 = vrot.slane %v4018, 4
      %v4058 = vsel %vm1242, %v4042, %v4057
      %v4059 = vrot.slane %v4046, 4
      %v4060 = vsel %vm1242, %v4059, %v4022
      %v4061 = vrot.slane %v4022, 4
      %v4062 = vsel %vm1242, %v4046, %v4061
      %4063 = vxpose.xlu0.b32.start [1/16] %v3824, 128
      %4064 = vxpose.xlu0.b32.cont [2/16] %v3936, 128
      %4065 = vxpose.xlu0.b32.cont [3/16] %v4048, 128
      %4066 = vxpose.xlu0.b32.cont [4/16] 0.0, 128
      %4067 = vxpose.xlu0.b32.cont [5/16] 0.0, 128
      %4068 = vxpose.xlu0.b32.cont [6/16] 0.0, 128
      %4069 = vxpose.xlu0.b32.cont [7/16] 0.0, 128
      %4070 = vxpose.xlu0.b32.cont [8/16] 0.0, 128
      %4071 = vxpose.xlu0.b32.cont [9/16] 0.0, 128
      %4072 = vxpose.xlu0.b32.cont [10/16] 0.0, 128
      %4073 = vxpose.xlu0.b32.cont [11/16] 0.0, 128
      %4074 = vxpose.xlu0.b32.cont [12/16] 0.0, 128
      %4075 = vxpose.xlu0.b32.cont [13/16] 0.0, 128
      %4076 = vxpose.xlu0.b32.cont [14/16] 0.0, 128
      %4077 = vxpose.xlu0.b32.cont [15/16] 0.0, 128
      %4078 = vxpose.xlu0.b32.end [16/16] 0.0, 128
      %v4079 = vpop.trf.xlu0
      %v4080 = vpop.trf.xlu0
      %v4081 = vpop.trf.xlu0
      %v4082 = vpop.trf.xlu0
      %v4083 = vpop.trf.xlu0
      %v4084 = vpop.trf.xlu0
      %v4085 = vpop.trf.xlu0
      %v4086 = vpop.trf.xlu0
      %v4087 = vpop.trf.xlu0
      %v4088 = vpop.trf.xlu0
      %v4089 = vpop.trf.xlu0
      %v4090 = vpop.trf.xlu0
      %v4091 = vpop.trf.xlu0
      %v4092 = vpop.trf.xlu0
      %v4093 = vpop.trf.xlu0
      %v4094 = vpop.trf.xlu0
      %4095 = vxpose.xlu0.b32.start [1/16] %v3826, 128
      %4096 = vxpose.xlu0.b32.cont [2/16] %v3938, 128
      %4097 = vxpose.xlu0.b32.cont [3/16] %v4050, 128
      %4098 = vxpose.xlu0.b32.cont [4/16] 0.0, 128
      %4099 = vxpose.xlu0.b32.cont [5/16] 0.0, 128
      %4100 = vxpose.xlu0.b32.cont [6/16] 0.0, 128
      %4101 = vxpose.xlu0.b32.cont [7/16] 0.0, 128
      %4102 = vxpose.xlu0.b32.cont [8/16] 0.0, 128
      %4103 = vxpose.xlu0.b32.cont [9/16] 0.0, 128
      %4104 = vxpose.xlu0.b32.cont [10/16] 0.0, 128
      %4105 = vxpose.xlu0.b32.cont [11/16] 0.0, 128
      %4106 = vxpose.xlu0.b32.cont [12/16] 0.0, 128
      %4107 = vxpose.xlu0.b32.cont [13/16] 0.0, 128
      %4108 = vxpose.xlu0.b32.cont [14/16] 0.0, 128
      %4109 = vxpose.xlu0.b32.cont [15/16] 0.0, 128
      %4110 = vxpose.xlu0.b32.end [16/16] 0.0, 128
      %v4111 = vpop.trf.xlu0
      %v4112 = vpop.trf.xlu0
      %v4113 = vpop.trf.xlu0
      %v4114 = vpop.trf.xlu0
      %v4115 = vpop.trf.xlu0
      %v4116 = vpop.trf.xlu0
      %v4117 = vpop.trf.xlu0
      %v4118 = vpop.trf.xlu0
      %v4119 = vpop.trf.xlu0
      %v4120 = vpop.trf.xlu0
      %v4121 = vpop.trf.xlu0
      %v4122 = vpop.trf.xlu0
      %v4123 = vpop.trf.xlu0
      %v4124 = vpop.trf.xlu0
      %v4125 = vpop.trf.xlu0
      %v4126 = vpop.trf.xlu0
      %4127 = vxpose.xlu0.b32.start [1/16] %v3828, 128
      %4128 = vxpose.xlu0.b32.cont [2/16] %v3940, 128
      %4129 = vxpose.xlu0.b32.cont [3/16] %v4052, 128
      %4130 = vxpose.xlu0.b32.cont [4/16] 0.0, 128
      %4131 = vxpose.xlu0.b32.cont [5/16] 0.0, 128
      %4132 = vxpose.xlu0.b32.cont [6/16] 0.0, 128
      %4133 = vxpose.xlu0.b32.cont [7/16] 0.0, 128
      %4134 = vxpose.xlu0.b32.cont [8/16] 0.0, 128
      %4135 = vxpose.xlu0.b32.cont [9/16] 0.0, 128
      %4136 = vxpose.xlu0.b32.cont [10/16] 0.0, 128
      %4137 = vxpose.xlu0.b32.cont [11/16] 0.0, 128
      %4138 = vxpose.xlu0.b32.cont [12/16] 0.0, 128
      %4139 = vxpose.xlu0.b32.cont [13/16] 0.0, 128
      %4140 = vxpose.xlu0.b32.cont [14/16] 0.0, 128
      %4141 = vxpose.xlu0.b32.cont [15/16] 0.0, 128
      %4142 = vxpose.xlu0.b32.end [16/16] 0.0, 128
      %v4143 = vpop.trf.xlu0
      %v4144 = vpop.trf.xlu0
      %v4145 = vpop.trf.xlu0
      %v4146 = vpop.trf.xlu0
      %v4147 = vpop.trf.xlu0
      %v4148 = vpop.trf.xlu0
      %v4149 = vpop.trf.xlu0
      %v4150 = vpop.trf.xlu0
      %v4151 = vpop.trf.xlu0
      %v4152 = vpop.trf.xlu0
      %v4153 = vpop.trf.xlu0
      %v4154 = vpop.trf.xlu0
      %v4155 = vpop.trf.xlu0
      %v4156 = vpop.trf.xlu0
      %v4157 = vpop.trf.xlu0
      %v4158 = vpop.trf.xlu0
      %4159 = vxpose.xlu0.b32.start [1/16] %v3830, 128
      %4160 = vxpose.xlu0.b32.cont [2/16] %v3942, 128
      %4161 = vxpose.xlu0.b32.cont [3/16] %v4054, 128
      %4162 = vxpose.xlu0.b32.cont [4/16] 0.0, 128
      %4163 = vxpose.xlu0.b32.cont [5/16] 0.0, 128
      %4164 = vxpose.xlu0.b32.cont [6/16] 0.0, 128
      %4165 = vxpose.xlu0.b32.cont [7/16] 0.0, 128
      %4166 = vxpose.xlu0.b32.cont [8/16] 0.0, 128
      %4167 = vxpose.xlu0.b32.cont [9/16] 0.0, 128
      %4168 = vxpose.xlu0.b32.cont [10/16] 0.0, 128
      %4169 = vxpose.xlu0.b32.cont [11/16] 0.0, 128
      %4170 = vxpose.xlu0.b32.cont [12/16] 0.0, 128
      %4171 = vxpose.xlu0.b32.cont [13/16] 0.0, 128
      %4172 = vxpose.xlu0.b32.cont [14/16] 0.0, 128
      %4173 = vxpose.xlu0.b32.cont [15/16] 0.0, 128
      %4174 = vxpose.xlu0.b32.end [16/16] 0.0, 128
      %v4175 = vpop.trf.xlu0
      %v4176 = vpop.trf.xlu0
      %v4177 = vpop.trf.xlu0
      %v4178 = vpop.trf.xlu0
      %v4179 = vpop.trf.xlu0
      %v4180 = vpop.trf.xlu0
      %v4181 = vpop.trf.xlu0
      %v4182 = vpop.trf.xlu0
      %v4183 = vpop.trf.xlu0
      %v4184 = vpop.trf.xlu0
      %v4185 = vpop.trf.xlu0
      %v4186 = vpop.trf.xlu0
      %v4187 = vpop.trf.xlu0
      %v4188 = vpop.trf.xlu0
      %v4189 = vpop.trf.xlu0
      %v4190 = vpop.trf.xlu0
      %4191 = vxpose.xlu0.b32.start [1/16] %v3832, 128
      %4192 = vxpose.xlu0.b32.cont [2/16] %v3944, 128
      %4193 = vxpose.xlu0.b32.cont [3/16] %v4056, 128
      %4194 = vxpose.xlu0.b32.cont [4/16] 0.0, 128
      %4195 = vxpose.xlu0.b32.cont [5/16] 0.0, 128
      %4196 = vxpose.xlu0.b32.cont [6/16] 0.0, 128
      %4197 = vxpose.xlu0.b32.cont [7/16] 0.0, 128
      %4198 = vxpose.xlu0.b32.cont [8/16] 0.0, 128
      %4199 = vxpose.xlu0.b32.cont [9/16] 0.0, 128
      %4200 = vxpose.xlu0.b32.cont [10/16] 0.0, 128
      %4201 = vxpose.xlu0.b32.cont [11/16] 0.0, 128
      %4202 = vxpose.xlu0.b32.cont [12/16] 0.0, 128
      %4203 = vxpose.xlu0.b32.cont [13/16] 0.0, 128
      %4204 = vxpose.xlu0.b32.cont [14/16] 0.0, 128
      %4205 = vxpose.xlu0.b32.cont [15/16] 0.0, 128
      %4206 = vxpose.xlu0.b32.end [16/16] 0.0, 128
      %v4207 = vpop.trf.xlu0
      %v4208 = vpop.trf.xlu0
      %v4209 = vpop.trf.xlu0
      %v4210 = vpop.trf.xlu0
      %v4211 = vpop.trf.xlu0
      %v4212 = vpop.trf.xlu0
      %v4213 = vpop.trf.xlu0
      %v4214 = vpop.trf.xlu0
      %v4215 = vpop.trf.xlu0
      %v4216 = vpop.trf.xlu0
      %v4217 = vpop.trf.xlu0
      %v4218 = vpop.trf.xlu0
      %v4219 = vpop.trf.xlu0
      %v4220 = vpop.trf.xlu0
      %v4221 = vpop.trf.xlu0
      %v4222 = vpop.trf.xlu0
      %4223 = vxpose.xlu0.b32.start [1/16] %v3834, 128
      %4224 = vxpose.xlu0.b32.cont [2/16] %v3946, 128
      %4225 = vxpose.xlu0.b32.cont [3/16] %v4058, 128
      %4226 = vxpose.xlu0.b32.cont [4/16] 0.0, 128
      %4227 = vxpose.xlu0.b32.cont [5/16] 0.0, 128
      %4228 = vxpose.xlu0.b32.cont [6/16] 0.0, 128
      %4229 = vxpose.xlu0.b32.cont [7/16] 0.0, 128
      %4230 = vxpose.xlu0.b32.cont [8/16] 0.0, 128
      %4231 = vxpose.xlu0.b32.cont [9/16] 0.0, 128
      %4232 = vxpose.xlu0.b32.cont [10/16] 0.0, 128
      %4233 = vxpose.xlu0.b32.cont [11/16] 0.0, 128
      %4234 = vxpose.xlu0.b32.cont [12/16] 0.0, 128
      %4235 = vxpose.xlu0.b32.cont [13/16] 0.0, 128
      %4236 = vxpose.xlu0.b32.cont [14/16] 0.0, 128
      %4237 = vxpose.xlu0.b32.cont [15/16] 0.0, 128
      %4238 = vxpose.xlu0.b32.end [16/16] 0.0, 128
      %v4239 = vpop.trf.xlu0
      %v4240 = vpop.trf.xlu0
      %v4241 = vpop.trf.xlu0
      %v4242 = vpop.trf.xlu0
      %v4243 = vpop.trf.xlu0
      %v4244 = vpop.trf.xlu0
      %v4245 = vpop.trf.xlu0
      %v4246 = vpop.trf.xlu0
      %v4247 = vpop.trf.xlu0
      %v4248 = vpop.trf.xlu0
      %v4249 = vpop.trf.xlu0
      %v4250 = vpop.trf.xlu0
      %v4251 = vpop.trf.xlu0
      %v4252 = vpop.trf.xlu0
      %v4253 = vpop.trf.xlu0
      %v4254 = vpop.trf.xlu0
      %4255 = vxpose.xlu0.b32.start [1/16] %v3836, 128
      %4256 = vxpose.xlu0.b32.cont [2/16] %v3948, 128
      %4257 = vxpose.xlu0.b32.cont [3/16] %v4060, 128
      %4258 = vxpose.xlu0.b32.cont [4/16] 0.0, 128
      %4259 = vxpose.xlu0.b32.cont [5/16] 0.0, 128
      %4260 = vxpose.xlu0.b32.cont [6/16] 0.0, 128
      %4261 = vxpose.xlu0.b32.cont [7/16] 0.0, 128
      %4262 = vxpose.xlu0.b32.cont [8/16] 0.0, 128
      %4263 = vxpose.xlu0.b32.cont [9/16] 0.0, 128
      %4264 = vxpose.xlu0.b32.cont [10/16] 0.0, 128
      %4265 = vxpose.xlu0.b32.cont [11/16] 0.0, 128
      %4266 = vxpose.xlu0.b32.cont [12/16] 0.0, 128
      %4267 = vxpose.xlu0.b32.cont [13/16] 0.0, 128
      %4268 = vxpose.xlu0.b32.cont [14/16] 0.0, 128
      %4269 = vxpose.xlu0.b32.cont [15/16] 0.0, 128
      %4270 = vxpose.xlu0.b32.end [16/16] 0.0, 128
      %v4271 = vpop.trf.xlu0
      %v4272 = vpop.trf.xlu0
      %v4273 = vpop.trf.xlu0
      %v4274 = vpop.trf.xlu0
      %v4275 = vpop.trf.xlu0
      %v4276 = vpop.trf.xlu0
      %v4277 = vpop.trf.xlu0
      %v4278 = vpop.trf.xlu0
      %v4279 = vpop.trf.xlu0
      %v4280 = vpop.trf.xlu0
      %v4281 = vpop.trf.xlu0
      %v4282 = vpop.trf.xlu0
      %v4283 = vpop.trf.xlu0
      %v4284 = vpop.trf.xlu0
      %v4285 = vpop.trf.xlu0
      %v4286 = vpop.trf.xlu0
      %4287 = vxpose.xlu0.b32.start [1/16] %v3838, 128
      %4288 = vxpose.xlu0.b32.cont [2/16] %v3950, 128
      %4289 = vxpose.xlu0.b32.cont [3/16] %v4062, 128
      %4290 = vxpose.xlu0.b32.cont [4/16] 0.0, 128
      %4291 = vxpose.xlu0.b32.cont [5/16] 0.0, 128
      %4292 = vxpose.xlu0.b32.cont [6/16] 0.0, 128
      %4293 = vxpose.xlu0.b32.cont [7/16] 0.0, 128
      %4294 = vxpose.xlu0.b32.cont [8/16] 0.0, 128
      %4295 = vxpose.xlu0.b32.cont [9/16] 0.0, 128
      %4296 = vxpose.xlu0.b32.cont [10/16] 0.0, 128
      %4297 = vxpose.xlu0.b32.cont [11/16] 0.0, 128
      %4298 = vxpose.xlu0.b32.cont [12/16] 0.0, 128
      %4299 = vxpose.xlu0.b32.cont [13/16] 0.0, 128
      %4300 = vxpose.xlu0.b32.cont [14/16] 0.0, 128
      %4301 = vxpose.xlu0.b32.cont [15/16] 0.0, 128
      %4302 = vxpose.xlu0.b32.end [16/16] 0.0, 128
      %v4303 = vpop.trf.xlu0
      %v4304 = vpop.trf.xlu0
      %v4305 = vpop.trf.xlu0
      %v4306 = vpop.trf.xlu0
      %v4307 = vpop.trf.xlu0
      %v4308 = vpop.trf.xlu0
      %v4309 = vpop.trf.xlu0
      %v4310 = vpop.trf.xlu0
      %v4311 = vpop.trf.xlu0
      %v4312 = vpop.trf.xlu0
      %v4313 = vpop.trf.xlu0
      %v4314 = vpop.trf.xlu0
      %v4315 = vpop.trf.xlu0
      %v4316 = vpop.trf.xlu0
      %v4317 = vpop.trf.xlu0
      %v4318 = vpop.trf.xlu0
      %v4319 = vrot.slane %v4143, 4
      %v4320 = vsel %vm1242, %v4319, %v4079
      %v4322 = vunpack.c.l.s4 1983009808
      %v4323 = vunpack.c.0.s8 %v4322
      %v4324 = vperm.slane %v4320, %v4323
      %v4325 = vrot.slane %v4175, 4
      %v4326 = vsel %vm1242, %v4325, %v4111
      %v4328 = vunpack.c.l.s4 1983009808
      %v4329 = vunpack.c.0.s8 %v4328
      %v4330 = vperm.slane %v4326, %v4329
      %v4331 = vrot.slane %v4271, 4
      %v4332 = vsel %vm1242, %v4331, %v4207
      %v4334 = vunpack.c.l.s4 1983009808
      %v4335 = vunpack.c.0.s8 %v4334
      %v4336 = vperm.slane %v4332, %v4335
      %v4337 = vrot.slane %v4303, 4
      %v4338 = vsel %vm1242, %v4337, %v4239
      %v4340 = vunpack.c.l.s4 1983009808
      %v4341 = vunpack.c.0.s8 %v4340
      %v4342 = vperm.slane %v4338, %v4341
      %v4343 = vrot.slane %v4330, 4
      %v4344 = vsel %vm1242, %v4343, %v4324
      %v4345 = vrot.slane %v4324, 4
      %v4346 = vsel %vm1242, %v4330, %v4345
      %v4348 = vunpack.c.l.s4 1934713408
      %v4349 = vunpack.c.0.s8 %v4348
      %v4350 = vperm.slane %v4344, %v4349
      %v4352 = vunpack.c.l.s4 1934713408
      %v4353 = vunpack.c.0.s8 %v4352
      %v4354 = vperm.slane %v4346, %v4353
      %v4355 = vrot.slane %v4342, 4
      %v4356 = vsel %vm1242, %v4355, %v4336
      %v4357 = vrot.slane %v4336, 4
      %v4358 = vsel %vm1242, %v4342, %v4357
      %v4360 = vunpack.c.l.s4 1934713408
      %v4361 = vunpack.c.0.s8 %v4360
      %v4362 = vperm.slane %v4356, %v4361
      %v4364 = vunpack.c.l.s4 1934713408
      %v4365 = vunpack.c.0.s8 %v4364
      %v4366 = vperm.slane %v4358, %v4365
      %v4367 = vrot.slane %v4362, 4
      %v4368 = vsel %vm1242, %v4367, %v4350
      %v4369 = vrot.slane %v4350, 4
      %v4370 = vsel %vm1242, %v4362, %v4369
      %v4371 = vrot.slane %v4366, 4
      %v4372 = vsel %vm1242, %v4371, %v4354
      %v4373 = vrot.slane %v4354, 4
      %v4374 = vsel %vm1242, %v4366, %v4373
      %v4376 = vsel %vm2862, %v4368, 0
      %v4379 = vsel %vm2862, %v2913, 0
      %4381 = vmatpush.xpose.msra.mxu0 0.0
      %4382 = vmatpush.xpose.msra.mxu0 0.0
      %4383 = vmatpush.xpose.msra.mxu0 0.0
      %4384 = vmatpush.xpose.msra.mxu0 0.0
      %4385 = vmatpush.xpose.msra.mxu0 0.0
      %4386 = vmatpush.xpose.msra.mxu0 0.0
      %4387 = vmatpush.xpose.msra.mxu0 0.0
      %4388 = vmatpush.xpose.msra.mxu0 0.0
      %4389 = vmatpush.xpose.msra.mxu0 0.0
      %4390 = vmatpush.xpose.msra.mxu0 0.0
      %4391 = vmatpush.xpose.msra.mxu0 0.0
      %4392 = vmatpush.xpose.msra.mxu0 0.0
      %4393 = vmatpush.xpose.msra.mxu0 0.0
      %4394 = vmatpush.xpose.msra.mxu0 0.0
      %4395 = vmatpush.xpose.msra.mxu0 0.0
      %4396 = vmatpush.xpose.msra.mxu0 %v4379
      %4397 = vmatmul.f32.gmra.mxu0 %v4376
      %v4398 = vpop.f32.mrf.mxu0
      %v4399 = vadd.f32 0.0, %v4398
      %4400 = vdwg.mxu0
      %v4402 = vsel %vm2862, %v4370, 0
      %v4405 = vsel %vm2862, %v2928, 0
      %4407 = vmatpush.xpose.msra.mxu0 0.0
      %4408 = vmatpush.xpose.msra.mxu0 0.0
      %4409 = vmatpush.xpose.msra.mxu0 0.0
      %4410 = vmatpush.xpose.msra.mxu0 0.0
      %4411 = vmatpush.xpose.msra.mxu0 0.0
      %4412 = vmatpush.xpose.msra.mxu0 0.0
      %4413 = vmatpush.xpose.msra.mxu0 0.0
      %4414 = vmatpush.xpose.msra.mxu0 0.0
      %4415 = vmatpush.xpose.msra.mxu0 0.0
      %4416 = vmatpush.xpose.msra.mxu0 0.0
      %4417 = vmatpush.xpose.msra.mxu0 0.0
      %4418 = vmatpush.xpose.msra.mxu0 0.0
      %4419 = vmatpush.xpose.msra.mxu0 0.0
      %4420 = vmatpush.xpose.msra.mxu0 0.0
      %4421 = vmatpush.xpose.msra.mxu0 0.0
      %4422 = vmatpush.xpose.msra.mxu0 %v4405
      %4423 = vmatmul.f32.gmra.mxu0 %v4402
      %v4424 = vpop.f32.mrf.mxu0
      %v4425 = vadd.f32 0.0, %v4424
      %4426 = vdwg.mxu0
      %v4428 = vsel %vm2862, %v4372, 0
      %v4431 = vsel %vm2862, %v2943, 0
      %4433 = vmatpush.xpose.msra.mxu0 0.0
      %4434 = vmatpush.xpose.msra.mxu0 0.0
      %4435 = vmatpush.xpose.msra.mxu0 0.0
      %4436 = vmatpush.xpose.msra.mxu0 0.0
      %4437 = vmatpush.xpose.msra.mxu0 0.0
      %4438 = vmatpush.xpose.msra.mxu0 0.0
      %4439 = vmatpush.xpose.msra.mxu0 0.0
      %4440 = vmatpush.xpose.msra.mxu0 0.0
      %4441 = vmatpush.xpose.msra.mxu0 0.0
      %4442 = vmatpush.xpose.msra.mxu0 0.0
      %4443 = vmatpush.xpose.msra.mxu0 0.0
      %4444 = vmatpush.xpose.msra.mxu0 0.0
      %4445 = vmatpush.xpose.msra.mxu0 0.0
      %4446 = vmatpush.xpose.msra.mxu0 0.0
      %4447 = vmatpush.xpose.msra.mxu0 0.0
      %4448 = vmatpush.xpose.msra.mxu0 %v4431
      %4449 = vmatmul.f32.gmra.mxu0 %v4428
      %v4450 = vpop.f32.mrf.mxu0
      %v4451 = vadd.f32 0.0, %v4450
      %4452 = vdwg.mxu0
      %v4454 = vsel %vm2862, %v4374, 0
      %v4457 = vsel %vm2862, %v2958, 0
      %4459 = vmatpush.xpose.msra.mxu0 0.0
      %4460 = vmatpush.xpose.msra.mxu0 0.0
      %4461 = vmatpush.xpose.msra.mxu0 0.0
      %4462 = vmatpush.xpose.msra.mxu0 0.0
      %4463 = vmatpush.xpose.msra.mxu0 0.0
      %4464 = vmatpush.xpose.msra.mxu0 0.0
      %4465 = vmatpush.xpose.msra.mxu0 0.0
      %4466 = vmatpush.xpose.msra.mxu0 0.0
      %4467 = vmatpush.xpose.msra.mxu0 0.0
      %4468 = vmatpush.xpose.msra.mxu0 0.0
      %4469 = vmatpush.xpose.msra.mxu0 0.0
      %4470 = vmatpush.xpose.msra.mxu0 0.0
      %4471 = vmatpush.xpose.msra.mxu0 0.0
      %4472 = vmatpush.xpose.msra.mxu0 0.0
      %4473 = vmatpush.xpose.msra.mxu0 0.0
      %4474 = vmatpush.xpose.msra.mxu0 %v4457
      %4475 = vmatmul.f32.gmra.mxu0 %v4454
      %v4476 = vpop.f32.mrf.mxu0
      %v4477 = vadd.f32 0.0, %v4476
      %4478 = vdwg.mxu0
      %4479 = vxpose.xlu0.b32.start [1/16] %v4399, 128
      %4480 = vxpose.xlu0.b32.cont [2/16] 0.0, 128
      %4481 = vxpose.xlu0.b32.cont [3/16] 0.0, 128
      %4482 = vxpose.xlu0.b32.cont [4/16] 0.0, 128
      %4483 = vxpose.xlu0.b32.cont [5/16] 0.0, 128
      %4484 = vxpose.xlu0.b32.cont [6/16] 0.0, 128
      %4485 = vxpose.xlu0.b32.cont [7/16] 0.0, 128
      %4486 = vxpose.xlu0.b32.cont [8/16] 0.0, 128
      %4487 = vxpose.xlu0.b32.cont [9/16] 0.0, 128
      %4488 = vxpose.xlu0.b32.cont [10/16] 0.0, 128
      %4489 = vxpose.xlu0.b32.cont [11/16] 0.0, 128
      %4490 = vxpose.xlu0.b32.cont [12/16] 0.0, 128
      %4491 = vxpose.xlu0.b32.cont [13/16] 0.0, 128
      %4492 = vxpose.xlu0.b32.cont [14/16] 0.0, 128
      %4493 = vxpose.xlu0.b32.cont [15/16] 0.0, 128
      %4494 = vxpose.xlu0.b32.end [16/16] 0.0, 128
      %v4495 = vpop.trf.xlu0
      %v4496 = vpop.trf.xlu0
      %v4497 = vpop.trf.xlu0
      %v4498 = vpop.trf.xlu0
      %v4499 = vpop.trf.xlu0
      %v4500 = vpop.trf.xlu0
      %v4501 = vpop.trf.xlu0
      %v4502 = vpop.trf.xlu0
      %v4503 = vpop.trf.xlu0
      %v4504 = vpop.trf.xlu0
      %v4505 = vpop.trf.xlu0
      %v4506 = vpop.trf.xlu0
      %v4507 = vpop.trf.xlu0
      %v4508 = vpop.trf.xlu0
      %v4509 = vpop.trf.xlu0
      %v4510 = vpop.trf.xlu0
      %4511 = vxpose.xlu0.b32.start [1/16] %v4425, 128
      %4512 = vxpose.xlu0.b32.cont [2/16] 0.0, 128
      %4513 = vxpose.xlu0.b32.cont [3/16] 0.0, 128
      %4514 = vxpose.xlu0.b32.cont [4/16] 0.0, 128
      %4515 = vxpose.xlu0.b32.cont [5/16] 0.0, 128
      %4516 = vxpose.xlu0.b32.cont [6/16] 0.0, 128
      %4517 = vxpose.xlu0.b32.cont [7/16] 0.0, 128
      %4518 = vxpose.xlu0.b32.cont [8/16] 0.0, 128
      %4519 = vxpose.xlu0.b32.cont [9/16] 0.0, 128
      %4520 = vxpose.xlu0.b32.cont [10/16] 0.0, 128
      %4521 = vxpose.xlu0.b32.cont [11/16] 0.0, 128
      %4522 = vxpose.xlu0.b32.cont [12/16] 0.0, 128
      %4523 = vxpose.xlu0.b32.cont [13/16] 0.0, 128
      %4524 = vxpose.xlu0.b32.cont [14/16] 0.0, 128
      %4525 = vxpose.xlu0.b32.cont [15/16] 0.0, 128
      %4526 = vxpose.xlu0.b32.end [16/16] 0.0, 128
      %v4527 = vpop.trf.xlu0
      %v4528 = vpop.trf.xlu0
      %v4529 = vpop.trf.xlu0
      %v4530 = vpop.trf.xlu0
      %v4531 = vpop.trf.xlu0
      %v4532 = vpop.trf.xlu0
      %v4533 = vpop.trf.xlu0
      %v4534 = vpop.trf.xlu0
      %v4535 = vpop.trf.xlu0
      %v4536 = vpop.trf.xlu0
      %v4537 = vpop.trf.xlu0
      %v4538 = vpop.trf.xlu0
      %v4539 = vpop.trf.xlu0
      %v4540 = vpop.trf.xlu0
      %v4541 = vpop.trf.xlu0
      %v4542 = vpop.trf.xlu0
      %4543 = vxpose.xlu0.b32.start [1/16] %v4451, 128
      %4544 = vxpose.xlu0.b32.cont [2/16] 0.0, 128
      %4545 = vxpose.xlu0.b32.cont [3/16] 0.0, 128
      %4546 = vxpose.xlu0.b32.cont [4/16] 0.0, 128
      %4547 = vxpose.xlu0.b32.cont [5/16] 0.0, 128
      %4548 = vxpose.xlu0.b32.cont [6/16] 0.0, 128
      %4549 = vxpose.xlu0.b32.cont [7/16] 0.0, 128
      %4550 = vxpose.xlu0.b32.cont [8/16] 0.0, 128
      %4551 = vxpose.xlu0.b32.cont [9/16] 0.0, 128
      %4552 = vxpose.xlu0.b32.cont [10/16] 0.0, 128
      %4553 = vxpose.xlu0.b32.cont [11/16] 0.0, 128
      %4554 = vxpose.xlu0.b32.cont [12/16] 0.0, 128
      %4555 = vxpose.xlu0.b32.cont [13/16] 0.0, 128
      %4556 = vxpose.xlu0.b32.cont [14/16] 0.0, 128
      %4557 = vxpose.xlu0.b32.cont [15/16] 0.0, 128
      %4558 = vxpose.xlu0.b32.end [16/16] 0.0, 128
      %v4559 = vpop.trf.xlu0
      %v4560 = vpop.trf.xlu0
      %v4561 = vpop.trf.xlu0
      %v4562 = vpop.trf.xlu0
      %v4563 = vpop.trf.xlu0
      %v4564 = vpop.trf.xlu0
      %v4565 = vpop.trf.xlu0
      %v4566 = vpop.trf.xlu0
      %v4567 = vpop.trf.xlu0
      %v4568 = vpop.trf.xlu0
      %v4569 = vpop.trf.xlu0
      %v4570 = vpop.trf.xlu0
      %v4571 = vpop.trf.xlu0
      %v4572 = vpop.trf.xlu0
      %v4573 = vpop.trf.xlu0
      %v4574 = vpop.trf.xlu0
      %4575 = vxpose.xlu0.b32.start [1/16] %v4477, 128
      %4576 = vxpose.xlu0.b32.cont [2/16] 0.0, 128
      %4577 = vxpose.xlu0.b32.cont [3/16] 0.0, 128
      %4578 = vxpose.xlu0.b32.cont [4/16] 0.0, 128
      %4579 = vxpose.xlu0.b32.cont [5/16] 0.0, 128
      %4580 = vxpose.xlu0.b32.cont [6/16] 0.0, 128
      %4581 = vxpose.xlu0.b32.cont [7/16] 0.0, 128
      %4582 = vxpose.xlu0.b32.cont [8/16] 0.0, 128
      %4583 = vxpose.xlu0.b32.cont [9/16] 0.0, 128
      %4584 = vxpose.xlu0.b32.cont [10/16] 0.0, 128
      %4585 = vxpose.xlu0.b32.cont [11/16] 0.0, 128
      %4586 = vxpose.xlu0.b32.cont [12/16] 0.0, 128
      %4587 = vxpose.xlu0.b32.cont [13/16] 0.0, 128
      %4588 = vxpose.xlu0.b32.cont [14/16] 0.0, 128
      %4589 = vxpose.xlu0.b32.cont [15/16] 0.0, 128
      %4590 = vxpose.xlu0.b32.end [16/16] 0.0, 128
      %v4591 = vpop.trf.xlu0
      %v4592 = vpop.trf.xlu0
      %v4593 = vpop.trf.xlu0
      %v4594 = vpop.trf.xlu0
      %v4595 = vpop.trf.xlu0
      %v4596 = vpop.trf.xlu0
      %v4597 = vpop.trf.xlu0
      %v4598 = vpop.trf.xlu0
      %v4599 = vpop.trf.xlu0
      %v4600 = vpop.trf.xlu0
      %v4601 = vpop.trf.xlu0
      %v4602 = vpop.trf.xlu0
      %v4603 = vpop.trf.xlu0
      %v4604 = vpop.trf.xlu0
      %v4605 = vpop.trf.xlu0
      %v4606 = vpop.trf.xlu0
      %v4607 = vrot.slane %v4559, 4
      %v4608 = vsel %vm1242, %v4607, %v4495
      %v4609 = vrot.slane %v4495, 4
      %v4610 = vsel %vm1242, %v4559, %v4609
      %v4612 = vunpack.c.l.s4 1983009808
      %v4613 = vunpack.c.0.s8 %v4612
      %v4614 = vperm.slane %v4608, %v4613
      %v4616 = vunpack.c.l.s4 1983009808
      %v4617 = vunpack.c.0.s8 %v4616
      %v4618 = vperm.slane %v4610, %v4617
      %v4619 = vrot.slane %v4591, 4
      %v4620 = vsel %vm1242, %v4619, %v4527
      %v4621 = vrot.slane %v4527, 4
      %v4622 = vsel %vm1242, %v4591, %v4621
      %v4624 = vunpack.c.l.s4 1983009808
      %v4625 = vunpack.c.0.s8 %v4624
      %v4626 = vperm.slane %v4620, %v4625
      %v4628 = vunpack.c.l.s4 1983009808
      %v4629 = vunpack.c.0.s8 %v4628
      %v4630 = vperm.slane %v4622, %v4629
      %v4631 = vrot.slane %v4626, 4
      %v4632 = vsel %vm1242, %v4631, %v4614
      %v4633 = vrot.slane %v4614, 4
      %v4634 = vsel %vm1242, %v4626, %v4633
      %v4636 = vunpack.c.l.s4 1934713408
      %v4637 = vunpack.c.0.s8 %v4636
      %v4638 = vperm.slane %v4632, %v4637
      %v4640 = vunpack.c.l.s4 1934713408
      %v4641 = vunpack.c.0.s8 %v4640
      %v4642 = vperm.slane %v4634, %v4641
      %v4643 = vrot.slane %v4630, 4
      %v4644 = vsel %vm1242, %v4643, %v4618
      %v4645 = vrot.slane %v4618, 4
      %v4646 = vsel %vm1242, %v4630, %v4645
      %v4648 = vunpack.c.l.s4 1934713408
      %v4649 = vunpack.c.0.s8 %v4648
      %v4650 = vperm.slane %v4644, %v4649
      %v4652 = vunpack.c.l.s4 1934713408
      %v4653 = vunpack.c.0.s8 %v4652
      %v4654 = vperm.slane %v4646, %v4653
      %v4655 = vrot.slane %v4638, 4
      %v4656 = vsel %vm1242, 0.0, %v4655
      %v4657 = vrot.slane %v4642, 4
      %v4658 = vsel %vm1242, 0.0, %v4657
      %v4659 = vrot.slane %v4650, 4
      %v4660 = vsel %vm1242, 0.0, %v4659
      %v4661 = vrot.slane %v4654, 4
      %v4662 = vsel %vm1242, 0.0, %v4661
      %v4663 = vrot.slane %v2943, 4
      %v4664 = vsel %vm1242, %v4663, %v2913
      %v4665 = vrot.slane %v2913, 4
      %v4666 = vsel %vm1242, %v2943, %v4665
      %v4668 = vunpack.c.l.s4 1983009808
      %v4669 = vunpack.c.0.s8 %v4668
      %v4670 = vperm.slane %v4664, %v4669
      %v4672 = vunpack.c.l.s4 1983009808
      %v4673 = vunpack.c.0.s8 %v4672
      %v4674 = vperm.slane %v4666, %v4673
      %v4675 = vrot.slane %v2958, 4
      %v4676 = vsel %vm1242, %v4675, %v2928
      %v4677 = vrot.slane %v2928, 4
      %v4678 = vsel %vm1242, %v2958, %v4677
      %v4680 = vunpack.c.l.s4 1983009808
      %v4681 = vunpack.c.0.s8 %v4680
      %v4682 = vperm.slane %v4676, %v4681
      %v4684 = vunpack.c.l.s4 1983009808
      %v4685 = vunpack.c.0.s8 %v4684
      %v4686 = vperm.slane %v4678, %v4685
      %v4687 = vrot.slane %v4682, 4
      %v4688 = vsel %vm1242, %v4687, %v4670
      %v4689 = vrot.slane %v4670, 4
      %v4690 = vsel %vm1242, %v4682, %v4689
      %v4692 = vunpack.c.l.s4 1934713408
      %v4693 = vunpack.c.0.s8 %v4692
      %v4694 = vperm.slane %v4688, %v4693
      %v4696 = vunpack.c.l.s4 1934713408
      %v4697 = vunpack.c.0.s8 %v4696
      %v4698 = vperm.slane %v4690, %v4697
      %v4699 = vrot.slane %v4686, 4
      %v4700 = vsel %vm1242, %v4699, %v4674
      %v4701 = vrot.slane %v4674, 4
      %v4702 = vsel %vm1242, %v4686, %v4701
      %v4704 = vunpack.c.l.s4 1934713408
      %v4705 = vunpack.c.0.s8 %v4704
      %v4706 = vperm.slane %v4700, %v4705
      %v4708 = vunpack.c.l.s4 1934713408
      %v4709 = vunpack.c.0.s8 %v4708
      %v4710 = vperm.slane %v4702, %v4709
      %v4711 = vrot.slane %v4694, 4
      %v4712 = vsel %vm1242, 0.0, %v4711
      %v4713 = vrot.slane %v4698, 4
      %v4714 = vsel %vm1242, 0.0, %v4713
      %v4715 = vrot.slane %v4706, 4
      %v4716 = vsel %vm1242, 0.0, %v4715
      %v4717 = vrot.slane %v4710, 4
      %v4718 = vsel %vm1242, 0.0, %v4717
      %v4720 = vsel %vm2862, %v4694, 0
      %4722 = vmatpush.msra.mxu0 0.0
      %4723 = vmatpush.msra.mxu0 0.0
      %4724 = vmatpush.msra.mxu0 0.0
      %4725 = vmatpush.msra.mxu0 0.0
      %4726 = vmatpush.msra.mxu0 0.0
      %4727 = vmatpush.msra.mxu0 0.0
      %4728 = vmatpush.msra.mxu0 0.0
      %4729 = vmatpush.msra.mxu0 0.0
      %4730 = vmatpush.msra.mxu0 0.0
      %4731 = vmatpush.msra.mxu0 0.0
      %4732 = vmatpush.msra.mxu0 0.0
      %4733 = vmatpush.msra.mxu0 0.0
      %4734 = vmatpush.msra.mxu0 0.0
      %4735 = vmatpush.msra.mxu0 %v587
      %4736 = vmatpush.msra.mxu0 %v586
      %4737 = vmatpush.msra.mxu0 %v585
      %4738 = vmatmul.f32.gmra.mxu0 %v4720
      %v4739 = vpop.f32.mrf.mxu0
      %v4740 = vadd.f32 0.0, %v4739
      %4741 = vdwg.mxu0
      %v4743 = vsel %vm2862, %v4712, 0
      %4745 = vmatpush.msra.mxu0 0.0
      %4746 = vmatpush.msra.mxu0 0.0
      %4747 = vmatpush.msra.mxu0 0.0
      %4748 = vmatpush.msra.mxu0 0.0
      %4749 = vmatpush.msra.mxu0 0.0
      %4750 = vmatpush.msra.mxu0 0.0
      %4751 = vmatpush.msra.mxu0 0.0
      %4752 = vmatpush.msra.mxu0 0.0
      %4753 = vmatpush.msra.mxu0 0.0
      %4754 = vmatpush.msra.mxu0 0.0
      %4755 = vmatpush.msra.mxu0 0.0
      %4756 = vmatpush.msra.mxu0 0.0
      %4757 = vmatpush.msra.mxu0 0.0
      %4758 = vmatpush.msra.mxu0 %v590
      %4759 = vmatpush.msra.mxu0 %v589
      %4760 = vmatpush.msra.mxu0 %v588
      %4761 = vmatmul.f32.gmra.mxu0 %v4743
      %v4762 = vpop.f32.mrf.mxu0
      %v4763 = vadd.f32 0.0, %v4762
      %4764 = vdwg.mxu0
      %v4766 = vsel %vm2862, %v4698, 0
      %4768 = vmatpush.msra.mxu0 0.0
      %4769 = vmatpush.msra.mxu0 0.0
      %4770 = vmatpush.msra.mxu0 0.0
      %4771 = vmatpush.msra.mxu0 0.0
      %4772 = vmatpush.msra.mxu0 0.0
      %4773 = vmatpush.msra.mxu0 0.0
      %4774 = vmatpush.msra.mxu0 0.0
      %4775 = vmatpush.msra.mxu0 0.0
      %4776 = vmatpush.msra.mxu0 0.0
      %4777 = vmatpush.msra.mxu0 0.0
      %4778 = vmatpush.msra.mxu0 0.0
      %4779 = vmatpush.msra.mxu0 0.0
      %4780 = vmatpush.msra.mxu0 0.0
      %4781 = vmatpush.msra.mxu0 %v593
      %4782 = vmatpush.msra.mxu0 %v592
      %4783 = vmatpush.msra.mxu0 %v591
      %4784 = vmatmul.f32.gmra.mxu0 %v4766
      %v4785 = vpop.f32.mrf.mxu0
      %v4786 = vadd.f32 0.0, %v4785
      %4787 = vdwg.mxu0
      %v4789 = vsel %vm2862, %v4714, 0
      %4791 = vmatpush.msra.mxu0 0.0
      %4792 = vmatpush.msra.mxu0 0.0
      %4793 = vmatpush.msra.mxu0 0.0
      %4794 = vmatpush.msra.mxu0 0.0
      %4795 = vmatpush.msra.mxu0 0.0
      %4796 = vmatpush.msra.mxu0 0.0
      %4797 = vmatpush.msra.mxu0 0.0
      %4798 = vmatpush.msra.mxu0 0.0
      %4799 = vmatpush.msra.mxu0 0.0
      %4800 = vmatpush.msra.mxu0 0.0
      %4801 = vmatpush.msra.mxu0 0.0
      %4802 = vmatpush.msra.mxu0 0.0
      %4803 = vmatpush.msra.mxu0 0.0
      %4804 = vmatpush.msra.mxu0 %v596
      %4805 = vmatpush.msra.mxu0 %v595
      %4806 = vmatpush.msra.mxu0 %v594
      %4807 = vmatmul.f32.gmra.mxu0 %v4789
      %v4808 = vpop.f32.mrf.mxu0
      %v4809 = vadd.f32 0.0, %v4808
      %4810 = vdwg.mxu0
      %v4812 = vsel %vm2862, %v4706, 0
      %4814 = vmatpush.msra.mxu0 0.0
      %4815 = vmatpush.msra.mxu0 0.0
      %4816 = vmatpush.msra.mxu0 0.0
      %4817 = vmatpush.msra.mxu0 0.0
      %4818 = vmatpush.msra.mxu0 0.0
      %4819 = vmatpush.msra.mxu0 0.0
      %4820 = vmatpush.msra.mxu0 0.0
      %4821 = vmatpush.msra.mxu0 0.0
      %4822 = vmatpush.msra.mxu0 0.0
      %4823 = vmatpush.msra.mxu0 0.0
      %4824 = vmatpush.msra.mxu0 0.0
      %4825 = vmatpush.msra.mxu0 0.0
      %4826 = vmatpush.msra.mxu0 0.0
      %4827 = vmatpush.msra.mxu0 %v599
      %4828 = vmatpush.msra.mxu0 %v598
      %4829 = vmatpush.msra.mxu0 %v597
      %4830 = vmatmul.f32.gmra.mxu0 %v4812
      %v4831 = vpop.f32.mrf.mxu0
      %v4832 = vadd.f32 0.0, %v4831
      %4833 = vdwg.mxu0
      %v4835 = vsel %vm2862, %v4716, 0
      %4837 = vmatpush.msra.mxu0 0.0
      %4838 = vmatpush.msra.mxu0 0.0
      %4839 = vmatpush.msra.mxu0 0.0
      %4840 = vmatpush.msra.mxu0 0.0
      %4841 = vmatpush.msra.mxu0 0.0
      %4842 = vmatpush.msra.mxu0 0.0
      %4843 = vmatpush.msra.mxu0 0.0
      %4844 = vmatpush.msra.mxu0 0.0
      %4845 = vmatpush.msra.mxu0 0.0
      %4846 = vmatpush.msra.mxu0 0.0
      %4847 = vmatpush.msra.mxu0 0.0
      %4848 = vmatpush.msra.mxu0 0.0
      %4849 = vmatpush.msra.mxu0 0.0
      %4850 = vmatpush.msra.mxu0 %v602
      %4851 = vmatpush.msra.mxu0 %v601
      %4852 = vmatpush.msra.mxu0 %v600
      %4853 = vmatmul.f32.gmra.mxu0 %v4835
      %v4854 = vpop.f32.mrf.mxu0
      %v4855 = vadd.f32 0.0, %v4854
      %4856 = vdwg.mxu0
      %v4858 = vsel %vm2862, %v4710, 0
      %4860 = vmatpush.msra.mxu0 0.0
      %4861 = vmatpush.msra.mxu0 0.0
      %4862 = vmatpush.msra.mxu0 0.0
      %4863 = vmatpush.msra.mxu0 0.0
      %4864 = vmatpush.msra.mxu0 0.0
      %4865 = vmatpush.msra.mxu0 0.0
      %4866 = vmatpush.msra.mxu0 0.0
      %4867 = vmatpush.msra.mxu0 0.0
      %4868 = vmatpush.msra.mxu0 0.0
      %4869 = vmatpush.msra.mxu0 0.0
      %4870 = vmatpush.msra.mxu0 0.0
      %4871 = vmatpush.msra.mxu0 0.0
      %4872 = vmatpush.msra.mxu0 0.0
      %4873 = vmatpush.msra.mxu0 %v605
      %4874 = vmatpush.msra.mxu0 %v604
      %4875 = vmatpush.msra.mxu0 %v603
      %4876 = vmatmul.f32.gmra.mxu0 %v4858
      %v4877 = vpop.f32.mrf.mxu0
      %v4878 = vadd.f32 0.0, %v4877
      %4879 = vdwg.mxu0
      %v4881 = vsel %vm2862, %v4718, 0
      %4883 = vmatpush.msra.mxu0 0.0
      %4884 = vmatpush.msra.mxu0 0.0
      %4885 = vmatpush.msra.mxu0 0.0
      %4886 = vmatpush.msra.mxu0 0.0
      %4887 = vmatpush.msra.mxu0 0.0
      %4888 = vmatpush.msra.mxu0 0.0
      %4889 = vmatpush.msra.mxu0 0.0
      %4890 = vmatpush.msra.mxu0 0.0
      %4891 = vmatpush.msra.mxu0 0.0
      %4892 = vmatpush.msra.mxu0 0.0
      %4893 = vmatpush.msra.mxu0 0.0
      %4894 = vmatpush.msra.mxu0 0.0
      %4895 = vmatpush.msra.mxu0 0.0
      %4896 = vmatpush.msra.mxu0 %v608
      %4897 = vmatpush.msra.mxu0 %v607
      %4898 = vmatpush.msra.mxu0 %v606
      %4899 = vmatmul.f32.gmra.mxu0 %v4881
      %v4900 = vpop.f32.mrf.mxu0
      %v4901 = vadd.f32 0.0, %v4900
      %4902 = vdwg.mxu0
      %4911 = vst [vmem:[#allocation1] ss:$2 sm:$0xff] %v4740
      %s4912 = scalar_lea.vmem [#allocation1], 1
      %4913 = vst [vmem:[%s4912] ss:$2 sm:$0xff] %v4763
      %s4914 = scalar_lea.vmem [#allocation1], 16
      %4915 = vst [vmem:[%s4914] ss:$2 sm:$0xff] %v4786
      %s4916 = scalar_lea.vmem [#allocation1], 17
      %4917 = vst [vmem:[%s4916] ss:$2 sm:$0xff] %v4809
      %s4918 = scalar_lea.vmem [#allocation1], 32
      %4919 = vst [vmem:[%s4918] ss:$2 sm:$0xff] %v4832
      %s4920 = scalar_lea.vmem [#allocation1], 33
      %4921 = vst [vmem:[%s4920] ss:$2 sm:$0xff] %v4855
      %s4922 = scalar_lea.vmem [#allocation1], 48
      %4923 = vst [vmem:[%s4922] ss:$2 sm:$0xff] %v4878
      %s4924 = scalar_lea.vmem [#allocation1], 49
      %4925 = vst [vmem:[%s4924] ss:$2 sm:$0xff] %v4901
      %v4926 = vld.sshfl [vmem:[#allocation1] sm:$0xff pattern:$0x75316420]
      %v4927 = vld.sshfl [vmem:[#allocation1 + $0x10] sm:$0xff pattern:$0x75316420]
      %v4928 = vld.sshfl [vmem:[#allocation1 + $0x20] sm:$0xff pattern:$0x75316420]
      %v4929 = vld.sshfl [vmem:[#allocation1 + $0x30] sm:$0xff pattern:$0x75316420]
      %v4930 = vsel %vm688, %v4926, 0
      %v4932 = vsel %vm688, %v4927, 0
      %v4934 = vsel %vm688, %v4928, 0
      %v4936 = vsel %vm688, %v4929, 0
      %vm4938 = vcmask 1040384
      %v4940 = vsel %vm4938, %v363, 0
      %4942 = vmatpush.msra.mxu0 0.0
      %4943 = vmatpush.msra.mxu0 0.0
      %4944 = vmatpush.msra.mxu0 0.0
      %4945 = vmatpush.msra.mxu0 0.0
      %4946 = vmatpush.msra.mxu0 0.0
      %4947 = vmatpush.msra.mxu0 0.0
      %4948 = vmatpush.msra.mxu0 0.0
      %4949 = vmatpush.msra.mxu0 0.0
      %4950 = vmatpush.msra.mxu0 0.0
      %4951 = vmatpush.msra.mxu0 0.0
      %4952 = vmatpush.msra.mxu0 0.0
      %4953 = vmatpush.msra.mxu0 0.0
      %4954 = vmatpush.msra.mxu0 0.0
      %4955 = vmatpush.msra.mxu0 0.0
      %4956 = vmatpush.msra.mxu0 %v4940
      %4957 = vmatpush.msra.mxu0 %v362
      %4958 = vmatmul.f32.gmra.mxu0 %v4930
      %v4959 = vpop.f32.mrf.mxu0
      %v4960 = vadd.f32 0.0, %v4959
      %4961 = vmatmul.f32.gmra.mxu0 %v4932
      %v4962 = vpop.f32.mrf.mxu0
      %v4963 = vadd.f32 0.0, %v4962
      %4964 = vmatmul.f32.gmra.mxu0 %v4934
      %v4965 = vpop.f32.mrf.mxu0
      %v4966 = vadd.f32 0.0, %v4965
      %4967 = vmatmul.f32.gmra.mxu0 %v4936
      %v4968 = vpop.f32.mrf.mxu0
      %v4969 = vadd.f32 0.0, %v4968
      %4970 = vdwg.mxu0
      %v4975 = vrot.slane %v4960, 4
      %v4976 = vrot.slane %v4963, 4
      %v4977 = vrot.slane %v4966, 4
      %v4978 = vrot.slane %v4969, 4
      %v4983 = vadd.f32 %v4638, %v4960
      %v4984 = vadd.f32 %v4656, %v4975
      %v4985 = vadd.f32 %v4642, %v4963
      %v4986 = vadd.f32 %v4658, %v4976
      %v4987 = vadd.f32 %v4650, %v4966
      %v4988 = vadd.f32 %v4660, %v4977
      %v4989 = vadd.f32 %v4654, %v4969
      %v4990 = vadd.f32 %v4662, %v4978
      %vm4991 = vcmask 60416
      %4992 = vst.msk [vmem:[%s302] sm:$0xf] %vm4991, %v4983
      %4993 = vst.msk [vmem:[%s302 + $0x4] sm:$0xf] %vm4991, %v4984
      %4994 = vst.msk [vmem:[%s302 + $0x8] sm:$0xf] %vm4991, %v4985
      %4995 = vst.msk [vmem:[%s302 + $0xc] sm:$0xf] %vm4991, %v4986
      %4996 = vst.msk [vmem:[%s302 + $0x10] sm:$0xf] %vm4991, %v4987
      %4997 = vst.msk [vmem:[%s302 + $0x14] sm:$0xf] %vm4991, %v4988
      %4998 = vst.msk [vmem:[%s302 + $0x18] sm:$0xf] %vm4991, %v4989
      %4999 = vst.msk [vmem:[%s302 + $0x1c] sm:$0xf] %vm4991, %v4990
      %s5000 = smul.u32 8, %s21
      %p5001 = scmp.lt.s32.totalorder %s20, 1
      %s5002 = scalar_select %p5001, %s20, 1
      %p5003 = scmp.lt.s32.totalorder %s5000, 15
      %s5004 = scalar_select %p5003, %s5000, 15
      %s5005 = smul.addr %s5002, 16
      %s5006 = sadd.s32 %s5004, %s5005
      %s5007 = smul.addr %s5006, 4
      %s5008 = scalar_lea.vmem %s5, %s5007
      // Predicated region
      $region41: #{tpu_custom_call.1} parent=39 // pred_check
        %p5009 = pneg %p170
      $region42: #{tpu_custom_call.1} parent=39 // pred_check_branch
        %5011 = sbr.rel (%p5009) target = $region44
      $region43: #{tpu_custom_call.1} parent=39 // pred_region
        %s5012 = smul.u32 8, %s21
      $region44: #{tpu_custom_call.1} parent=39 // pred_fallthru
        _
    $region40: #{tpu_custom_call.1} parent=5 // pred_fallthru
      _
    %p5013 = scmp.le.s32.totalorder 2, %s11
    // Predicated region
    $region45: #{tpu_custom_call.1} parent=5 // pred_check
      %p5014 = pneg %p5013
    $region46: #{tpu_custom_call.1} parent=5 // pred_check_branch
      %5016 = sbr.rel (%p5014) target = $region48
    $region47: #{tpu_custom_call.1} parent=5 // pred_region
      %s5017 = ssub.s32 %s11, 2
      // Predicated region
      $region49: #{tpu_custom_call.1} parent=47 // pred_check
        %p5018 = pneg %p176
      $region50: #{tpu_custom_call.1} parent=47 // pred_check_branch
        %5020 = sbr.rel (%p5018) target = $region52
      $region51: #{tpu_custom_call.1} parent=47 // pred_region
        %s5021 = smul.u32 8, %s23
        %p5022 = scmp.lt.s32.totalorder %s22, 1
        %s5023 = scalar_select %p5022, %s22, 1
        %p5024 = scmp.lt.s32.totalorder %s5021, 15
        %s5025 = scalar_select %p5024, %s5021, 15
        %s5026 = smul.addr %s5023, 16
        %s5027 = sadd.s32 %s5025, %s5026
        %s5028 = smul.addr %s5027, 4
        %s5029 = scalar_lea.vmem %s5, %s5028
      $region52: #{tpu_custom_call.1} parent=47 // pred_fallthru
        _
    $region48: #{tpu_custom_call.1} parent=5 // pred_fallthru
      _
  $region6: #{tpu_custom_call.1} parent=0 // loop_footer
    %s15 = sadd.s32 1, %s11
  $region7: #{tpu_custom_call.1} parent=0 // loop_footer_branch
    %10 = sbr.rel target = $region3
  $region8: #{tpu_custom_call.1} parent=0 // loop_exit
    _

</llo_original>
